<compile_context>
chip_gen: v7x
topology: tpu7x:2x2x1
jax: 0.10.0
libtpu: 0.0.40
codegen_flags: <defaults>
</compile_context>

<pallas_src>
import jax
import jax.numpy as jnp
from jax.experimental import pallas as pl
from jax.experimental.pallas import tpu as pltpu

_COMPILER_PARAMS = pltpu.CompilerParams(
    dimension_semantics=("parallel",),
    vmem_limit_bytes=32 * 1024 * 1024,
)


# ---------------------------------------------------------------------------
# Pallas kernels
# ---------------------------------------------------------------------------
def _inorm_prelu(acc, gamma, beta, alpha):
    """InstanceNorm2d(affine=True, eps=1e-5) + per-channel PReLU (f32 math).

    acc: (C, S) f32 conv output of one sample (S = OH*OW on the lane dim).
    gamma/beta/alpha: (C, 1) f32.
    One-pass stats: var = E[x^2] - E[x]^2 (single pair of lane reductions).
    """
    inv_s = 1.0 / float(acc.shape[-1])
    mean = jnp.sum(acc, axis=-1, keepdims=True) * inv_s
    ex2 = jnp.sum(acc * acc, axis=-1, keepdims=True) * inv_s
    var = jnp.maximum(ex2 - mean * mean, 0.0)
    xn = (acc - mean) * jax.lax.rsqrt(var + 1e-5)
    y = xn * gamma + beta
    return jnp.where(y >= 0.0, y, alpha * y)


def _conv_block_kernel(p_ref, w_ref, g_ref, b_ref, a_ref, o_ref):
    # p_ref: (1, K, S) bf16 im2col patches of one sample (K = Cin*16, S = OH*OW)
    # w_ref: (Cout, K) bf16 spectral-normalized conv weight
    # Lane-dense matmul on the MXU; f32 accumulation.
    acc = jnp.dot(w_ref[...], p_ref[0], preferred_element_type=jnp.float32)
    y = _inorm_prelu(acc, g_ref[...], b_ref[...], a_ref[...])
    o_ref[0] = y.astype(o_ref.dtype)


def _final_block_kernel(p_ref, w_ref, g_ref, b_ref, a_ref,
                        w1_ref, b1_ref, afc_ref, w2_ref, b2_ref, slope_ref,
                        o_ref):
    # Last conv block + full head, fused for one sample.
    acc = jnp.dot(w_ref[...], p_ref[0], preferred_element_type=jnp.float32)
    y = _inorm_prelu(acc, g_ref[...], b_ref[...], a_ref[...])      # (8ndf, S) f32
    pooled = jnp.max(y, axis=-1, keepdims=True)                    # AdaptiveMaxPool2d(1): (8ndf,1)
    # Flatten + Linear(8ndf -> 4ndf): h[j] = sum_k W1[j,k]*pooled[k] + b1[j]
    h = jnp.sum(w1_ref[...] * pooled, axis=0, keepdims=True) + b1_ref[...]   # (1, 4ndf)
    # Dropout(0.3) is the identity at inference time.
    h = jnp.where(h >= 0.0, h, afc_ref[...] * h)                   # PReLU(4ndf)
    z = jnp.sum(w2_ref[...] * h, axis=-1, keepdims=True) + b2_ref[...]       # Linear(4ndf->1): (1,1)
    # LearnableSigmoid: beta(=1, constructor default) * sigmoid(slope * z)
    o_ref[0] = 1.0 / (1.0 + jnp.exp(-(slope_ref[...] * z)))


# ---------------------------------------------------------------------------
# pallas_call wrappers
# ---------------------------------------------------------------------------
def _conv_block(p, w2d, gamma, beta, alpha):
    B, K, S = p.shape
    cout = w2d.shape[0]
    const = lambda b: (0, 0)
    return pl.pallas_call(
        _conv_block_kernel,
        out_shape=jax.ShapeDtypeStruct((B, cout, S), jnp.bfloat16),
        grid_spec=pltpu.PrefetchScalarGridSpec(
            num_scalar_prefetch=0,
            grid=(B,),
            in_specs=[
                pl.BlockSpec((1, K, S), lambda b: (b, 0, 0)),
                pl.BlockSpec((cout, K), const),
                pl.BlockSpec((cout, 1), const),
                pl.BlockSpec((cout, 1), const),
                pl.BlockSpec((cout, 1), const),
            ],
            out_specs=pl.BlockSpec((1, cout, S), lambda b: (b, 0, 0)),
        ),
        compiler_params=_COMPILER_PARAMS,
    )(p, w2d, gamma, beta, alpha)


def _final_block(p, w2d, gamma, beta, alpha, w1_t, b1, afc, w2, b2, slope):
    B, K, S = p.shape
    cout = w2d.shape[0]
    c4 = w1_t.shape[1]
    const = lambda b: (0, 0)
    out = pl.pallas_call(
        _final_block_kernel,
        out_shape=jax.ShapeDtypeStruct((B, 1, 1), jnp.float32),
        grid_spec=pltpu.PrefetchScalarGridSpec(
            num_scalar_prefetch=0,
            grid=(B,),
            in_specs=[
                pl.BlockSpec((1, K, S), lambda b: (b, 0, 0)),
                pl.BlockSpec((cout, K), const),
                pl.BlockSpec((cout, 1), const),
                pl.BlockSpec((cout, 1), const),
                pl.BlockSpec((cout, 1), const),
                pl.BlockSpec((cout, c4), const),
                pl.BlockSpec((1, c4), const),
                pl.BlockSpec((1, c4), const),
                pl.BlockSpec((1, c4), const),
                pl.BlockSpec((1, 1), const),
                pl.BlockSpec((1, 1), const),
            ],
            out_specs=pl.BlockSpec((1, 1, 1), lambda b: (b, 0, 0)),
        ),
        compiler_params=_COMPILER_PARAMS,
    )(p, w2d, gamma, beta, alpha, w1_t, b1, afc, w2, b2, slope)
    return out.reshape(B, 1)


# ---------------------------------------------------------------------------
# Plain-JAX glue
# ---------------------------------------------------------------------------
def _extract_patches(x):
    """NCHW -> (B, Cin*16, OH*OW) im2col patches for a 4x4/s2/p1 conv.

    Pure data movement (pad + strided slices + stack); orientation chosen so
    the Pallas matmul is lane-dense and its output is already in (C, H*W).
    """
    # TODO(synk): gather the 4x4 taps inside the kernel (phase-split input) to
    # avoid materializing the ~4x-sized patches tensor in HBM.
    B, C, H, W = x.shape
    OH = (H + 2 - 4) // 2 + 1
    OW = (W + 2 - 4) // 2 + 1
    xp = jnp.pad(x, ((0, 0), (0, 0), (1, 1), (1, 1)))
    taps = []
    for ki in range(4):
        for kj in range(4):
            taps.append(xp[:, :, ki:ki + 2 * OH:2, kj:kj + 2 * OW:2])
    p = jnp.stack(taps, axis=2)                        # (B, C, 16, OH, OW)
    return p.reshape(B, C * 16, OH * OW), OH, OW


def _spectral_normalize(w, n_iter=30):
    """weight / sigma_max, deterministic power iteration (PyTorch runs one
    iteration per forward with a persistent random u; no bit-match expected)."""
    w2d = w.reshape(w.shape[0], -1)
    v = jnp.ones((w2d.shape[1],), w.dtype) / jnp.sqrt(float(w2d.shape[1]))
    u = jnp.ones((w2d.shape[0],), w.dtype)
    for _ in range(n_iter):
        u = w2d @ v
        u = u / (jnp.linalg.norm(u) + 1e-12)
        v = w2d.T @ u
        v = v / (jnp.linalg.norm(v) + 1e-12)
    sigma = u @ (w2d @ v)
    return w / sigma


def prepare_params(conv_raw, lw1, lb1, alpha_fc, lw2, lb2, slope):
    """One-time (per checkpoint) prep, hoisted out of the jitted forward:
    spectral norm, weight reshapes, bf16 casts for MXU operands."""
    conv = []
    for (w, gamma, beta, alpha) in conv_raw:
        cout = w.shape[0]
        w2d = _spectral_normalize(w).reshape(cout, -1).astype(jnp.bfloat16)
        conv.append((w2d,
                     gamma.reshape(cout, 1).astype(jnp.float32),
                     beta.reshape(cout, 1).astype(jnp.float32),
                     alpha.reshape(cout, 1).astype(jnp.float32)))
    return {
        "conv": tuple(conv),
        "w1_t": _spectral_normalize(lw1).T.astype(jnp.float32),   # (8ndf, 4ndf)
        "b1": lb1.reshape(1, -1).astype(jnp.float32),
        "afc": alpha_fc.reshape(1, -1).astype(jnp.float32),
        "w2": _spectral_normalize(lw2).astype(jnp.float32),       # (1, 4ndf)
        "b2": lb2.reshape(1, 1).astype(jnp.float32),
        "slope": slope.reshape(1, 1).astype(jnp.float32),
    }


@jax.jit
def discriminator_forward(x, y, params):
    h = jnp.concatenate([x, y], axis=1).astype(jnp.bfloat16)      # (B, 2, H, W)
    conv = params["conv"]
    for (w2d, gamma, beta, alpha) in conv[:-1]:
        p, OH, OW = _extract_patches(h)
        h = _conv_block(p, w2d, gamma, beta, alpha)               # (B, Cout, OH*OW) bf16
        h = h.reshape(h.shape[0], h.shape[1], OH, OW)             # free metadata reshape
    p, _, _ = _extract_patches(h)
    w2d, gamma, beta, alpha = conv[-1]
    return _final_block(p, w2d, gamma, beta, alpha,
                        params["w1_t"], params["b1"], params["afc"],
                        params["w2"], params["b2"], params["slope"])


# ---------------------------------------------------------------------------
# Demo / smoke test
# ---------------------------------------------------------------------------
if __name__ == "__main__":
    key = jax.random.PRNGKey(0)
    ks = jax.random.split(key, 12)

    B, H, W, ndf = 2, 32, 32, 8
    x = jax.random.normal(ks[0], (B, 1, H, W), jnp.float32)
    y = jax.random.normal(ks[1], (B, 1, H, W), jnp.float32)

    # conv stack parameters (PyTorch defaults: gamma=1, beta=0, PReLU a=0.25)
    chans = [2, ndf, 2 * ndf, 4 * ndf, 8 * ndf]
    conv_raw = []
    for i in range(4):
        cin, cout = chans[i], chans[i + 1]
        w = jax.random.normal(ks[2 + i], (cout, cin, 4, 4), jnp.float32) * 0.1
        gamma = jnp.ones((cout,), jnp.float32)
        beta = jnp.zeros((cout,), jnp.float32)
        alpha = jnp.full((cout,), 0.25, jnp.float32)
        conv_raw.append((w, gamma, beta, alpha))

    # head parameters
    lw1 = jax.random.normal(ks[6], (4 * ndf, 8 * ndf), jnp.float32) * 0.1
    lb1 = jax.random.normal(ks[7], (4 * ndf,), jnp.float32) * 0.01
    alpha_fc = jnp.full((4 * ndf,), 0.25, jnp.float32)
    lw2 = jax.random.normal(ks[8], (1, 4 * ndf), jnp.float32) * 0.1
    lb2 = jax.random.normal(ks[9], (1,), jnp.float32) * 0.01
    slope = jnp.ones((1,), jnp.float32)   # LearnableSigmoid slope (beta fixed to 1)

    params = prepare_params(conv_raw, lw1, lb1, alpha_fc, lw2, lb2, slope)
    out = discriminator_forward(x, y, params)
    out = jax.block_until_ready(out)
    assert out.shape == (B, 1), out.shape
    assert bool(jnp.all(jnp.isfinite(out)))
    print("KERNEL_OK")
</pallas_src>

<mosaic_0001>
module attributes {stable_mosaic.version = 11 : i64} {
  func.func @_conv_block_kernel(%arg0: i32, %arg1: memref<1x32x256xbf16, #tpu.memory_space<vmem>>, %arg2: memref<8x32xbf16, #tpu.memory_space<vmem>>, %arg3: memref<8x1xf32, #tpu.memory_space<vmem>>, %arg4: memref<8x1xf32, #tpu.memory_space<vmem>>, %arg5: memref<8x1xf32, #tpu.memory_space<vmem>>, %arg6: memref<1x8x256xbf16, #tpu.memory_space<vmem>>) attributes {dimension_semantics = [#tpu.dimension_semantics<parallel>], iteration_bounds = array<i64: 2>, scalar_prefetch = 0 : i64, scratch_operands = 0 : i64, tpu.core_type = #tpu.core_type<tc>, window_params = [{transform_indices = @transform_0, window_bounds = array<i64: 1, 32, 256>}, {pipeline_mode = #tpu.pipeline_mode<synchronous>, transform_indices = @transform_1, window_bounds = array<i64: 8, 32>}, {pipeline_mode = #tpu.pipeline_mode<synchronous>, transform_indices = @transform_2, window_bounds = array<i64: 8, 1>}, {pipeline_mode = #tpu.pipeline_mode<synchronous>, transform_indices = @transform_3, window_bounds = array<i64: 8, 1>}, {pipeline_mode = #tpu.pipeline_mode<synchronous>, transform_indices = @transform_4, window_bounds = array<i64: 8, 1>}, {transform_indices = @transform_5, window_bounds = array<i64: 1, 8, 256>}]} {
    %c0 = arith.constant 0 : index
    %c0_0 = arith.constant 0 : index
    %0 = vector.load %arg2[%c0, %c0_0] : memref<8x32xbf16, #tpu.memory_space<vmem>>, vector<8x32xbf16>
    %c0_1 = arith.constant 0 : index
    %c0_2 = arith.constant 0 : index
    %c0_3 = arith.constant 0 : index
    %1 = vector.load %arg1[%c0_1, %c0_2, %c0_3] : memref<1x32x256xbf16, #tpu.memory_space<vmem>>, vector<1x32x256xbf16>
    %2 = vector.shape_cast %1 : vector<1x32x256xbf16> to vector<32x256xbf16>
    %cst = arith.constant dense<0.000000e+00> : vector<8x256xf32>
    %3 = tpu.matmul %0, %2, %cst {dimension_numbers = #tpu.dot_dimension_numbers<[1], [0], [0], [1], [0, 0, 1, 1], [], []>} : vector<8x32xbf16>, vector<32x256xbf16>, vector<8x256xf32> -> vector<8x256xf32>
    %c0_4 = arith.constant 0 : index
    %c0_5 = arith.constant 0 : index
    %4 = vector.load %arg3[%c0_4, %c0_5] : memref<8x1xf32, #tpu.memory_space<vmem>>, vector<8x1xf32>
    %c0_6 = arith.constant 0 : index
    %c0_7 = arith.constant 0 : index
    %5 = vector.load %arg4[%c0_6, %c0_7] : memref<8x1xf32, #tpu.memory_space<vmem>>, vector<8x1xf32>
    %c0_8 = arith.constant 0 : index
    %c0_9 = arith.constant 0 : index
    %6 = vector.load %arg5[%c0_8, %c0_9] : memref<8x1xf32, #tpu.memory_space<vmem>>, vector<8x1xf32>
    %cst_10 = arith.constant dense<0.000000e+00> : vector<8xf32>
    %7 = vector.multi_reduction <add>, %3, %cst_10 [1] : vector<8x256xf32> to vector<8xf32>
    %8 = vector.shape_cast %7 : vector<8xf32> to vector<8x1xf32>
    %cst_11 = arith.constant 3.906250e-03 : f32
    %9 = vector.broadcast %cst_11 : f32 to vector<8x1xf32>
    %10 = arith.mulf %8, %9 : vector<8x1xf32>
    %11 = arith.mulf %3, %3 : vector<8x256xf32>
    %cst_12 = arith.constant dense<0.000000e+00> : vector<8xf32>
    %12 = vector.multi_reduction <add>, %11, %cst_12 [1] : vector<8x256xf32> to vector<8xf32>
    %13 = vector.shape_cast %12 : vector<8xf32> to vector<8x1xf32>
    %cst_13 = arith.constant 3.906250e-03 : f32
    %14 = vector.broadcast %cst_13 : f32 to vector<8x1xf32>
    %15 = arith.mulf %13, %14 : vector<8x1xf32>
    %16 = arith.mulf %10, %10 : vector<8x1xf32>
    %17 = arith.subf %15, %16 : vector<8x1xf32>
    %cst_14 = arith.constant 0.000000e+00 : f32
    %18 = vector.broadcast %cst_14 : f32 to vector<8x1xf32>
    %19 = arith.maximumf %17, %18 : vector<8x1xf32>
    %20 = vector.broadcast %10 : vector<8x1xf32> to vector<8x256xf32>
    %21 = arith.subf %3, %20 : vector<8x256xf32>
    %cst_15 = arith.constant 9.99999974E-6 : f32
    %22 = vector.broadcast %cst_15 : f32 to vector<8x1xf32>
    %23 = arith.addf %19, %22 : vector<8x1xf32>
    %24 = math.rsqrt %23 : vector<8x1xf32>
    %25 = vector.broadcast %24 : vector<8x1xf32> to vector<8x256xf32>
    %26 = arith.mulf %21, %25 : vector<8x256xf32>
    %27 = vector.broadcast %4 : vector<8x1xf32> to vector<8x256xf32>
    %28 = arith.mulf %26, %27 : vector<8x256xf32>
    %29 = vector.broadcast %5 : vector<8x1xf32> to vector<8x256xf32>
    %30 = arith.addf %28, %29 : vector<8x256xf32>
    %cst_16 = arith.constant 0.000000e+00 : f32
    %31 = vector.broadcast %cst_16 : f32 to vector<8x256xf32>
    %32 = arith.cmpf oge, %30, %31 : vector<8x256xf32>
    %33 = vector.broadcast %6 : vector<8x1xf32> to vector<8x256xf32>
    %34 = arith.mulf %33, %30 : vector<8x256xf32>
    %35 = arith.select %32, %30, %34 : vector<8x256xi1>, vector<8x256xf32>
    %36 = arith.truncf %35 : vector<8x256xf32> to vector<8x256xbf16>
    %c0_17 = arith.constant 0 : index
    %c0_18 = arith.constant 0 : index
    %c0_19 = arith.constant 0 : index
    %37 = vector.load %arg6[%c0_17, %c0_18, %c0_19] : memref<1x8x256xbf16, #tpu.memory_space<vmem>>, vector<1x8x256xbf16>
    %38 = vector.shape_cast %37 : vector<1x8x256xbf16> to vector<8x256xbf16>
    %39 = vector.shape_cast %36 : vector<8x256xbf16> to vector<1x8x256xbf16>
    tpu.vector_store %arg6[%c0_17, %c0_18, %c0_19], %39 {strides = array<i32>} : memref<1x8x256xbf16, #tpu.memory_space<vmem>>, vector<1x8x256xbf16>,
    return
  }
  func.func @transform_0(%arg0: i32) -> (i32, i32, i32) {
    %c0_i32 = arith.constant 0 : i32
    %c0_i32_0 = arith.constant 0 : i32
    %c0_i32_1 = arith.constant 0 : i32
    return %arg0, %c0_i32, %c0_i32_0 : i32, i32, i32
  }
  func.func @transform_1(%arg0: i32) -> (i32, i32) {
    %c0_i32 = arith.constant 0 : i32
    %c0_i32_0 = arith.constant 0 : i32
    %c0_i32_1 = arith.constant 0 : i32
    return %c0_i32, %c0_i32_0 : i32, i32
  }
  func.func @transform_2(%arg0: i32) -> (i32, i32) {
    %c0_i32 = arith.constant 0 : i32
    %c0_i32_0 = arith.constant 0 : i32
    %c0_i32_1 = arith.constant 0 : i32
    return %c0_i32, %c0_i32_0 : i32, i32
  }
  func.func @transform_3(%arg0: i32) -> (i32, i32) {
    %c0_i32 = arith.constant 0 : i32
    %c0_i32_0 = arith.constant 0 : i32
    %c0_i32_1 = arith.constant 0 : i32
    return %c0_i32, %c0_i32_0 : i32, i32
  }
  func.func @transform_4(%arg0: i32) -> (i32, i32) {
    %c0_i32 = arith.constant 0 : i32
    %c0_i32_0 = arith.constant 0 : i32
    %c0_i32_1 = arith.constant 0 : i32
    return %c0_i32, %c0_i32_0 : i32, i32
  }
  func.func @transform_5(%arg0: i32) -> (i32, i32, i32) {
    %c0_i32 = arith.constant 0 : i32
    %c0_i32_0 = arith.constant 0 : i32
    %c0_i32_1 = arith.constant 0 : i32
    return %arg0, %c0_i32, %c0_i32_0 : i32, i32, i32
  }
}

module attributes {stable_mosaic.version = 11 : i64} {
  func.func @_conv_block_kernel(%arg0: i32, %arg1: memref<1x128x64xbf16, #tpu.memory_space<vmem>>, %arg2: memref<16x128xbf16, #tpu.memory_space<vmem>>, %arg3: memref<16x1xf32, #tpu.memory_space<vmem>>, %arg4: memref<16x1xf32, #tpu.memory_space<vmem>>, %arg5: memref<16x1xf32, #tpu.memory_space<vmem>>, %arg6: memref<1x16x64xbf16, #tpu.memory_space<vmem>>) attributes {dimension_semantics = [#tpu.dimension_semantics<parallel>], iteration_bounds = array<i64: 2>, scalar_prefetch = 0 : i64, scratch_operands = 0 : i64, tpu.core_type = #tpu.core_type<tc>, window_params = [{transform_indices = @transform_0, window_bounds = array<i64: 1, 128, 64>}, {pipeline_mode = #tpu.pipeline_mode<synchronous>, transform_indices = @transform_1, window_bounds = array<i64: 16, 128>}, {pipeline_mode = #tpu.pipeline_mode<synchronous>, transform_indices = @transform_2, window_bounds = array<i64: 16, 1>}, {pipeline_mode = #tpu.pipeline_mode<synchronous>, transform_indices = @transform_3, window_bounds = array<i64: 16, 1>}, {pipeline_mode = #tpu.pipeline_mode<synchronous>, transform_indices = @transform_4, window_bounds = array<i64: 16, 1>}, {transform_indices = @transform_5, window_bounds = array<i64: 1, 16, 64>}]} {
    %c0 = arith.constant 0 : index
    %c0_0 = arith.constant 0 : index
    %0 = vector.load %arg2[%c0, %c0_0] : memref<16x128xbf16, #tpu.memory_space<vmem>>, vector<16x128xbf16>
    %c0_1 = arith.constant 0 : index
    %c0_2 = arith.constant 0 : index
    %c0_3 = arith.constant 0 : index
    %1 = vector.load %arg1[%c0_1, %c0_2, %c0_3] : memref<1x128x64xbf16, #tpu.memory_space<vmem>>, vector<1x128x64xbf16>
    %2 = vector.shape_cast %1 : vector<1x128x64xbf16> to vector<128x64xbf16>
    %cst = arith.constant dense<0.000000e+00> : vector<16x64xf32>
    %3 = tpu.matmul %0, %2, %cst {dimension_numbers = #tpu.dot_dimension_numbers<[1], [0], [0], [1], [0, 0, 1, 1], [], []>} : vector<16x128xbf16>, vector<128x64xbf16>, vector<16x64xf32> -> vector<16x64xf32>
    %c0_4 = arith.constant 0 : index
    %c0_5 = arith.constant 0 : index
    %4 = vector.load %arg3[%c0_4, %c0_5] : memref<16x1xf32, #tpu.memory_space<vmem>>, vector<16x1xf32>
    %c0_6 = arith.constant 0 : index
    %c0_7 = arith.constant 0 : index
    %5 = vector.load %arg4[%c0_6, %c0_7] : memref<16x1xf32, #tpu.memory_space<vmem>>, vector<16x1xf32>
    %c0_8 = arith.constant 0 : index
    %c0_9 = arith.constant 0 : index
    %6 = vector.load %arg5[%c0_8, %c0_9] : memref<16x1xf32, #tpu.memory_space<vmem>>, vector<16x1xf32>
    %cst_10 = arith.constant dense<0.000000e+00> : vector<16xf32>
    %7 = vector.multi_reduction <add>, %3, %cst_10 [1] : vector<16x64xf32> to vector<16xf32>
    %8 = vector.shape_cast %7 : vector<16xf32> to vector<16x1xf32>
    %cst_11 = arith.constant 1.562500e-02 : f32
    %9 = vector.broadcast %cst_11 : f32 to vector<16x1xf32>
    %10 = arith.mulf %8, %9 : vector<16x1xf32>
    %11 = arith.mulf %3, %3 : vector<16x64xf32>
    %cst_12 = arith.constant dense<0.000000e+00> : vector<16xf32>
    %12 = vector.multi_reduction <add>, %11, %cst_12 [1] : vector<16x64xf32> to vector<16xf32>
    %13 = vector.shape_cast %12 : vector<16xf32> to vector<16x1xf32>
    %cst_13 = arith.constant 1.562500e-02 : f32
    %14 = vector.broadcast %cst_13 : f32 to vector<16x1xf32>
    %15 = arith.mulf %13, %14 : vector<16x1xf32>
    %16 = arith.mulf %10, %10 : vector<16x1xf32>
    %17 = arith.subf %15, %16 : vector<16x1xf32>
    %cst_14 = arith.constant 0.000000e+00 : f32
    %18 = vector.broadcast %cst_14 : f32 to vector<16x1xf32>
    %19 = arith.maximumf %17, %18 : vector<16x1xf32>
    %20 = vector.broadcast %10 : vector<16x1xf32> to vector<16x64xf32>
    %21 = arith.subf %3, %20 : vector<16x64xf32>
    %cst_15 = arith.constant 9.99999974E-6 : f32
    %22 = vector.broadcast %cst_15 : f32 to vector<16x1xf32>
    %23 = arith.addf %19, %22 : vector<16x1xf32>
    %24 = math.rsqrt %23 : vector<16x1xf32>
    %25 = vector.broadcast %24 : vector<16x1xf32> to vector<16x64xf32>
    %26 = arith.mulf %21, %25 : vector<16x64xf32>
    %27 = vector.broadcast %4 : vector<16x1xf32> to vector<16x64xf32>
    %28 = arith.mulf %26, %27 : vector<16x64xf32>
    %29 = vector.broadcast %5 : vector<16x1xf32> to vector<16x64xf32>
    %30 = arith.addf %28, %29 : vector<16x64xf32>
    %cst_16 = arith.constant 0.000000e+00 : f32
    %31 = vector.broadcast %cst_16 : f32 to vector<16x64xf32>
    %32 = arith.cmpf oge, %30, %31 : vector<16x64xf32>
    %33 = vector.broadcast %6 : vector<16x1xf32> to vector<16x64xf32>
    %34 = arith.mulf %33, %30 : vector<16x64xf32>
    %35 = arith.select %32, %30, %34 : vector<16x64xi1>, vector<16x64xf32>
    %36 = arith.truncf %35 : vector<16x64xf32> to vector<16x64xbf16>
    %c0_17 = arith.constant 0 : index
    %c0_18 = arith.constant 0 : index
    %c0_19 = arith.constant 0 : index
    %37 = vector.load %arg6[%c0_17, %c0_18, %c0_19] : memref<1x16x64xbf16, #tpu.memory_space<vmem>>, vector<1x16x64xbf16>
    %38 = vector.shape_cast %37 : vector<1x16x64xbf16> to vector<16x64xbf16>
    %39 = vector.shape_cast %36 : vector<16x64xbf16> to vector<1x16x64xbf16>
    tpu.vector_store %arg6[%c0_17, %c0_18, %c0_19], %39 {strides = array<i32>} : memref<1x16x64xbf16, #tpu.memory_space<vmem>>, vector<1x16x64xbf16>,
    return
  }
  func.func @transform_0(%arg0: i32) -> (i32, i32, i32) {
    %c0_i32 = arith.constant 0 : i32
    %c0_i32_0 = arith.constant 0 : i32
    %c0_i32_1 = arith.constant 0 : i32
    return %arg0, %c0_i32, %c0_i32_0 : i32, i32, i32
  }
  func.func @transform_1(%arg0: i32) -> (i32, i32) {
    %c0_i32 = arith.constant 0 : i32
    %c0_i32_0 = arith.constant 0 : i32
    %c0_i32_1 = arith.constant 0 : i32
    return %c0_i32, %c0_i32_0 : i32, i32
  }
  func.func @transform_2(%arg0: i32) -> (i32, i32) {
    %c0_i32 = arith.constant 0 : i32
    %c0_i32_0 = arith.constant 0 : i32
    %c0_i32_1 = arith.constant 0 : i32
    return %c0_i32, %c0_i32_0 : i32, i32
  }
  func.func @transform_3(%arg0: i32) -> (i32, i32) {
    %c0_i32 = arith.constant 0 : i32
    %c0_i32_0 = arith.constant 0 : i32
    %c0_i32_1 = arith.constant 0 : i32
    return %c0_i32, %c0_i32_0 : i32, i32
  }
  func.func @transform_4(%arg0: i32) -> (i32, i32) {
    %c0_i32 = arith.constant 0 : i32
    %c0_i32_0 = arith.constant 0 : i32
    %c0_i32_1 = arith.constant 0 : i32
    return %c0_i32, %c0_i32_0 : i32, i32
  }
  func.func @transform_5(%arg0: i32) -> (i32, i32, i32) {
    %c0_i32 = arith.constant 0 : i32
    %c0_i32_0 = arith.constant 0 : i32
    %c0_i32_1 = arith.constant 0 : i32
    return %arg0, %c0_i32, %c0_i32_0 : i32, i32, i32
  }
}

module attributes {stable_mosaic.version = 11 : i64} {
  func.func @_conv_block_kernel(%arg0: i32, %arg1: memref<1x256x16xbf16, #tpu.memory_space<vmem>>, %arg2: memref<32x256xbf16, #tpu.memory_space<vmem>>, %arg3: memref<32x1xf32, #tpu.memory_space<vmem>>, %arg4: memref<32x1xf32, #tpu.memory_space<vmem>>, %arg5: memref<32x1xf32, #tpu.memory_space<vmem>>, %arg6: memref<1x32x16xbf16, #tpu.memory_space<vmem>>) attributes {dimension_semantics = [#tpu.dimension_semantics<parallel>], iteration_bounds = array<i64: 2>, scalar_prefetch = 0 : i64, scratch_operands = 0 : i64, tpu.core_type = #tpu.core_type<tc>, window_params = [{transform_indices = @transform_0, window_bounds = array<i64: 1, 256, 16>}, {pipeline_mode = #tpu.pipeline_mode<synchronous>, transform_indices = @transform_1, window_bounds = array<i64: 32, 256>}, {pipeline_mode = #tpu.pipeline_mode<synchronous>, transform_indices = @transform_2, window_bounds = array<i64: 32, 1>}, {pipeline_mode = #tpu.pipeline_mode<synchronous>, transform_indices = @transform_3, window_bounds = array<i64: 32, 1>}, {pipeline_mode = #tpu.pipeline_mode<synchronous>, transform_indices = @transform_4, window_bounds = array<i64: 32, 1>}, {transform_indices = @transform_5, window_bounds = array<i64: 1, 32, 16>}]} {
    %c0 = arith.constant 0 : index
    %c0_0 = arith.constant 0 : index
    %0 = vector.load %arg2[%c0, %c0_0] : memref<32x256xbf16, #tpu.memory_space<vmem>>, vector<32x256xbf16>
    %c0_1 = arith.constant 0 : index
    %c0_2 = arith.constant 0 : index
    %c0_3 = arith.constant 0 : index
    %1 = vector.load %arg1[%c0_1, %c0_2, %c0_3] : memref<1x256x16xbf16, #tpu.memory_space<vmem>>, vector<1x256x16xbf16>
    %2 = vector.shape_cast %1 : vector<1x256x16xbf16> to vector<256x16xbf16>
    %cst = arith.constant dense<0.000000e+00> : vector<32x16xf32>
    %3 = tpu.matmul %0, %2, %cst {dimension_numbers = #tpu.dot_dimension_numbers<[1], [0], [0], [1], [0, 0, 1, 1], [], []>} : vector<32x256xbf16>, vector<256x16xbf16>, vector<32x16xf32> -> vector<32x16xf32>
    %c0_4 = arith.constant 0 : index
    %c0_5 = arith.constant 0 : index
    %4 = vector.load %arg3[%c0_4, %c0_5] : memref<32x1xf32, #tpu.memory_space<vmem>>, vector<32x1xf32>
    %c0_6 = arith.constant 0 : index
    %c0_7 = arith.constant 0 : index
    %5 = vector.load %arg4[%c0_6, %c0_7] : memref<32x1xf32, #tpu.memory_space<vmem>>, vector<32x1xf32>
    %c0_8 = arith.constant 0 : index
    %c0_9 = arith.constant 0 : index
    %6 = vector.load %arg5[%c0_8, %c0_9] : memref<32x1xf32, #tpu.memory_space<vmem>>, vector<32x1xf32>
    %cst_10 = arith.constant dense<0.000000e+00> : vector<32xf32>
    %7 = vector.multi_reduction <add>, %3, %cst_10 [1] : vector<32x16xf32> to vector<32xf32>
    %8 = vector.shape_cast %7 : vector<32xf32> to vector<32x1xf32>
    %cst_11 = arith.constant 6.250000e-02 : f32
    %9 = vector.broadcast %cst_11 : f32 to vector<32x1xf32>
    %10 = arith.mulf %8, %9 : vector<32x1xf32>
    %11 = arith.mulf %3, %3 : vector<32x16xf32>
    %cst_12 = arith.constant dense<0.000000e+00> : vector<32xf32>
    %12 = vector.multi_reduction <add>, %11, %cst_12 [1] : vector<32x16xf32> to vector<32xf32>
    %13 = vector.shape_cast %12 : vector<32xf32> to vector<32x1xf32>
    %cst_13 = arith.constant 6.250000e-02 : f32
    %14 = vector.broadcast %cst_13 : f32 to vector<32x1xf32>
    %15 = arith.mulf %13, %14 : vector<32x1xf32>
    %16 = arith.mulf %10, %10 : vector<32x1xf32>
    %17 = arith.subf %15, %16 : vector<32x1xf32>
    %cst_14 = arith.constant 0.000000e+00 : f32
    %18 = vector.broadcast %cst_14 : f32 to vector<32x1xf32>
    %19 = arith.maximumf %17, %18 : vector<32x1xf32>
    %20 = vector.broadcast %10 : vector<32x1xf32> to vector<32x16xf32>
    %21 = arith.subf %3, %20 : vector<32x16xf32>
    %cst_15 = arith.constant 9.99999974E-6 : f32
    %22 = vector.broadcast %cst_15 : f32 to vector<32x1xf32>
    %23 = arith.addf %19, %22 : vector<32x1xf32>
    %24 = math.rsqrt %23 : vector<32x1xf32>
    %25 = vector.broadcast %24 : vector<32x1xf32> to vector<32x16xf32>
    %26 = arith.mulf %21, %25 : vector<32x16xf32>
    %27 = vector.broadcast %4 : vector<32x1xf32> to vector<32x16xf32>
    %28 = arith.mulf %26, %27 : vector<32x16xf32>
    %29 = vector.broadcast %5 : vector<32x1xf32> to vector<32x16xf32>
    %30 = arith.addf %28, %29 : vector<32x16xf32>
    %cst_16 = arith.constant 0.000000e+00 : f32
    %31 = vector.broadcast %cst_16 : f32 to vector<32x16xf32>
    %32 = arith.cmpf oge, %30, %31 : vector<32x16xf32>
    %33 = vector.broadcast %6 : vector<32x1xf32> to vector<32x16xf32>
    %34 = arith.mulf %33, %30 : vector<32x16xf32>
    %35 = arith.select %32, %30, %34 : vector<32x16xi1>, vector<32x16xf32>
    %36 = arith.truncf %35 : vector<32x16xf32> to vector<32x16xbf16>
    %c0_17 = arith.constant 0 : index
    %c0_18 = arith.constant 0 : index
    %c0_19 = arith.constant 0 : index
    %37 = vector.load %arg6[%c0_17, %c0_18, %c0_19] : memref<1x32x16xbf16, #tpu.memory_space<vmem>>, vector<1x32x16xbf16>
    %38 = vector.shape_cast %37 : vector<1x32x16xbf16> to vector<32x16xbf16>
    %39 = vector.shape_cast %36 : vector<32x16xbf16> to vector<1x32x16xbf16>
    tpu.vector_store %arg6[%c0_17, %c0_18, %c0_19], %39 {strides = array<i32>} : memref<1x32x16xbf16, #tpu.memory_space<vmem>>, vector<1x32x16xbf16>,
    return
  }
  func.func @transform_0(%arg0: i32) -> (i32, i32, i32) {
    %c0_i32 = arith.constant 0 : i32
    %c0_i32_0 = arith.constant 0 : i32
    %c0_i32_1 = arith.constant 0 : i32
    return %arg0, %c0_i32, %c0_i32_0 : i32, i32, i32
  }
  func.func @transform_1(%arg0: i32) -> (i32, i32) {
    %c0_i32 = arith.constant 0 : i32
    %c0_i32_0 = arith.constant 0 : i32
    %c0_i32_1 = arith.constant 0 : i32
    return %c0_i32, %c0_i32_0 : i32, i32
  }
  func.func @transform_2(%arg0: i32) -> (i32, i32) {
    %c0_i32 = arith.constant 0 : i32
    %c0_i32_0 = arith.constant 0 : i32
    %c0_i32_1 = arith.constant 0 : i32
    return %c0_i32, %c0_i32_0 : i32, i32
  }
  func.func @transform_3(%arg0: i32) -> (i32, i32) {
    %c0_i32 = arith.constant 0 : i32
    %c0_i32_0 = arith.constant 0 : i32
    %c0_i32_1 = arith.constant 0 : i32
    return %c0_i32, %c0_i32_0 : i32, i32
  }
  func.func @transform_4(%arg0: i32) -> (i32, i32) {
    %c0_i32 = arith.constant 0 : i32
    %c0_i32_0 = arith.constant 0 : i32
    %c0_i32_1 = arith.constant 0 : i32
    return %c0_i32, %c0_i32_0 : i32, i32
  }
  func.func @transform_5(%arg0: i32) -> (i32, i32, i32) {
    %c0_i32 = arith.constant 0 : i32
    %c0_i32_0 = arith.constant 0 : i32
    %c0_i32_1 = arith.constant 0 : i32
    return %arg0, %c0_i32, %c0_i32_0 : i32, i32, i32
  }
}

module attributes {stable_mosaic.version = 11 : i64} {
  func.func @_final_block_kernel(%arg0: i32, %arg1: memref<1x512x4xbf16, #tpu.memory_space<vmem>>, %arg2: memref<64x512xbf16, #tpu.memory_space<vmem>>, %arg3: memref<64x1xf32, #tpu.memory_space<vmem>>, %arg4: memref<64x1xf32, #tpu.memory_space<vmem>>, %arg5: memref<64x1xf32, #tpu.memory_space<vmem>>, %arg6: memref<64x32xf32, #tpu.memory_space<vmem>>, %arg7: memref<1x32xf32, #tpu.memory_space<vmem>>, %arg8: memref<1x32xf32, #tpu.memory_space<vmem>>, %arg9: memref<1x32xf32, #tpu.memory_space<vmem>>, %arg10: memref<1x1xf32, #tpu.memory_space<vmem>>, %arg11: memref<1x1xf32, #tpu.memory_space<vmem>>, %arg12: memref<1x1x1xf32, #tpu.memory_space<vmem>>) attributes {dimension_semantics = [#tpu.dimension_semantics<parallel>], iteration_bounds = array<i64: 2>, scalar_prefetch = 0 : i64, scratch_operands = 0 : i64, tpu.core_type = #tpu.core_type<tc>, window_params = [{transform_indices = @transform_0, window_bounds = array<i64: 1, 512, 4>}, {pipeline_mode = #tpu.pipeline_mode<synchronous>, transform_indices = @transform_1, window_bounds = array<i64: 64, 512>}, {pipeline_mode = #tpu.pipeline_mode<synchronous>, transform_indices = @transform_2, window_bounds = array<i64: 64, 1>}, {pipeline_mode = #tpu.pipeline_mode<synchronous>, transform_indices = @transform_3, window_bounds = array<i64: 64, 1>}, {pipeline_mode = #tpu.pipeline_mode<synchronous>, transform_indices = @transform_4, window_bounds = array<i64: 64, 1>}, {pipeline_mode = #tpu.pipeline_mode<synchronous>, transform_indices = @transform_5, window_bounds = array<i64: 64, 32>}, {pipeline_mode = #tpu.pipeline_mode<synchronous>, transform_indices = @transform_6, window_bounds = array<i64: 1, 32>}, {pipeline_mode = #tpu.pipeline_mode<synchronous>, transform_indices = @transform_7, window_bounds = array<i64: 1, 32>}, {pipeline_mode = #tpu.pipeline_mode<synchronous>, transform_indices = @transform_8, window_bounds = array<i64: 1, 32>}, {pipeline_mode = #tpu.pipeline_mode<synchronous>, transform_indices = @transform_9, window_bounds = array<i64: 1, 1>}, {pipeline_mode = #tpu.pipeline_mode<synchronous>, transform_indices = @transform_10, window_bounds = array<i64: 1, 1>}, {transform_indices = @transform_11, window_bounds = array<i64: 1, 1, 1>}]} {
    %c0 = arith.constant 0 : index
    %c0_0 = arith.constant 0 : index
    %0 = vector.load %arg2[%c0, %c0_0] : memref<64x512xbf16, #tpu.memory_space<vmem>>, vector<64x512xbf16>
    %c0_1 = arith.constant 0 : index
    %c0_2 = arith.constant 0 : index
    %c0_3 = arith.constant 0 : index
    %1 = vector.load %arg1[%c0_1, %c0_2, %c0_3] : memref<1x512x4xbf16, #tpu.memory_space<vmem>>, vector<1x512x4xbf16>
    %2 = vector.shape_cast %1 : vector<1x512x4xbf16> to vector<512x4xbf16>
    %cst = arith.constant dense<0.000000e+00> : vector<64x4xf32>
    %3 = tpu.matmul %0, %2, %cst {dimension_numbers = #tpu.dot_dimension_numbers<[1], [0], [0], [1], [0, 0, 1, 1], [], []>} : vector<64x512xbf16>, vector<512x4xbf16>, vector<64x4xf32> -> vector<64x4xf32>
    %c0_4 = arith.constant 0 : index
    %c0_5 = arith.constant 0 : index
    %4 = vector.load %arg3[%c0_4, %c0_5] : memref<64x1xf32, #tpu.memory_space<vmem>>, vector<64x1xf32>
    %c0_6 = arith.constant 0 : index
    %c0_7 = arith.constant 0 : index
    %5 = vector.load %arg4[%c0_6, %c0_7] : memref<64x1xf32, #tpu.memory_space<vmem>>, vector<64x1xf32>
    %c0_8 = arith.constant 0 : index
    %c0_9 = arith.constant 0 : index
    %6 = vector.load %arg5[%c0_8, %c0_9] : memref<64x1xf32, #tpu.memory_space<vmem>>, vector<64x1xf32>
    %cst_10 = arith.constant dense<0.000000e+00> : vector<64xf32>
    %7 = vector.multi_reduction <add>, %3, %cst_10 [1] : vector<64x4xf32> to vector<64xf32>
    %8 = vector.shape_cast %7 : vector<64xf32> to vector<64x1xf32>
    %cst_11 = arith.constant 2.500000e-01 : f32
    %9 = vector.broadcast %cst_11 : f32 to vector<64x1xf32>
    %10 = arith.mulf %8, %9 : vector<64x1xf32>
    %11 = arith.mulf %3, %3 : vector<64x4xf32>
    %cst_12 = arith.constant dense<0.000000e+00> : vector<64xf32>
    %12 = vector.multi_reduction <add>, %11, %cst_12 [1] : vector<64x4xf32> to vector<64xf32>
    %13 = vector.shape_cast %12 : vector<64xf32> to vector<64x1xf32>
    %cst_13 = arith.constant 2.500000e-01 : f32
    %14 = vector.broadcast %cst_13 : f32 to vector<64x1xf32>
    %15 = arith.mulf %13, %14 : vector<64x1xf32>
    %16 = arith.mulf %10, %10 : vector<64x1xf32>
    %17 = arith.subf %15, %16 : vector<64x1xf32>
    %cst_14 = arith.constant 0.000000e+00 : f32
    %18 = vector.broadcast %cst_14 : f32 to vector<64x1xf32>
    %19 = arith.maximumf %17, %18 : vector<64x1xf32>
    %20 = vector.broadcast %10 : vector<64x1xf32> to vector<64x4xf32>
    %21 = arith.subf %3, %20 : vector<64x4xf32>
    %cst_15 = arith.constant 9.99999974E-6 : f32
    %22 = vector.broadcast %cst_15 : f32 to vector<64x1xf32>
    %23 = arith.addf %19, %22 : vector<64x1xf32>
    %24 = math.rsqrt %23 : vector<64x1xf32>
    %25 = vector.broadcast %24 : vector<64x1xf32> to vector<64x4xf32>
    %26 = arith.mulf %21, %25 : vector<64x4xf32>
    %27 = vector.broadcast %4 : vector<64x1xf32> to vector<64x4xf32>
    %28 = arith.mulf %26, %27 : vector<64x4xf32>
    %29 = vector.broadcast %5 : vector<64x1xf32> to vector<64x4xf32>
    %30 = arith.addf %28, %29 : vector<64x4xf32>
    %cst_16 = arith.constant 0.000000e+00 : f32
    %31 = vector.broadcast %cst_16 : f32 to vector<64x4xf32>
    %32 = arith.cmpf oge, %30, %31 : vector<64x4xf32>
    %33 = vector.broadcast %6 : vector<64x1xf32> to vector<64x4xf32>
    %34 = arith.mulf %33, %30 : vector<64x4xf32>
    %35 = arith.select %32, %30, %34 : vector<64x4xi1>, vector<64x4xf32>
    %cst_17 = arith.constant dense<0xFF800000> : vector<64xf32>
    %36 = vector.multi_reduction <maximumf>, %35, %cst_17 [1] : vector<64x4xf32> to vector<64xf32>
    %37 = vector.shape_cast %36 : vector<64xf32> to vector<64x1xf32>
    %c0_18 = arith.constant 0 : index
    %c0_19 = arith.constant 0 : index
    %38 = vector.load %arg6[%c0_18, %c0_19] : memref<64x32xf32, #tpu.memory_space<vmem>>, vector<64x32xf32>
    %39 = vector.broadcast %37 : vector<64x1xf32> to vector<64x32xf32>
    %40 = arith.mulf %38, %39 : vector<64x32xf32>
    %cst_20 = arith.constant dense<0.000000e+00> : vector<32xf32>
    %41 = vector.multi_reduction <add>, %40, %cst_20 [0] : vector<64x32xf32> to vector<32xf32>
    %42 = vector.shape_cast %41 : vector<32xf32> to vector<1x32xf32>
    %c0_21 = arith.constant 0 : index
    %c0_22 = arith.constant 0 : index
    %43 = vector.load %arg7[%c0_21, %c0_22] : memref<1x32xf32, #tpu.memory_space<vmem>>, vector<1x32xf32>
    %44 = arith.addf %42, %43 : vector<1x32xf32>
    %cst_23 = arith.constant 0.000000e+00 : f32
    %45 = vector.broadcast %cst_23 : f32 to vector<1x32xf32>
    %46 = arith.cmpf oge, %44, %45 : vector<1x32xf32>
    %c0_24 = arith.constant 0 : index
    %c0_25 = arith.constant 0 : index
    %47 = vector.load %arg8[%c0_24, %c0_25] : memref<1x32xf32, #tpu.memory_space<vmem>>, vector<1x32xf32>
    %48 = arith.mulf %47, %44 : vector<1x32xf32>
    %49 = arith.select %46, %44, %48 : vector<1x32xi1>, vector<1x32xf32>
    %c0_26 = arith.constant 0 : index
    %c0_27 = arith.constant 0 : index
    %50 = vector.load %arg9[%c0_26, %c0_27] : memref<1x32xf32, #tpu.memory_space<vmem>>, vector<1x32xf32>
    %51 = arith.mulf %50, %49 : vector<1x32xf32>
    %cst_28 = arith.constant dense<0.000000e+00> : vector<1xf32>
    %52 = vector.multi_reduction <add>, %51, %cst_28 [1] : vector<1x32xf32> to vector<1xf32>
    %53 = vector.shape_cast %52 : vector<1xf32> to vector<1x1xf32>
    %c0_29 = arith.constant 0 : index
    %c0_30 = arith.constant 0 : index
    %54 = vector.load %arg10[%c0_29, %c0_30] : memref<1x1xf32, #tpu.memory_space<vmem>>, vector<1x1xf32>
    %55 = arith.addf %53, %54 : vector<1x1xf32>
    %c0_31 = arith.constant 0 : index
    %c0_32 = arith.constant 0 : index
    %56 = vector.load %arg11[%c0_31, %c0_32] : memref<1x1xf32, #tpu.memory_space<vmem>>, vector<1x1xf32>
    %57 = arith.mulf %56, %55 : vector<1x1xf32>
    %cst_33 = arith.constant 0.000000e+00 : f32
    %58 = vector.broadcast %cst_33 : f32 to vector<1x1xf32>
    %59 = arith.subf %58, %57 : vector<1x1xf32>
    %60 = math.exp %59 : vector<1x1xf32>
    %cst_34 = arith.constant 1.000000e+00 : f32
    %61 = vector.broadcast %cst_34 : f32 to vector<1x1xf32>
    %62 = arith.addf %61, %60 : vector<1x1xf32>
    %cst_35 = arith.constant 1.000000e+00 : f32
    %63 = vector.broadcast %cst_35 : f32 to vector<1x1xf32>
    %64 = arith.divf %63, %62 : vector<1x1xf32>
    %c0_36 = arith.constant 0 : index
    %c0_37 = arith.constant 0 : index
    %c0_38 = arith.constant 0 : index
    %65 = vector.load %arg12[%c0_36, %c0_37, %c0_38] : memref<1x1x1xf32, #tpu.memory_space<vmem>>, vector<1x1x1xf32>
    %66 = vector.shape_cast %65 : vector<1x1x1xf32> to vector<1x1xf32>
    %67 = vector.shape_cast %64 : vector<1x1xf32> to vector<1x1x1xf32>
    tpu.vector_store %arg12[%c0_36, %c0_37, %c0_38], %67 {strides = array<i32>} : memref<1x1x1xf32, #tpu.memory_space<vmem>>, vector<1x1x1xf32>,
    return
  }
  func.func @transform_0(%arg0: i32) -> (i32, i32, i32) {
    %c0_i32 = arith.constant 0 : i32
    %c0_i32_0 = arith.constant 0 : i32
    %c0_i32_1 = arith.constant 0 : i32
    return %arg0, %c0_i32, %c0_i32_0 : i32, i32, i32
  }
  func.func @transform_1(%arg0: i32) -> (i32, i32) {
    %c0_i32 = arith.constant 0 : i32
    %c0_i32_0 = arith.constant 0 : i32
    %c0_i32_1 = arith.constant 0 : i32
    return %c0_i32, %c0_i32_0 : i32, i32
  }
  func.func @transform_2(%arg0: i32) -> (i32, i32) {
    %c0_i32 = arith.constant 0 : i32
    %c0_i32_0 = arith.constant 0 : i32
    %c0_i32_1 = arith.constant 0 : i32
    return %c0_i32, %c0_i32_0 : i32, i32
  }
  func.func @transform_3(%arg0: i32) -> (i32, i32) {
    %c0_i32 = arith.constant 0 : i32
    %c0_i32_0 = arith.constant 0 : i32
    %c0_i32_1 = arith.constant 0 : i32
    return %c0_i32, %c0_i32_0 : i32, i32
  }
  func.func @transform_4(%arg0: i32) -> (i32, i32) {
    %c0_i32 = arith.constant 0 : i32
    %c0_i32_0 = arith.constant 0 : i32
    %c0_i32_1 = arith.constant 0 : i32
    return %c0_i32, %c0_i32_0 : i32, i32
  }
  func.func @transform_5(%arg0: i32) -> (i32, i32) {
    %c0_i32 = arith.constant 0 : i32
    %c0_i32_0 = arith.constant 0 : i32
    %c0_i32_1 = arith.constant 0 : i32
    return %c0_i32, %c0_i32_0 : i32, i32
  }
  func.func @transform_6(%arg0: i32) -> (i32, i32) {
    %c0_i32 = arith.constant 0 : i32
    %c0_i32_0 = arith.constant 0 : i32
    %c0_i32_1 = arith.constant 0 : i32
    return %c0_i32, %c0_i32_0 : i32, i32
  }
  func.func @transform_7(%arg0: i32) -> (i32, i32) {
    %c0_i32 = arith.constant 0 : i32
    %c0_i32_0 = arith.constant 0 : i32
    %c0_i32_1 = arith.constant 0 : i32
    return %c0_i32, %c0_i32_0 : i32, i32
  }
  func.func @transform_8(%arg0: i32) -> (i32, i32) {
    %c0_i32 = arith.constant 0 : i32
    %c0_i32_0 = arith.constant 0 : i32
    %c0_i32_1 = arith.constant 0 : i32
    return %c0_i32, %c0_i32_0 : i32, i32
  }
  func.func @transform_9(%arg0: i32) -> (i32, i32) {
    %c0_i32 = arith.constant 0 : i32
    %c0_i32_0 = arith.constant 0 : i32
    %c0_i32_1 = arith.constant 0 : i32
    return %c0_i32, %c0_i32_0 : i32, i32
  }
  func.func @transform_10(%arg0: i32) -> (i32, i32) {
    %c0_i32 = arith.constant 0 : i32
    %c0_i32_0 = arith.constant 0 : i32
    %c0_i32_1 = arith.constant 0 : i32
    return %c0_i32, %c0_i32_0 : i32, i32
  }
  func.func @transform_11(%arg0: i32) -> (i32, i32, i32) {
    %c0_i32 = arith.constant 0 : i32
    %c0_i32_0 = arith.constant 0 : i32
    %c0_i32_1 = arith.constant 0 : i32
    return %arg0, %c0_i32, %c0_i32_0 : i32, i32, i32
  }
}

</mosaic_0001>

<llo_original>
// kernel: discriminator_forward.4
$region0: #{discriminator_forward.4}
  #allocation0 [shape = 'u32[]', space=smem, size = 0x4, offset = 0x4, fixed_abs, tag = 'smem constant byte address 0x4 - core index']
  #allocation1 [shape = 'u32[144,128]{1,0:T(1,128)}', space=vmem, size = 0x12000, scoped, tag = 'internal scratch']
  %s0 = inlined_call_operand.vmem [shape: bf16[2,32,256], index: 0, kind: input, shape index: {}]
  %s1 = inlined_call_operand.vmem [shape: bf16[8,32], index: 1, kind: input, shape index: {}]
  %s2 = inlined_call_operand.vmem [shape: f32[8,1], index: 2, kind: input, shape index: {}]
  %s3 = inlined_call_operand.vmem [shape: f32[8,1], index: 3, kind: input, shape index: {}]
  %s4 = inlined_call_operand.vmem [shape: f32[8,1], index: 4, kind: input, shape index: {}]
  %s5 = inlined_call_operand.vmem [shape: bf16[2,8,256], index: 5, kind: output, shape index: {}]
  %s6 = sld [smem:[#allocation0]]
  $region53: #{discriminator_forward.4} parent=0
    _
  %s8 = ssub.s32 1, %s6
  %s9 = scalar_select 0, %s8, %s6
  loop: start=0, step=1, limit=4
  $region2: #{discriminator_forward.4} parent=0 // loop_pre_header
    _
  $region3: #{discriminator_forward.4} parent=0 // loop_header
    %s11 = sphi 0, %s15
    %p12 = scmp.ge.s32.totalorder %s11, 4
    %s21 = sphi 0, %s23
    %s24 = sphi 0, %s21
    %s25 = sphi 0, %s24
    %s41 = sphi 0, %s25
    %s45 = sphi 0, %s45
    %s47 = sphi 0, %s45
    %s48 = sphi 0, %s47
    %s62 = sphi 0, %s48
    %s66 = sphi 0, %s66
    %s68 = sphi 0, %s66
    %s69 = sphi 0, %s68
    %s83 = sphi 0, %s69
    %s87 = sphi 0, %s87
    %s89 = sphi 0, %s87
    %s90 = sphi 0, %s89
    %s104 = sphi 0, %s90
    %s108 = sphi 0, %s108
    %s110 = sphi 0, %s108
    %s111 = sphi 0, %s110
    %s125 = sphi 0, %s111
    %s131 = sphi 0, %s133
    %s134 = sphi 0, %s131
    %s135 = sphi 0, %s134
    %s151 = sphi 0, %s135
  $region4: #{discriminator_forward.4} parent=0 // loop_header_branch
    %14 = sbr.rel (%p12) target = $region8
  $region5: #{discriminator_forward.4} parent=0 // loop_body
    %s16 = ssub.s32 %s11, 1
    %s17 = ssub.s32 %s11, 2
    %s18 = sadd.s32 %s11, 1
    %s19 = ssub.s32 %s11, %s18
    %p20 = scmp.eq.s32.totalorder %s19, 0
    %s22 = sadd.s32 %s21, 1
    %s23 = scalar_select %p20, %s21, %s22
    %p26 = pneg %p20
    %p27 = scmp.eq.s32.totalorder %s11, 1
    %p28 = por %p26, %p27
    %p29 = scmp.ne.s32.totalorder %s21, %s24
    %p30 = scmp.eq.s32.totalorder %s11, 0
    %p31 = por %p29, %p30
    %p32 = scmp.ne.s32.totalorder %s21, %s24
    %p33 = scmp.eq.s32.totalorder %s16, 1
    %p34 = por %p32, %p33
    %p35 = scmp.ne.s32.totalorder %s24, %s25
    %p36 = scmp.eq.s32.totalorder %s16, 0
    %p37 = por %p35, %p36
    %p38 = scmp.ne.s32.totalorder %s24, %s25
    %p39 = scmp.eq.s32.totalorder %s17, 1
    %p40 = por %p38, %p39
    %p42 = scmp.ne.s32.totalorder %s25, %s41
    %p43 = scmp.eq.s32.totalorder %s17, 0
    %p44 = por %p42, %p43
    %s46 = sadd.s32 %s45, 1
    %p49 = scmp.eq.s32.totalorder %s11, 1
    %p50 = scmp.ne.s32.totalorder %s45, %s47
    %p51 = scmp.eq.s32.totalorder %s11, 0
    %p52 = por %p50, %p51
    %p53 = scmp.ne.s32.totalorder %s45, %s47
    %p54 = scmp.eq.s32.totalorder %s16, 1
    %p55 = por %p53, %p54
    %p56 = scmp.ne.s32.totalorder %s47, %s48
    %p57 = scmp.eq.s32.totalorder %s16, 0
    %p58 = por %p56, %p57
    %p59 = scmp.ne.s32.totalorder %s47, %s48
    %p60 = scmp.eq.s32.totalorder %s17, 1
    %p61 = por %p59, %p60
    %p63 = scmp.ne.s32.totalorder %s48, %s62
    %p64 = scmp.eq.s32.totalorder %s17, 0
    %p65 = por %p63, %p64
    %s67 = sadd.s32 %s66, 1
    %p70 = scmp.eq.s32.totalorder %s11, 1
    %p71 = scmp.ne.s32.totalorder %s66, %s68
    %p72 = scmp.eq.s32.totalorder %s11, 0
    %p73 = por %p71, %p72
    %p74 = scmp.ne.s32.totalorder %s66, %s68
    %p75 = scmp.eq.s32.totalorder %s16, 1
    %p76 = por %p74, %p75
    %p77 = scmp.ne.s32.totalorder %s68, %s69
    %p78 = scmp.eq.s32.totalorder %s16, 0
    %p79 = por %p77, %p78
    %p80 = scmp.ne.s32.totalorder %s68, %s69
    %p81 = scmp.eq.s32.totalorder %s17, 1
    %p82 = por %p80, %p81
    %p84 = scmp.ne.s32.totalorder %s69, %s83
    %p85 = scmp.eq.s32.totalorder %s17, 0
    %p86 = por %p84, %p85
    %s88 = sadd.s32 %s87, 1
    %p91 = scmp.eq.s32.totalorder %s11, 1
    %p92 = scmp.ne.s32.totalorder %s87, %s89
    %p93 = scmp.eq.s32.totalorder %s11, 0
    %p94 = por %p92, %p93
    %p95 = scmp.ne.s32.totalorder %s87, %s89
    %p96 = scmp.eq.s32.totalorder %s16, 1
    %p97 = por %p95, %p96
    %p98 = scmp.ne.s32.totalorder %s89, %s90
    %p99 = scmp.eq.s32.totalorder %s16, 0
    %p100 = por %p98, %p99
    %p101 = scmp.ne.s32.totalorder %s89, %s90
    %p102 = scmp.eq.s32.totalorder %s17, 1
    %p103 = por %p101, %p102
    %p105 = scmp.ne.s32.totalorder %s90, %s104
    %p106 = scmp.eq.s32.totalorder %s17, 0
    %p107 = por %p105, %p106
    %s109 = sadd.s32 %s108, 1
    %p112 = scmp.eq.s32.totalorder %s11, 1
    %p113 = scmp.ne.s32.totalorder %s108, %s110
    %p114 = scmp.eq.s32.totalorder %s11, 0
    %p115 = por %p113, %p114
    %p116 = scmp.ne.s32.totalorder %s108, %s110
    %p117 = scmp.eq.s32.totalorder %s16, 1
    %p118 = por %p116, %p117
    %p119 = scmp.ne.s32.totalorder %s110, %s111
    %p120 = scmp.eq.s32.totalorder %s16, 0
    %p121 = por %p119, %p120
    %p122 = scmp.ne.s32.totalorder %s110, %s111
    %p123 = scmp.eq.s32.totalorder %s17, 1
    %p124 = por %p122, %p123
    %p126 = scmp.ne.s32.totalorder %s111, %s125
    %p127 = scmp.eq.s32.totalorder %s17, 0
    %p128 = por %p126, %p127
    %s129 = ssub.s32 %s11, %s18
    %p130 = scmp.eq.s32.totalorder %s129, 0
    %s132 = sadd.s32 %s131, 1
    %s133 = scalar_select %p130, %s131, %s132
    %p136 = pneg %p130
    %p137 = scmp.eq.s32.totalorder %s11, 1
    %p138 = por %p136, %p137
    %p139 = scmp.ne.s32.totalorder %s131, %s134
    %p140 = scmp.eq.s32.totalorder %s11, 0
    %p141 = por %p139, %p140
    %p142 = scmp.ne.s32.totalorder %s131, %s134
    %p143 = scmp.eq.s32.totalorder %s16, 1
    %p144 = por %p142, %p143
    %p145 = scmp.ne.s32.totalorder %s134, %s135
    %p146 = scmp.eq.s32.totalorder %s16, 0
    %p147 = por %p145, %p146
    %p148 = scmp.ne.s32.totalorder %s134, %s135
    %p149 = scmp.eq.s32.totalorder %s17, 1
    %p150 = por %p148, %p149
    %p152 = scmp.ne.s32.totalorder %s135, %s151
    %p153 = scmp.eq.s32.totalorder %s17, 0
    %p154 = por %p152, %p153
    %p155 = scmp.le.s32.totalorder 1, %s11
    %p156 = scmp.lt.s32.totalorder %s11, 3
    %p157 = pnand %p155, %p156
    %p158 = pneg %p157
    // Predicated region
    $region9: #{discriminator_forward.4} parent=5 // pred_check
      _
    $region10: #{discriminator_forward.4} parent=5 // pred_check_branch
      %160 = sbr.rel (%p157) target = $region12
    $region11: #{discriminator_forward.4} parent=5 // pred_region
      %s161 = ssub.s32 %s11, 1
      // Predicated region
      $region13: #{discriminator_forward.4} parent=11 // pred_check
        %p162 = pneg %p58
      $region14: #{discriminator_forward.4} parent=11 // pred_check_branch
        %164 = sbr.rel (%p162) target = $region16
      $region15: #{discriminator_forward.4} parent=11 // pred_region
        _
      $region16: #{discriminator_forward.4} parent=11 // pred_fallthru
        _
      // Predicated region
      $region17: #{discriminator_forward.4} parent=11 // pred_check
        %p165 = pneg %p79
      $region18: #{discriminator_forward.4} parent=11 // pred_check_branch
        %167 = sbr.rel (%p165) target = $region20
      $region19: #{discriminator_forward.4} parent=11 // pred_region
        _
      $region20: #{discriminator_forward.4} parent=11 // pred_fallthru
        _
      // Predicated region
      $region21: #{discriminator_forward.4} parent=11 // pred_check
        %p168 = pneg %p100
      $region22: #{discriminator_forward.4} parent=11 // pred_check_branch
        %170 = sbr.rel (%p168) target = $region24
      $region23: #{discriminator_forward.4} parent=11 // pred_region
        _
      $region24: #{discriminator_forward.4} parent=11 // pred_fallthru
        _
      // Predicated region
      $region25: #{discriminator_forward.4} parent=11 // pred_check
        %p171 = pneg %p121
      $region26: #{discriminator_forward.4} parent=11 // pred_check_branch
        %173 = sbr.rel (%p171) target = $region28
      $region27: #{discriminator_forward.4} parent=11 // pred_region
        _
      $region28: #{discriminator_forward.4} parent=11 // pred_fallthru
        _
    $region12: #{discriminator_forward.4} parent=5 // pred_fallthru
      _
    %p174 = scmp.lt.s32.totalorder %s11, 2
    // Predicated region
    $region29: #{discriminator_forward.4} parent=5 // pred_check
      %p175 = pneg %p174
    $region30: #{discriminator_forward.4} parent=5 // pred_check_branch
      %177 = sbr.rel (%p175) target = $region32
    $region31: #{discriminator_forward.4} parent=5 // pred_region
      // Predicated region
      $region33: #{discriminator_forward.4} parent=31 // pred_check
        %p178 = pneg %p31
      $region34: #{discriminator_forward.4} parent=31 // pred_check_branch
        %180 = sbr.rel (%p178) target = $region36
      $region35: #{discriminator_forward.4} parent=31 // pred_region
        %p181 = scmp.lt.s32.totalorder %s11, 1
        %s182 = scalar_select %p181, %s11, 1
        %s183 = smul.addr %s182, 8
        %s184 = smul.addr %s183, 4
        %s185 = scalar_lea.vmem %s0, %s184
      $region36: #{discriminator_forward.4} parent=31 // pred_fallthru
        _
    $region32: #{discriminator_forward.4} parent=5 // pred_fallthru
      _
    %p186 = scmp.le.s32.totalorder 1, %s11
    %p187 = scmp.lt.s32.totalorder %s11, 3
    %p188 = pnand %p186, %p187
    %p189 = pneg %p188
    // Predicated region
    $region37: #{discriminator_forward.4} parent=5 // pred_check
      _
    $region38: #{discriminator_forward.4} parent=5 // pred_check_branch
      %191 = sbr.rel (%p188) target = $region40
    $region39: #{discriminator_forward.4} parent=5 // pred_region
      %s192 = ssub.s32 %s11, 1
      %p193 = scmp.lt.s32.totalorder %s16, 1
      %s194 = scalar_select %p193, %s16, 1
      %s195 = smul.addr %s194, 8
      %s196 = smul.addr %s195, 4
      %s197 = scalar_lea.vmem %s0, %s196
      %p198 = pneg %p37
      %p199 = pneg %p34
      %p200 = pneg %p58
      %p201 = pneg %p55
      %p202 = pneg %p79
      %p203 = pneg %p76
      %p204 = pneg %p100
      %p205 = pneg %p97
      %p206 = pneg %p121
      %p207 = pneg %p118
      %p208 = pneg %p147
      %p209 = pneg %p144
      %p210 = scmp.lt.s32.totalorder %s16, 1
      %s211 = scalar_select %p210, %s16, 1
      %s212 = smul.addr %s211, 2
      %s213 = smul.addr %s212, 4
      %s214 = scalar_lea.vmem %s5, %s213
      %p215 = scmp.lt.s32.totalorder %s16, 1
      %s216 = scalar_select %p215, %s16, 1
      %s217 = smul.addr %s216, 8
      %s218 = smul.addr %s217, 4
      %s219 = scalar_lea.vmem %s0, %s218
      %p220 = scmp.lt.s32.totalorder %s16, 1
      %s221 = scalar_select %p220, %s16, 1
      %s222 = smul.addr %s221, 2
      %s223 = smul.addr %s222, 4
      %s224 = scalar_lea.vmem %s5, %s223
      %v226 = vld [vmem:[%s1] sm:$0xf]
      %v227 = vld [vmem:[%s219] sm:$0xff]
      %v228 = vld [vmem:[%s219 + $0x8] sm:$0xff]
      %v229 = vld [vmem:[%s219 + $0x10] sm:$0xff]
      %v230 = vld [vmem:[%s219 + $0x18] sm:$0xff]
      %v235 = vunpack.c.l.b16 %v227
      %v236 = vunpack.c.h.b16 %v227
      %v237 = vunpack.c.l.b16 %v228
      %v238 = vunpack.c.h.b16 %v228
      %v239 = vunpack.c.l.b16 %v229
      %v240 = vunpack.c.h.b16 %v229
      %v241 = vunpack.c.l.b16 %v230
      %v242 = vunpack.c.h.b16 %v230
      %v243 = vpack.c.b16 %v237, %v235
      %v244 = vpack.c.b16 %v238, %v236
      %v245 = vpack.c.b16 %v241, %v239
      %v246 = vpack.c.b16 %v242, %v240
      %vm251 = vcmask 261120
      %v253 = vsel %vm251, %v226, 0
      %255 = vmatprep.subr.bf16.mxu0 %v244
      %256 = vmatpush1.bf16.msra.mxu0 %v243
      %257 = vmatprep.subr.bf16.mxu0 %v246
      %258 = vmatpush1.bf16.msra.mxu0 %v245
      %259 = vmatprep.subr.bf16.mxu0 0
      %260 = vmatpush1.bf16.msra.mxu0 0
      %261 = vmatprep.subr.bf16.mxu0 0
      %262 = vmatpush1.bf16.msra.mxu0 0
      %263 = vmatprep.subr.bf16.mxu0 0
      %264 = vmatpush1.bf16.msra.mxu0 0
      %265 = vmatprep.subr.bf16.mxu0 0
      %266 = vmatpush1.bf16.msra.mxu0 0
      %267 = vmatprep.subr.bf16.mxu0 0
      %268 = vmatpush1.bf16.msra.mxu0 0
      %269 = vmatprep.subr.bf16.mxu0 0
      %270 = vmatpush1.bf16.msra.mxu0 0
      %271 = vmatprep.subr.bf16.mxu0 0
      %272 = vmatpush1.bf16.msra.mxu0 0
      %273 = vmatprep.subr.bf16.mxu0 0
      %274 = vmatpush1.bf16.msra.mxu0 0
      %275 = vmatprep.subr.bf16.mxu0 0
      %276 = vmatpush1.bf16.msra.mxu0 0
      %277 = vmatprep.subr.bf16.mxu0 0
      %278 = vmatpush1.bf16.msra.mxu0 0
      %279 = vmatprep.subr.bf16.mxu0 0
      %280 = vmatpush1.bf16.msra.mxu0 0
      %281 = vmatprep.subr.bf16.mxu0 0
      %282 = vmatpush1.bf16.msra.mxu0 0
      %283 = vmatprep.subr.bf16.mxu0 0
      %284 = vmatpush1.bf16.msra.mxu0 0
      %285 = vmatprep.subr.bf16.mxu0 0
      %286 = vmatpush1.bf16.msra.mxu0 0
      %287 = vmatprep.mubr.bf16.mxu0 0
      %288 = vmatmul.mubr.bf16.gmra.mrb[0].mxu0 %v253
      %v289 = vpop.f32.mrb[0].mxu0
      %v290 = vadd.f32 0.0, %v289
      %v291 = vpop.f32.mrb[0].mxu0
      %v292 = vadd.f32 0.0, %v291
      %v293 = vpop.f32.mrb[0].mxu0
      %v294 = vpop.f32.mrb[0].mxu0
      %295 = vdwg.mxu0
      %v296 = vld [vmem:[%s2] sm:$0xff]
      %v297 = vld [vmem:[%s3] sm:$0xff]
      %v298 = vld [vmem:[%s4] sm:$0xff]
      %v299 = vadd.f32 %v290, %v292
      %300 = vadd.xlane.f32.xlu0 %v299
      %v301 = vpop.xlane.xlu0 %300
      %v302 = vmul.f32 %v301, 0.00390625
      %v303 = vmul.f32 %v290, %v290
      %v304 = vmul.f32 %v292, %v292
      %v305 = vadd.f32 %v303, %v304
      %306 = vadd.xlane.f32.xlu0 %v305
      %v307 = vpop.xlane.xlu0 %306
      %v308 = vmul.f32 %v307, 0.00390625
      %v309 = vmul.f32 %v302, %v302
      %v310 = vsub.f32 %v308, %v309
      %v311 = vmax.f32 %v310, 0.0
      %v312 = vsub.f32 %v290, %v302
      %v313 = vsub.f32 %v292, %v302
      %v314 = vadd.f32 %v311, 1e-05
      %v315 = vrsqrt.pop %v314
      %v316 = vmul.f32 %v312, %v315
      %v317 = vmul.f32 %v313, %v315
      %319 = vset.pattern.permute.xlu0 0
      %320 = vperm.xlu0 %319, %v296
      %v321 = vpop.permute.xlu0 %320
      %v323 = vmul.f32 %v316, %v321
      %v324 = vmul.f32 %v317, %v321
      %326 = vset.pattern.permute.xlu0 0
      %327 = vperm.xlu0 %326, %v297
      %v328 = vpop.permute.xlu0 %327
      %v330 = vadd.f32 %v323, %v328
      %v331 = vadd.f32 %v324, %v328
      %vm332 = vcmp.ge.f32.partialorder %v330, 0.0
      %vm333 = vcmp.ge.f32.partialorder %v331, 0.0
      %335 = vset.pattern.permute.xlu0 0
      %336 = vperm.xlu0 %335, %v298
      %v337 = vpop.permute.xlu0 %336
      %v339 = vmul.f32 %v337, %v330
      %v340 = vmul.f32 %v337, %v331
      %v341 = vsel %vm332, %v330, %v339
      %v342 = vsel %vm333, %v331, %v340
      %v343 = vpack.c.bf16 %v341, %v341
      %v344 = vpack.c.bf16 %v342, %v342
      %v347 = vunpack.c.l.b16 %v343
      %v348 = vunpack.c.l.b16 %v344
      %v349 = vpack.c.b16 %v348, %v347
      %351 = vst [vmem:[%s224] sm:$0xff] %v349
      %p352 = scmp.lt.s32.totalorder %s16, 1
      %s353 = scalar_select %p352, %s16, 1
      %s354 = smul.addr %s353, 2
      %s355 = smul.addr %s354, 4
      %s356 = scalar_lea.vmem %s5, %s355
      // Predicated region
      $region41: #{discriminator_forward.4} parent=39 // pred_check
        %p357 = pneg %p144
      $region42: #{discriminator_forward.4} parent=39 // pred_check_branch
        %359 = sbr.rel (%p357) target = $region44
      $region43: #{discriminator_forward.4} parent=39 // pred_region
        _
      $region44: #{discriminator_forward.4} parent=39 // pred_fallthru
        _
    $region40: #{discriminator_forward.4} parent=5 // pred_fallthru
      _
    %p360 = scmp.le.s32.totalorder 2, %s11
    // Predicated region
    $region45: #{discriminator_forward.4} parent=5 // pred_check
      %p361 = pneg %p360
    $region46: #{discriminator_forward.4} parent=5 // pred_check_branch
      %363 = sbr.rel (%p361) target = $region48
    $region47: #{discriminator_forward.4} parent=5 // pred_region
      %s364 = ssub.s32 %s11, 2
      // Predicated region
      $region49: #{discriminator_forward.4} parent=47 // pred_check
        %p365 = pneg %p150
      $region50: #{discriminator_forward.4} parent=47 // pred_check_branch
        %367 = sbr.rel (%p365) target = $region52
      $region51: #{discriminator_forward.4} parent=47 // pred_region
        %p368 = scmp.lt.s32.totalorder %s17, 1
        %s369 = scalar_select %p368, %s17, 1
        %s370 = smul.addr %s369, 2
        %s371 = smul.addr %s370, 4
        %s372 = scalar_lea.vmem %s5, %s371
      $region52: #{discriminator_forward.4} parent=47 // pred_fallthru
        _
    $region48: #{discriminator_forward.4} parent=5 // pred_fallthru
      _
  $region6: #{discriminator_forward.4} parent=0 // loop_footer
    %s15 = sadd.s32 1, %s11
  $region7: #{discriminator_forward.4} parent=0 // loop_footer_branch
    %10 = sbr.rel target = $region3
  $region8: #{discriminator_forward.4} parent=0 // loop_exit
    _

// kernel: discriminator_forward.5
$region0: #{discriminator_forward.5}
  #allocation0 [shape = 'u32[]', space=smem, size = 0x4, offset = 0x4, fixed_abs, tag = 'smem constant byte address 0x4 - core index']
  #allocation1 [shape = 'u32[144,128]{1,0:T(1,128)}', space=vmem, size = 0x12000, scoped, tag = 'internal scratch']
  %s0 = inlined_call_operand.vmem [shape: bf16[2,128,64], index: 0, kind: input, shape index: {}]
  %s1 = inlined_call_operand.vmem [shape: bf16[16,128], index: 1, kind: input, shape index: {}]
  %s2 = inlined_call_operand.vmem [shape: f32[16,1], index: 2, kind: input, shape index: {}]
  %s3 = inlined_call_operand.vmem [shape: f32[16,1], index: 3, kind: input, shape index: {}]
  %s4 = inlined_call_operand.vmem [shape: f32[16,1], index: 4, kind: input, shape index: {}]
  %s5 = inlined_call_operand.vmem [shape: bf16[2,16,64], index: 5, kind: output, shape index: {}]
  %s6 = sld [smem:[#allocation0]]
  $region53: #{discriminator_forward.5} parent=0
    _
  %s8 = ssub.s32 1, %s6
  %s9 = scalar_select 0, %s8, %s6
  loop: start=0, step=1, limit=4
  $region2: #{discriminator_forward.5} parent=0 // loop_pre_header
    _
  $region3: #{discriminator_forward.5} parent=0 // loop_header
    %s11 = sphi 0, %s15
    %p12 = scmp.ge.s32.totalorder %s11, 4
    %s21 = sphi 0, %s23
    %s24 = sphi 0, %s21
    %s25 = sphi 0, %s24
    %s41 = sphi 0, %s25
    %s45 = sphi 0, %s45
    %s47 = sphi 0, %s45
    %s48 = sphi 0, %s47
    %s62 = sphi 0, %s48
    %s66 = sphi 0, %s66
    %s68 = sphi 0, %s66
    %s69 = sphi 0, %s68
    %s83 = sphi 0, %s69
    %s87 = sphi 0, %s87
    %s89 = sphi 0, %s87
    %s90 = sphi 0, %s89
    %s104 = sphi 0, %s90
    %s108 = sphi 0, %s108
    %s110 = sphi 0, %s108
    %s111 = sphi 0, %s110
    %s125 = sphi 0, %s111
    %s131 = sphi 0, %s133
    %s134 = sphi 0, %s131
    %s135 = sphi 0, %s134
    %s151 = sphi 0, %s135
  $region4: #{discriminator_forward.5} parent=0 // loop_header_branch
    %14 = sbr.rel (%p12) target = $region8
  $region5: #{discriminator_forward.5} parent=0 // loop_body
    %s16 = ssub.s32 %s11, 1
    %s17 = ssub.s32 %s11, 2
    %s18 = sadd.s32 %s11, 1
    %s19 = ssub.s32 %s11, %s18
    %p20 = scmp.eq.s32.totalorder %s19, 0
    %s22 = sadd.s32 %s21, 1
    %s23 = scalar_select %p20, %s21, %s22
    %p26 = pneg %p20
    %p27 = scmp.eq.s32.totalorder %s11, 1
    %p28 = por %p26, %p27
    %p29 = scmp.ne.s32.totalorder %s21, %s24
    %p30 = scmp.eq.s32.totalorder %s11, 0
    %p31 = por %p29, %p30
    %p32 = scmp.ne.s32.totalorder %s21, %s24
    %p33 = scmp.eq.s32.totalorder %s16, 1
    %p34 = por %p32, %p33
    %p35 = scmp.ne.s32.totalorder %s24, %s25
    %p36 = scmp.eq.s32.totalorder %s16, 0
    %p37 = por %p35, %p36
    %p38 = scmp.ne.s32.totalorder %s24, %s25
    %p39 = scmp.eq.s32.totalorder %s17, 1
    %p40 = por %p38, %p39
    %p42 = scmp.ne.s32.totalorder %s25, %s41
    %p43 = scmp.eq.s32.totalorder %s17, 0
    %p44 = por %p42, %p43
    %s46 = sadd.s32 %s45, 1
    %p49 = scmp.eq.s32.totalorder %s11, 1
    %p50 = scmp.ne.s32.totalorder %s45, %s47
    %p51 = scmp.eq.s32.totalorder %s11, 0
    %p52 = por %p50, %p51
    %p53 = scmp.ne.s32.totalorder %s45, %s47
    %p54 = scmp.eq.s32.totalorder %s16, 1
    %p55 = por %p53, %p54
    %p56 = scmp.ne.s32.totalorder %s47, %s48
    %p57 = scmp.eq.s32.totalorder %s16, 0
    %p58 = por %p56, %p57
    %p59 = scmp.ne.s32.totalorder %s47, %s48
    %p60 = scmp.eq.s32.totalorder %s17, 1
    %p61 = por %p59, %p60
    %p63 = scmp.ne.s32.totalorder %s48, %s62
    %p64 = scmp.eq.s32.totalorder %s17, 0
    %p65 = por %p63, %p64
    %s67 = sadd.s32 %s66, 1
    %p70 = scmp.eq.s32.totalorder %s11, 1
    %p71 = scmp.ne.s32.totalorder %s66, %s68
    %p72 = scmp.eq.s32.totalorder %s11, 0
    %p73 = por %p71, %p72
    %p74 = scmp.ne.s32.totalorder %s66, %s68
    %p75 = scmp.eq.s32.totalorder %s16, 1
    %p76 = por %p74, %p75
    %p77 = scmp.ne.s32.totalorder %s68, %s69
    %p78 = scmp.eq.s32.totalorder %s16, 0
    %p79 = por %p77, %p78
    %p80 = scmp.ne.s32.totalorder %s68, %s69
    %p81 = scmp.eq.s32.totalorder %s17, 1
    %p82 = por %p80, %p81
    %p84 = scmp.ne.s32.totalorder %s69, %s83
    %p85 = scmp.eq.s32.totalorder %s17, 0
    %p86 = por %p84, %p85
    %s88 = sadd.s32 %s87, 1
    %p91 = scmp.eq.s32.totalorder %s11, 1
    %p92 = scmp.ne.s32.totalorder %s87, %s89
    %p93 = scmp.eq.s32.totalorder %s11, 0
    %p94 = por %p92, %p93
    %p95 = scmp.ne.s32.totalorder %s87, %s89
    %p96 = scmp.eq.s32.totalorder %s16, 1
    %p97 = por %p95, %p96
    %p98 = scmp.ne.s32.totalorder %s89, %s90
    %p99 = scmp.eq.s32.totalorder %s16, 0
    %p100 = por %p98, %p99
    %p101 = scmp.ne.s32.totalorder %s89, %s90
    %p102 = scmp.eq.s32.totalorder %s17, 1
    %p103 = por %p101, %p102
    %p105 = scmp.ne.s32.totalorder %s90, %s104
    %p106 = scmp.eq.s32.totalorder %s17, 0
    %p107 = por %p105, %p106
    %s109 = sadd.s32 %s108, 1
    %p112 = scmp.eq.s32.totalorder %s11, 1
    %p113 = scmp.ne.s32.totalorder %s108, %s110
    %p114 = scmp.eq.s32.totalorder %s11, 0
    %p115 = por %p113, %p114
    %p116 = scmp.ne.s32.totalorder %s108, %s110
    %p117 = scmp.eq.s32.totalorder %s16, 1
    %p118 = por %p116, %p117
    %p119 = scmp.ne.s32.totalorder %s110, %s111
    %p120 = scmp.eq.s32.totalorder %s16, 0
    %p121 = por %p119, %p120
    %p122 = scmp.ne.s32.totalorder %s110, %s111
    %p123 = scmp.eq.s32.totalorder %s17, 1
    %p124 = por %p122, %p123
    %p126 = scmp.ne.s32.totalorder %s111, %s125
    %p127 = scmp.eq.s32.totalorder %s17, 0
    %p128 = por %p126, %p127
    %s129 = ssub.s32 %s11, %s18
    %p130 = scmp.eq.s32.totalorder %s129, 0
    %s132 = sadd.s32 %s131, 1
    %s133 = scalar_select %p130, %s131, %s132
    %p136 = pneg %p130
    %p137 = scmp.eq.s32.totalorder %s11, 1
    %p138 = por %p136, %p137
    %p139 = scmp.ne.s32.totalorder %s131, %s134
    %p140 = scmp.eq.s32.totalorder %s11, 0
    %p141 = por %p139, %p140
    %p142 = scmp.ne.s32.totalorder %s131, %s134
    %p143 = scmp.eq.s32.totalorder %s16, 1
    %p144 = por %p142, %p143
    %p145 = scmp.ne.s32.totalorder %s134, %s135
    %p146 = scmp.eq.s32.totalorder %s16, 0
    %p147 = por %p145, %p146
    %p148 = scmp.ne.s32.totalorder %s134, %s135
    %p149 = scmp.eq.s32.totalorder %s17, 1
    %p150 = por %p148, %p149
    %p152 = scmp.ne.s32.totalorder %s135, %s151
    %p153 = scmp.eq.s32.totalorder %s17, 0
    %p154 = por %p152, %p153
    %p155 = scmp.le.s32.totalorder 1, %s11
    %p156 = scmp.lt.s32.totalorder %s11, 3
    %p157 = pnand %p155, %p156
    %p158 = pneg %p157
    // Predicated region
    $region9: #{discriminator_forward.5} parent=5 // pred_check
      _
    $region10: #{discriminator_forward.5} parent=5 // pred_check_branch
      %160 = sbr.rel (%p157) target = $region12
    $region11: #{discriminator_forward.5} parent=5 // pred_region
      %s161 = ssub.s32 %s11, 1
      // Predicated region
      $region13: #{discriminator_forward.5} parent=11 // pred_check
        %p162 = pneg %p58
      $region14: #{discriminator_forward.5} parent=11 // pred_check_branch
        %164 = sbr.rel (%p162) target = $region16
      $region15: #{discriminator_forward.5} parent=11 // pred_region
        _
      $region16: #{discriminator_forward.5} parent=11 // pred_fallthru
        _
      // Predicated region
      $region17: #{discriminator_forward.5} parent=11 // pred_check
        %p165 = pneg %p79
      $region18: #{discriminator_forward.5} parent=11 // pred_check_branch
        %167 = sbr.rel (%p165) target = $region20
      $region19: #{discriminator_forward.5} parent=11 // pred_region
        _
      $region20: #{discriminator_forward.5} parent=11 // pred_fallthru
        _
      // Predicated region
      $region21: #{discriminator_forward.5} parent=11 // pred_check
        %p168 = pneg %p100
      $region22: #{discriminator_forward.5} parent=11 // pred_check_branch
        %170 = sbr.rel (%p168) target = $region24
      $region23: #{discriminator_forward.5} parent=11 // pred_region
        _
      $region24: #{discriminator_forward.5} parent=11 // pred_fallthru
        _
      // Predicated region
      $region25: #{discriminator_forward.5} parent=11 // pred_check
        %p171 = pneg %p121
      $region26: #{discriminator_forward.5} parent=11 // pred_check_branch
        %173 = sbr.rel (%p171) target = $region28
      $region27: #{discriminator_forward.5} parent=11 // pred_region
        _
      $region28: #{discriminator_forward.5} parent=11 // pred_fallthru
        _
    $region12: #{discriminator_forward.5} parent=5 // pred_fallthru
      _
    %p174 = scmp.lt.s32.totalorder %s11, 2
    // Predicated region
    $region29: #{discriminator_forward.5} parent=5 // pred_check
      %p175 = pneg %p174
    $region30: #{discriminator_forward.5} parent=5 // pred_check_branch
      %177 = sbr.rel (%p175) target = $region32
    $region31: #{discriminator_forward.5} parent=5 // pred_region
      // Predicated region
      $region33: #{discriminator_forward.5} parent=31 // pred_check
        %p178 = pneg %p31
      $region34: #{discriminator_forward.5} parent=31 // pred_check_branch
        %180 = sbr.rel (%p178) target = $region36
      $region35: #{discriminator_forward.5} parent=31 // pred_region
        %p181 = scmp.lt.s32.totalorder %s11, 1
        %s182 = scalar_select %p181, %s11, 1
        %s183 = smul.addr %s182, 16
        %s184 = smul.addr %s183, 4
        %s185 = scalar_lea.vmem %s0, %s184
      $region36: #{discriminator_forward.5} parent=31 // pred_fallthru
        _
    $region32: #{discriminator_forward.5} parent=5 // pred_fallthru
      _
    %p186 = scmp.le.s32.totalorder 1, %s11
    %p187 = scmp.lt.s32.totalorder %s11, 3
    %p188 = pnand %p186, %p187
    %p189 = pneg %p188
    // Predicated region
    $region37: #{discriminator_forward.5} parent=5 // pred_check
      _
    $region38: #{discriminator_forward.5} parent=5 // pred_check_branch
      %191 = sbr.rel (%p188) target = $region40
    $region39: #{discriminator_forward.5} parent=5 // pred_region
      %s192 = ssub.s32 %s11, 1
      %p193 = scmp.lt.s32.totalorder %s16, 1
      %s194 = scalar_select %p193, %s16, 1
      %s195 = smul.addr %s194, 16
      %s196 = smul.addr %s195, 4
      %s197 = scalar_lea.vmem %s0, %s196
      %p198 = pneg %p37
      %p199 = pneg %p34
      %p200 = pneg %p58
      %p201 = pneg %p55
      %p202 = pneg %p79
      %p203 = pneg %p76
      %p204 = pneg %p100
      %p205 = pneg %p97
      %p206 = pneg %p121
      %p207 = pneg %p118
      %p208 = pneg %p147
      %p209 = pneg %p144
      %p210 = scmp.lt.s32.totalorder %s16, 1
      %s211 = scalar_select %p210, %s16, 1
      %s212 = smul.addr %s211, 2
      %s213 = smul.addr %s212, 4
      %s214 = scalar_lea.vmem %s5, %s213
      %p215 = scmp.lt.s32.totalorder %s16, 1
      %s216 = scalar_select %p215, %s16, 1
      %s217 = smul.addr %s216, 16
      %s218 = smul.addr %s217, 4
      %s219 = scalar_lea.vmem %s0, %s218
      %p220 = scmp.lt.s32.totalorder %s16, 1
      %s221 = scalar_select %p220, %s16, 1
      %s222 = smul.addr %s221, 2
      %s223 = smul.addr %s222, 4
      %s224 = scalar_lea.vmem %s5, %s223
      %v226 = vld [vmem:[%s1] sm:$0xf]
      %v227 = vld [vmem:[%s1 + $0x4] sm:$0xf]
      %v228 = vld [vmem:[%s219] sm:$0xf]
      %v229 = vld [vmem:[%s219 + $0x4] sm:$0xf]
      %v230 = vld [vmem:[%s219 + $0x8] sm:$0xf]
      %v231 = vld [vmem:[%s219 + $0xc] sm:$0xf]
      %v232 = vld [vmem:[%s219 + $0x10] sm:$0xf]
      %v233 = vld [vmem:[%s219 + $0x14] sm:$0xf]
      %v234 = vld [vmem:[%s219 + $0x18] sm:$0xf]
      %v235 = vld [vmem:[%s219 + $0x1c] sm:$0xf]
      %v236 = vld [vmem:[%s219 + $0x20] sm:$0xf]
      %v237 = vld [vmem:[%s219 + $0x24] sm:$0xf]
      %v238 = vld [vmem:[%s219 + $0x28] sm:$0xf]
      %v239 = vld [vmem:[%s219 + $0x2c] sm:$0xf]
      %v240 = vld [vmem:[%s219 + $0x30] sm:$0xf]
      %v241 = vld [vmem:[%s219 + $0x34] sm:$0xf]
      %v242 = vld [vmem:[%s219 + $0x38] sm:$0xf]
      %v243 = vld [vmem:[%s219 + $0x3c] sm:$0xf]
      %v246 = vunpack.c.l.b16 %v226
      %v247 = vunpack.c.l.b16 %v227
      %v248 = vpack.c.b16 %v247, %v246
      %v266 = vunpack.c.l.b16 %v228
      %v267 = vunpack.c.l.b16 %v229
      %v268 = vunpack.c.l.b16 %v230
      %v269 = vunpack.c.l.b16 %v231
      %v270 = vunpack.c.l.b16 %v232
      %v271 = vunpack.c.l.b16 %v233
      %v272 = vunpack.c.l.b16 %v234
      %v273 = vunpack.c.l.b16 %v235
      %v274 = vunpack.c.l.b16 %v236
      %v275 = vunpack.c.l.b16 %v237
      %v276 = vunpack.c.l.b16 %v238
      %v277 = vunpack.c.l.b16 %v239
      %v278 = vunpack.c.l.b16 %v240
      %v279 = vunpack.c.l.b16 %v241
      %v280 = vunpack.c.l.b16 %v242
      %v281 = vunpack.c.l.b16 %v243
      %v282 = vpack.c.b16 %v267, %v266
      %v283 = vpack.c.b16 %v269, %v268
      %v284 = vpack.c.b16 %v271, %v270
      %v285 = vpack.c.b16 %v273, %v272
      %v286 = vpack.c.b16 %v275, %v274
      %v287 = vpack.c.b16 %v277, %v276
      %v288 = vpack.c.b16 %v279, %v278
      %v289 = vpack.c.b16 %v281, %v280
      %298 = vmatprep.subr.bf16.mxu0 0
      %299 = vmatpush1.bf16.msra.mxu0 %v282
      %300 = vmatprep.subr.bf16.mxu0 0
      %301 = vmatpush1.bf16.msra.mxu0 %v283
      %302 = vmatprep.subr.bf16.mxu0 0
      %303 = vmatpush1.bf16.msra.mxu0 %v284
      %304 = vmatprep.subr.bf16.mxu0 0
      %305 = vmatpush1.bf16.msra.mxu0 %v285
      %306 = vmatprep.subr.bf16.mxu0 0
      %307 = vmatpush1.bf16.msra.mxu0 %v286
      %308 = vmatprep.subr.bf16.mxu0 0
      %309 = vmatpush1.bf16.msra.mxu0 %v287
      %310 = vmatprep.subr.bf16.mxu0 0
      %311 = vmatpush1.bf16.msra.mxu0 %v288
      %312 = vmatprep.subr.bf16.mxu0 0
      %313 = vmatpush1.bf16.msra.mxu0 %v289
      %314 = vmatprep.subr.bf16.mxu0 0
      %315 = vmatpush1.bf16.msra.mxu0 0
      %316 = vmatprep.subr.bf16.mxu0 0
      %317 = vmatpush1.bf16.msra.mxu0 0
      %318 = vmatprep.subr.bf16.mxu0 0
      %319 = vmatpush1.bf16.msra.mxu0 0
      %320 = vmatprep.subr.bf16.mxu0 0
      %321 = vmatpush1.bf16.msra.mxu0 0
      %322 = vmatprep.subr.bf16.mxu0 0
      %323 = vmatpush1.bf16.msra.mxu0 0
      %324 = vmatprep.subr.bf16.mxu0 0
      %325 = vmatpush1.bf16.msra.mxu0 0
      %326 = vmatprep.subr.bf16.mxu0 0
      %327 = vmatpush1.bf16.msra.mxu0 0
      %328 = vmatprep.subr.bf16.mxu0 0
      %329 = vmatpush1.bf16.msra.mxu0 0
      %330 = vmatprep.mubr.bf16.mxu0 0
      %331 = vmatmul.mubr.bf16.gmra.mrb[0].mxu0 %v248
      %v332 = vpop.f32.mrb[0].mxu0
      %v333 = vadd.f32 0.0, %v332
      %v334 = vpop.f32.mrb[0].mxu0
      %v335 = vpop.f32.mrb[0].mxu0
      %v336 = vadd.f32 0.0, %v335
      %v337 = vpop.f32.mrb[0].mxu0
      %338 = vdwg.mxu0
      %v339 = vld [vmem:[%s2] sm:$0xff]
      %v340 = vld [vmem:[%s2 + $0x8] sm:$0xff]
      %v341 = vld [vmem:[%s3] sm:$0xff]
      %v342 = vld [vmem:[%s3 + $0x8] sm:$0xff]
      %v343 = vld [vmem:[%s4] sm:$0xff]
      %v344 = vld [vmem:[%s4 + $0x8] sm:$0xff]
      %vm345 = vcmask 523264
      %v346 = vsel %vm345, %v333, 0.0
      %347 = vadd.xlane.f32.xlu0 %v346
      %v348 = vpop.xlane.xlu0 %347
      %v349 = vsel %vm345, %v336, 0.0
      %350 = vadd.xlane.f32.xlu0 %v349
      %v351 = vpop.xlane.xlu0 %350
      %v352 = vmul.f32 %v348, 0.015625
      %v353 = vmul.f32 %v351, 0.015625
      %v354 = vmul.f32 %v333, %v333
      %v355 = vmul.f32 %v336, %v336
      %v356 = vsel %vm345, %v354, 0.0
      %357 = vadd.xlane.f32.xlu0 %v356
      %v358 = vpop.xlane.xlu0 %357
      %v359 = vsel %vm345, %v355, 0.0
      %360 = vadd.xlane.f32.xlu0 %v359
      %v361 = vpop.xlane.xlu0 %360
      %v362 = vmul.f32 %v358, 0.015625
      %v363 = vmul.f32 %v361, 0.015625
      %v364 = vmul.f32 %v352, %v352
      %v365 = vmul.f32 %v353, %v353
      %v366 = vsub.f32 %v362, %v364
      %v367 = vsub.f32 %v363, %v365
      %v368 = vmax.f32 %v366, 0.0
      %v369 = vmax.f32 %v367, 0.0
      %v370 = vsub.f32 %v333, %v352
      %v371 = vsub.f32 %v336, %v353
      %v372 = vadd.f32 %v368, 1e-05
      %v373 = vadd.f32 %v369, 1e-05
      %v374 = vrsqrt.pop %v372
      %v375 = vrsqrt.pop %v373
      %v376 = vmul.f32 %v370, %v374
      %v377 = vmul.f32 %v371, %v375
      %379 = vset.pattern.permute.xlu0 0
      %380 = vperm.xlu0 %379, %v339
      %v381 = vpop.permute.xlu0 %380
      %384 = vset.pattern.permute.xlu0 0
      %385 = vperm.xlu0 %384, %v340
      %v386 = vpop.permute.xlu0 %385
      %v388 = vmul.f32 %v376, %v381
      %v389 = vmul.f32 %v377, %v386
      %391 = vset.pattern.permute.xlu0 0
      %392 = vperm.xlu0 %391, %v341
      %v393 = vpop.permute.xlu0 %392
      %396 = vset.pattern.permute.xlu0 0
      %397 = vperm.xlu0 %396, %v342
      %v398 = vpop.permute.xlu0 %397
      %v400 = vadd.f32 %v388, %v393
      %v401 = vadd.f32 %v389, %v398
      %vm402 = vcmp.ge.f32.partialorder %v400, 0.0
      %vm403 = vcmp.ge.f32.partialorder %v401, 0.0
      %405 = vset.pattern.permute.xlu0 0
      %406 = vperm.xlu0 %405, %v343
      %v407 = vpop.permute.xlu0 %406
      %410 = vset.pattern.permute.xlu0 0
      %411 = vperm.xlu0 %410, %v344
      %v412 = vpop.permute.xlu0 %411
      %v414 = vmul.f32 %v407, %v400
      %v415 = vmul.f32 %v412, %v401
      %v416 = vsel %vm402, %v400, %v414
      %v417 = vsel %vm403, %v401, %v415
      %v418 = vpack.c.bf16 %v417, %v416
      %v420 = vunpack.c.l.b16 %v418
      %v421 = vunpack.c.h.b16 %v418
      %v422 = vpack.c.b16 %v420, %v420
      %v423 = vpack.c.b16 %v421, %v421
      %vm426 = vcmask 519168
      %427 = vst.msk [vmem:[%s224] sm:$0xf] %vm426, %v422
      %428 = vst.msk [vmem:[%s224 + $0x4] sm:$0xf] %vm426, %v423
      %p429 = scmp.lt.s32.totalorder %s16, 1
      %s430 = scalar_select %p429, %s16, 1
      %s431 = smul.addr %s430, 2
      %s432 = smul.addr %s431, 4
      %s433 = scalar_lea.vmem %s5, %s432
      // Predicated region
      $region41: #{discriminator_forward.5} parent=39 // pred_check
        %p434 = pneg %p144
      $region42: #{discriminator_forward.5} parent=39 // pred_check_branch
        %436 = sbr.rel (%p434) target = $region44
      $region43: #{discriminator_forward.5} parent=39 // pred_region
        _
      $region44: #{discriminator_forward.5} parent=39 // pred_fallthru
        _
    $region40: #{discriminator_forward.5} parent=5 // pred_fallthru
      _
    %p437 = scmp.le.s32.totalorder 2, %s11
    // Predicated region
    $region45: #{discriminator_forward.5} parent=5 // pred_check
      %p438 = pneg %p437
    $region46: #{discriminator_forward.5} parent=5 // pred_check_branch
      %440 = sbr.rel (%p438) target = $region48
    $region47: #{discriminator_forward.5} parent=5 // pred_region
      %s441 = ssub.s32 %s11, 2
      // Predicated region
      $region49: #{discriminator_forward.5} parent=47 // pred_check
        %p442 = pneg %p150
      $region50: #{discriminator_forward.5} parent=47 // pred_check_branch
        %444 = sbr.rel (%p442) target = $region52
      $region51: #{discriminator_forward.5} parent=47 // pred_region
        %p445 = scmp.lt.s32.totalorder %s17, 1
        %s446 = scalar_select %p445, %s17, 1
        %s447 = smul.addr %s446, 2
        %s448 = smul.addr %s447, 4
        %s449 = scalar_lea.vmem %s5, %s448
      $region52: #{discriminator_forward.5} parent=47 // pred_fallthru
        _
    $region48: #{discriminator_forward.5} parent=5 // pred_fallthru
      _
  $region6: #{discriminator_forward.5} parent=0 // loop_footer
    %s15 = sadd.s32 1, %s11
  $region7: #{discriminator_forward.5} parent=0 // loop_footer_branch
    %10 = sbr.rel target = $region3
  $region8: #{discriminator_forward.5} parent=0 // loop_exit
    _

// kernel: discriminator_forward.6
$region0: #{discriminator_forward.6}
  #allocation0 [shape = 'u32[]', space=smem, size = 0x4, offset = 0x4, fixed_abs, tag = 'smem constant byte address 0x4 - core index']
  #allocation1 [shape = 'u32[144,128]{1,0:T(1,128)}', space=vmem, size = 0x12000, scoped, tag = 'internal scratch']
  %s0 = inlined_call_operand.vmem [shape: bf16[2,256,16], index: 0, kind: input, shape index: {}]
  %s1 = inlined_call_operand.vmem [shape: bf16[32,256], index: 1, kind: input, shape index: {}]
  %s2 = inlined_call_operand.vmem [shape: f32[32,1], index: 2, kind: input, shape index: {}]
  %s3 = inlined_call_operand.vmem [shape: f32[32,1], index: 3, kind: input, shape index: {}]
  %s4 = inlined_call_operand.vmem [shape: f32[32,1], index: 4, kind: input, shape index: {}]
  %s5 = inlined_call_operand.vmem [shape: bf16[2,32,16], index: 5, kind: output, shape index: {}]
  %s6 = sld [smem:[#allocation0]]
  $region53: #{discriminator_forward.6} parent=0
    _
  %s8 = ssub.s32 1, %s6
  %s9 = scalar_select 0, %s8, %s6
  loop: start=0, step=1, limit=4
  $region2: #{discriminator_forward.6} parent=0 // loop_pre_header
    _
  $region3: #{discriminator_forward.6} parent=0 // loop_header
    %s11 = sphi 0, %s15
    %p12 = scmp.ge.s32.totalorder %s11, 4
    %s21 = sphi 0, %s23
    %s24 = sphi 0, %s21
    %s25 = sphi 0, %s24
    %s41 = sphi 0, %s25
    %s45 = sphi 0, %s45
    %s47 = sphi 0, %s45
    %s48 = sphi 0, %s47
    %s62 = sphi 0, %s48
    %s66 = sphi 0, %s66
    %s68 = sphi 0, %s66
    %s69 = sphi 0, %s68
    %s83 = sphi 0, %s69
    %s87 = sphi 0, %s87
    %s89 = sphi 0, %s87
    %s90 = sphi 0, %s89
    %s104 = sphi 0, %s90
    %s108 = sphi 0, %s108
    %s110 = sphi 0, %s108
    %s111 = sphi 0, %s110
    %s125 = sphi 0, %s111
    %s131 = sphi 0, %s133
    %s134 = sphi 0, %s131
    %s135 = sphi 0, %s134
    %s151 = sphi 0, %s135
  $region4: #{discriminator_forward.6} parent=0 // loop_header_branch
    %14 = sbr.rel (%p12) target = $region8
  $region5: #{discriminator_forward.6} parent=0 // loop_body
    %s16 = ssub.s32 %s11, 1
    %s17 = ssub.s32 %s11, 2
    %s18 = sadd.s32 %s11, 1
    %s19 = ssub.s32 %s11, %s18
    %p20 = scmp.eq.s32.totalorder %s19, 0
    %s22 = sadd.s32 %s21, 1
    %s23 = scalar_select %p20, %s21, %s22
    %p26 = pneg %p20
    %p27 = scmp.eq.s32.totalorder %s11, 1
    %p28 = por %p26, %p27
    %p29 = scmp.ne.s32.totalorder %s21, %s24
    %p30 = scmp.eq.s32.totalorder %s11, 0
    %p31 = por %p29, %p30
    %p32 = scmp.ne.s32.totalorder %s21, %s24
    %p33 = scmp.eq.s32.totalorder %s16, 1
    %p34 = por %p32, %p33
    %p35 = scmp.ne.s32.totalorder %s24, %s25
    %p36 = scmp.eq.s32.totalorder %s16, 0
    %p37 = por %p35, %p36
    %p38 = scmp.ne.s32.totalorder %s24, %s25
    %p39 = scmp.eq.s32.totalorder %s17, 1
    %p40 = por %p38, %p39
    %p42 = scmp.ne.s32.totalorder %s25, %s41
    %p43 = scmp.eq.s32.totalorder %s17, 0
    %p44 = por %p42, %p43
    %s46 = sadd.s32 %s45, 1
    %p49 = scmp.eq.s32.totalorder %s11, 1
    %p50 = scmp.ne.s32.totalorder %s45, %s47
    %p51 = scmp.eq.s32.totalorder %s11, 0
    %p52 = por %p50, %p51
    %p53 = scmp.ne.s32.totalorder %s45, %s47
    %p54 = scmp.eq.s32.totalorder %s16, 1
    %p55 = por %p53, %p54
    %p56 = scmp.ne.s32.totalorder %s47, %s48
    %p57 = scmp.eq.s32.totalorder %s16, 0
    %p58 = por %p56, %p57
    %p59 = scmp.ne.s32.totalorder %s47, %s48
    %p60 = scmp.eq.s32.totalorder %s17, 1
    %p61 = por %p59, %p60
    %p63 = scmp.ne.s32.totalorder %s48, %s62
    %p64 = scmp.eq.s32.totalorder %s17, 0
    %p65 = por %p63, %p64
    %s67 = sadd.s32 %s66, 1
    %p70 = scmp.eq.s32.totalorder %s11, 1
    %p71 = scmp.ne.s32.totalorder %s66, %s68
    %p72 = scmp.eq.s32.totalorder %s11, 0
    %p73 = por %p71, %p72
    %p74 = scmp.ne.s32.totalorder %s66, %s68
    %p75 = scmp.eq.s32.totalorder %s16, 1
    %p76 = por %p74, %p75
    %p77 = scmp.ne.s32.totalorder %s68, %s69
    %p78 = scmp.eq.s32.totalorder %s16, 0
    %p79 = por %p77, %p78
    %p80 = scmp.ne.s32.totalorder %s68, %s69
    %p81 = scmp.eq.s32.totalorder %s17, 1
    %p82 = por %p80, %p81
    %p84 = scmp.ne.s32.totalorder %s69, %s83
    %p85 = scmp.eq.s32.totalorder %s17, 0
    %p86 = por %p84, %p85
    %s88 = sadd.s32 %s87, 1
    %p91 = scmp.eq.s32.totalorder %s11, 1
    %p92 = scmp.ne.s32.totalorder %s87, %s89
    %p93 = scmp.eq.s32.totalorder %s11, 0
    %p94 = por %p92, %p93
    %p95 = scmp.ne.s32.totalorder %s87, %s89
    %p96 = scmp.eq.s32.totalorder %s16, 1
    %p97 = por %p95, %p96
    %p98 = scmp.ne.s32.totalorder %s89, %s90
    %p99 = scmp.eq.s32.totalorder %s16, 0
    %p100 = por %p98, %p99
    %p101 = scmp.ne.s32.totalorder %s89, %s90
    %p102 = scmp.eq.s32.totalorder %s17, 1
    %p103 = por %p101, %p102
    %p105 = scmp.ne.s32.totalorder %s90, %s104
    %p106 = scmp.eq.s32.totalorder %s17, 0
    %p107 = por %p105, %p106
    %s109 = sadd.s32 %s108, 1
    %p112 = scmp.eq.s32.totalorder %s11, 1
    %p113 = scmp.ne.s32.totalorder %s108, %s110
    %p114 = scmp.eq.s32.totalorder %s11, 0
    %p115 = por %p113, %p114
    %p116 = scmp.ne.s32.totalorder %s108, %s110
    %p117 = scmp.eq.s32.totalorder %s16, 1
    %p118 = por %p116, %p117
    %p119 = scmp.ne.s32.totalorder %s110, %s111
    %p120 = scmp.eq.s32.totalorder %s16, 0
    %p121 = por %p119, %p120
    %p122 = scmp.ne.s32.totalorder %s110, %s111
    %p123 = scmp.eq.s32.totalorder %s17, 1
    %p124 = por %p122, %p123
    %p126 = scmp.ne.s32.totalorder %s111, %s125
    %p127 = scmp.eq.s32.totalorder %s17, 0
    %p128 = por %p126, %p127
    %s129 = ssub.s32 %s11, %s18
    %p130 = scmp.eq.s32.totalorder %s129, 0
    %s132 = sadd.s32 %s131, 1
    %s133 = scalar_select %p130, %s131, %s132
    %p136 = pneg %p130
    %p137 = scmp.eq.s32.totalorder %s11, 1
    %p138 = por %p136, %p137
    %p139 = scmp.ne.s32.totalorder %s131, %s134
    %p140 = scmp.eq.s32.totalorder %s11, 0
    %p141 = por %p139, %p140
    %p142 = scmp.ne.s32.totalorder %s131, %s134
    %p143 = scmp.eq.s32.totalorder %s16, 1
    %p144 = por %p142, %p143
    %p145 = scmp.ne.s32.totalorder %s134, %s135
    %p146 = scmp.eq.s32.totalorder %s16, 0
    %p147 = por %p145, %p146
    %p148 = scmp.ne.s32.totalorder %s134, %s135
    %p149 = scmp.eq.s32.totalorder %s17, 1
    %p150 = por %p148, %p149
    %p152 = scmp.ne.s32.totalorder %s135, %s151
    %p153 = scmp.eq.s32.totalorder %s17, 0
    %p154 = por %p152, %p153
    %p155 = scmp.le.s32.totalorder 1, %s11
    %p156 = scmp.lt.s32.totalorder %s11, 3
    %p157 = pnand %p155, %p156
    %p158 = pneg %p157
    // Predicated region
    $region9: #{discriminator_forward.6} parent=5 // pred_check
      _
    $region10: #{discriminator_forward.6} parent=5 // pred_check_branch
      %160 = sbr.rel (%p157) target = $region12
    $region11: #{discriminator_forward.6} parent=5 // pred_region
      %s161 = ssub.s32 %s11, 1
      // Predicated region
      $region13: #{discriminator_forward.6} parent=11 // pred_check
        %p162 = pneg %p58
      $region14: #{discriminator_forward.6} parent=11 // pred_check_branch
        %164 = sbr.rel (%p162) target = $region16
      $region15: #{discriminator_forward.6} parent=11 // pred_region
        _
      $region16: #{discriminator_forward.6} parent=11 // pred_fallthru
        _
      // Predicated region
      $region17: #{discriminator_forward.6} parent=11 // pred_check
        %p165 = pneg %p79
      $region18: #{discriminator_forward.6} parent=11 // pred_check_branch
        %167 = sbr.rel (%p165) target = $region20
      $region19: #{discriminator_forward.6} parent=11 // pred_region
        _
      $region20: #{discriminator_forward.6} parent=11 // pred_fallthru
        _
      // Predicated region
      $region21: #{discriminator_forward.6} parent=11 // pred_check
        %p168 = pneg %p100
      $region22: #{discriminator_forward.6} parent=11 // pred_check_branch
        %170 = sbr.rel (%p168) target = $region24
      $region23: #{discriminator_forward.6} parent=11 // pred_region
        _
      $region24: #{discriminator_forward.6} parent=11 // pred_fallthru
        _
      // Predicated region
      $region25: #{discriminator_forward.6} parent=11 // pred_check
        %p171 = pneg %p121
      $region26: #{discriminator_forward.6} parent=11 // pred_check_branch
        %173 = sbr.rel (%p171) target = $region28
      $region27: #{discriminator_forward.6} parent=11 // pred_region
        _
      $region28: #{discriminator_forward.6} parent=11 // pred_fallthru
        _
    $region12: #{discriminator_forward.6} parent=5 // pred_fallthru
      _
    %p174 = scmp.lt.s32.totalorder %s11, 2
    // Predicated region
    $region29: #{discriminator_forward.6} parent=5 // pred_check
      %p175 = pneg %p174
    $region30: #{discriminator_forward.6} parent=5 // pred_check_branch
      %177 = sbr.rel (%p175) target = $region32
    $region31: #{discriminator_forward.6} parent=5 // pred_region
      // Predicated region
      $region33: #{discriminator_forward.6} parent=31 // pred_check
        %p178 = pneg %p31
      $region34: #{discriminator_forward.6} parent=31 // pred_check_branch
        %180 = sbr.rel (%p178) target = $region36
      $region35: #{discriminator_forward.6} parent=31 // pred_region
        %p181 = scmp.lt.s32.totalorder %s11, 1
        %s182 = scalar_select %p181, %s11, 1
        %s183 = smul.addr %s182, 32
        %s184 = smul.addr %s183, 4
        %s185 = scalar_lea.vmem %s0, %s184
      $region36: #{discriminator_forward.6} parent=31 // pred_fallthru
        _
    $region32: #{discriminator_forward.6} parent=5 // pred_fallthru
      _
    %p186 = scmp.le.s32.totalorder 1, %s11
    %p187 = scmp.lt.s32.totalorder %s11, 3
    %p188 = pnand %p186, %p187
    %p189 = pneg %p188
    // Predicated region
    $region37: #{discriminator_forward.6} parent=5 // pred_check
      _
    $region38: #{discriminator_forward.6} parent=5 // pred_check_branch
      %191 = sbr.rel (%p188) target = $region40
    $region39: #{discriminator_forward.6} parent=5 // pred_region
      %s192 = ssub.s32 %s11, 1
      %p193 = scmp.lt.s32.totalorder %s16, 1
      %s194 = scalar_select %p193, %s16, 1
      %s195 = smul.addr %s194, 32
      %s196 = smul.addr %s195, 4
      %s197 = scalar_lea.vmem %s0, %s196
      %p198 = pneg %p37
      %p199 = pneg %p34
      %p200 = pneg %p58
      %p201 = pneg %p55
      %p202 = pneg %p79
      %p203 = pneg %p76
      %p204 = pneg %p100
      %p205 = pneg %p97
      %p206 = pneg %p121
      %p207 = pneg %p118
      %p208 = pneg %p147
      %p209 = pneg %p144
      %p210 = scmp.lt.s32.totalorder %s16, 1
      %s211 = scalar_select %p210, %s16, 1
      %s212 = smul.addr %s211, 4
      %s213 = smul.addr %s212, 4
      %s214 = scalar_lea.vmem %s5, %s213
      %p215 = scmp.lt.s32.totalorder %s16, 1
      %s216 = scalar_select %p215, %s16, 1
      %s217 = smul.addr %s216, 32
      %s218 = smul.addr %s217, 4
      %s219 = scalar_lea.vmem %s0, %s218
      %p220 = scmp.lt.s32.totalorder %s16, 1
      %s221 = scalar_select %p220, %s16, 1
      %s222 = smul.addr %s221, 4
      %s223 = smul.addr %s222, 4
      %s224 = scalar_lea.vmem %s5, %s223
      %v226 = vld [vmem:[%s1] sm:$0xff]
      %v227 = vld [vmem:[%s1 + $0x8] sm:$0xff]
      %v228 = vld [vmem:[%s1 + $0x10] sm:$0xff]
      %v229 = vld [vmem:[%s1 + $0x18] sm:$0xff]
      %v230 = vld [vmem:[%s219] sm:$0xf]
      %v231 = vld [vmem:[%s219 + $0x4] sm:$0xf]
      %v232 = vld [vmem:[%s219 + $0x8] sm:$0xf]
      %v233 = vld [vmem:[%s219 + $0xc] sm:$0xf]
      %v234 = vld [vmem:[%s219 + $0x10] sm:$0xf]
      %v235 = vld [vmem:[%s219 + $0x14] sm:$0xf]
      %v236 = vld [vmem:[%s219 + $0x18] sm:$0xf]
      %v237 = vld [vmem:[%s219 + $0x1c] sm:$0xf]
      %v238 = vld [vmem:[%s219 + $0x20] sm:$0xf]
      %v239 = vld [vmem:[%s219 + $0x24] sm:$0xf]
      %v240 = vld [vmem:[%s219 + $0x28] sm:$0xf]
      %v241 = vld [vmem:[%s219 + $0x2c] sm:$0xf]
      %v242 = vld [vmem:[%s219 + $0x30] sm:$0xf]
      %v243 = vld [vmem:[%s219 + $0x34] sm:$0xf]
      %v244 = vld [vmem:[%s219 + $0x38] sm:$0xf]
      %v245 = vld [vmem:[%s219 + $0x3c] sm:$0xf]
      %v246 = vld [vmem:[%s219 + $0x40] sm:$0xf]
      %v247 = vld [vmem:[%s219 + $0x44] sm:$0xf]
      %v248 = vld [vmem:[%s219 + $0x48] sm:$0xf]
      %v249 = vld [vmem:[%s219 + $0x4c] sm:$0xf]
      %v250 = vld [vmem:[%s219 + $0x50] sm:$0xf]
      %v251 = vld [vmem:[%s219 + $0x54] sm:$0xf]
      %v252 = vld [vmem:[%s219 + $0x58] sm:$0xf]
      %v253 = vld [vmem:[%s219 + $0x5c] sm:$0xf]
      %v254 = vld [vmem:[%s219 + $0x60] sm:$0xf]
      %v255 = vld [vmem:[%s219 + $0x64] sm:$0xf]
      %v256 = vld [vmem:[%s219 + $0x68] sm:$0xf]
      %v257 = vld [vmem:[%s219 + $0x6c] sm:$0xf]
      %v258 = vld [vmem:[%s219 + $0x70] sm:$0xf]
      %v259 = vld [vmem:[%s219 + $0x74] sm:$0xf]
      %v260 = vld [vmem:[%s219 + $0x78] sm:$0xf]
      %v261 = vld [vmem:[%s219 + $0x7c] sm:$0xf]
      %v266 = vunpack.c.l.b16 %v226
      %v267 = vunpack.c.h.b16 %v226
      %v268 = vunpack.c.l.b16 %v227
      %v269 = vunpack.c.h.b16 %v227
      %v270 = vunpack.c.l.b16 %v228
      %v271 = vunpack.c.h.b16 %v228
      %v272 = vunpack.c.l.b16 %v229
      %v273 = vunpack.c.h.b16 %v229
      %v274 = vpack.c.b16 %v268, %v266
      %v275 = vpack.c.b16 %v269, %v267
      %v276 = vpack.c.b16 %v272, %v270
      %v277 = vpack.c.b16 %v273, %v271
      %v314 = vunpack.c.l.b16 %v230
      %v315 = vunpack.c.l.b16 %v231
      %v316 = vunpack.c.l.b16 %v232
      %v317 = vunpack.c.l.b16 %v233
      %v318 = vunpack.c.l.b16 %v234
      %v319 = vunpack.c.l.b16 %v235
      %v320 = vunpack.c.l.b16 %v236
      %v321 = vunpack.c.l.b16 %v237
      %v322 = vunpack.c.l.b16 %v238
      %v323 = vunpack.c.l.b16 %v239
      %v324 = vunpack.c.l.b16 %v240
      %v325 = vunpack.c.l.b16 %v241
      %v326 = vunpack.c.l.b16 %v242
      %v327 = vunpack.c.l.b16 %v243
      %v328 = vunpack.c.l.b16 %v244
      %v329 = vunpack.c.l.b16 %v245
      %v330 = vunpack.c.l.b16 %v246
      %v331 = vunpack.c.l.b16 %v247
      %v332 = vunpack.c.l.b16 %v248
      %v333 = vunpack.c.l.b16 %v249
      %v334 = vunpack.c.l.b16 %v250
      %v335 = vunpack.c.l.b16 %v251
      %v336 = vunpack.c.l.b16 %v252
      %v337 = vunpack.c.l.b16 %v253
      %v338 = vunpack.c.l.b16 %v254
      %v339 = vunpack.c.l.b16 %v255
      %v340 = vunpack.c.l.b16 %v256
      %v341 = vunpack.c.l.b16 %v257
      %v342 = vunpack.c.l.b16 %v258
      %v343 = vunpack.c.l.b16 %v259
      %v344 = vunpack.c.l.b16 %v260
      %v345 = vunpack.c.l.b16 %v261
      %v346 = vpack.c.b16 %v315, %v314
      %v347 = vpack.c.b16 %v317, %v316
      %v348 = vpack.c.b16 %v319, %v318
      %v349 = vpack.c.b16 %v321, %v320
      %v350 = vpack.c.b16 %v323, %v322
      %v351 = vpack.c.b16 %v325, %v324
      %v352 = vpack.c.b16 %v327, %v326
      %v353 = vpack.c.b16 %v329, %v328
      %v354 = vpack.c.b16 %v331, %v330
      %v355 = vpack.c.b16 %v333, %v332
      %v356 = vpack.c.b16 %v335, %v334
      %v357 = vpack.c.b16 %v337, %v336
      %v358 = vpack.c.b16 %v339, %v338
      %v359 = vpack.c.b16 %v341, %v340
      %v360 = vpack.c.b16 %v343, %v342
      %v361 = vpack.c.b16 %v345, %v344
      %378 = vmatprep.subr.bf16.mxu0 0
      %379 = vmatpush1.bf16.msra.mxu0 %v346
      %380 = vmatprep.subr.bf16.mxu0 0
      %381 = vmatpush1.bf16.msra.mxu0 %v347
      %382 = vmatprep.subr.bf16.mxu0 0
      %383 = vmatpush1.bf16.msra.mxu0 %v348
      %384 = vmatprep.subr.bf16.mxu0 0
      %385 = vmatpush1.bf16.msra.mxu0 %v349
      %386 = vmatprep.subr.bf16.mxu0 0
      %387 = vmatpush1.bf16.msra.mxu0 %v350
      %388 = vmatprep.subr.bf16.mxu0 0
      %389 = vmatpush1.bf16.msra.mxu0 %v351
      %390 = vmatprep.subr.bf16.mxu0 0
      %391 = vmatpush1.bf16.msra.mxu0 %v352
      %392 = vmatprep.subr.bf16.mxu0 0
      %393 = vmatpush1.bf16.msra.mxu0 %v353
      %394 = vmatprep.subr.bf16.mxu0 0
      %395 = vmatpush1.bf16.msra.mxu0 %v354
      %396 = vmatprep.subr.bf16.mxu0 0
      %397 = vmatpush1.bf16.msra.mxu0 %v355
      %398 = vmatprep.subr.bf16.mxu0 0
      %399 = vmatpush1.bf16.msra.mxu0 %v356
      %400 = vmatprep.subr.bf16.mxu0 0
      %401 = vmatpush1.bf16.msra.mxu0 %v357
      %402 = vmatprep.subr.bf16.mxu0 0
      %403 = vmatpush1.bf16.msra.mxu0 %v358
      %404 = vmatprep.subr.bf16.mxu0 0
      %405 = vmatpush1.bf16.msra.mxu0 %v359
      %406 = vmatprep.subr.bf16.mxu0 0
      %407 = vmatpush1.bf16.msra.mxu0 %v360
      %408 = vmatprep.subr.bf16.mxu0 0
      %409 = vmatpush1.bf16.msra.mxu0 %v361
      %410 = vmatprep.mubr.bf16.mxu0 %v275
      %411 = vmatmul.mubr.bf16.gmra.mrb[0].mxu0 %v274
      %v412 = vpop.f32.mrb[0].mxu0
      %v413 = vadd.f32 0.0, %v412
      %v414 = vpop.f32.mrb[0].mxu0
      %v415 = vpop.f32.mrb[0].mxu0
      %v416 = vadd.f32 0.0, %v415
      %v417 = vpop.f32.mrb[0].mxu0
      %418 = vmatprep.mubr.bf16.mxu0 %v277
      %419 = vmatmul.mubr.bf16.gmra.mrb[0].mxu0 %v276
      %v420 = vpop.f32.mrb[0].mxu0
      %v421 = vadd.f32 0.0, %v420
      %v422 = vpop.f32.mrb[0].mxu0
      %v423 = vpop.f32.mrb[0].mxu0
      %v424 = vadd.f32 0.0, %v423
      %v425 = vpop.f32.mrb[0].mxu0
      %426 = vdwg.mxu0
      %v427 = vld [vmem:[%s2] sm:$0xff]
      %v428 = vld [vmem:[%s2 + $0x8] sm:$0xff]
      %v429 = vld [vmem:[%s2 + $0x10] sm:$0xff]
      %v430 = vld [vmem:[%s2 + $0x18] sm:$0xff]
      %v431 = vld [vmem:[%s3] sm:$0xff]
      %v432 = vld [vmem:[%s3 + $0x8] sm:$0xff]
      %v433 = vld [vmem:[%s3 + $0x10] sm:$0xff]
      %v434 = vld [vmem:[%s3 + $0x18] sm:$0xff]
      %v435 = vld [vmem:[%s4] sm:$0xff]
      %v436 = vld [vmem:[%s4 + $0x8] sm:$0xff]
      %v437 = vld [vmem:[%s4 + $0x10] sm:$0xff]
      %v438 = vld [vmem:[%s4 + $0x18] sm:$0xff]
      %vm439 = vcmask 130048
      %v440 = vsel %vm439, %v413, 0.0
      %441 = vadd.xlane.f32.xlu0 %v440
      %v442 = vpop.xlane.xlu0 %441
      %v443 = vsel %vm439, %v416, 0.0
      %444 = vadd.xlane.f32.xlu0 %v443
      %v445 = vpop.xlane.xlu0 %444
      %v446 = vsel %vm439, %v421, 0.0
      %447 = vadd.xlane.f32.xlu0 %v446
      %v448 = vpop.xlane.xlu0 %447
      %v449 = vsel %vm439, %v424, 0.0
      %450 = vadd.xlane.f32.xlu0 %v449
      %v451 = vpop.xlane.xlu0 %450
      %v452 = vmul.f32 %v442, 0.0625
      %v453 = vmul.f32 %v445, 0.0625
      %v454 = vmul.f32 %v448, 0.0625
      %v455 = vmul.f32 %v451, 0.0625
      %v456 = vmul.f32 %v413, %v413
      %v457 = vmul.f32 %v416, %v416
      %v458 = vmul.f32 %v421, %v421
      %v459 = vmul.f32 %v424, %v424
      %v460 = vsel %vm439, %v456, 0.0
      %461 = vadd.xlane.f32.xlu0 %v460
      %v462 = vpop.xlane.xlu0 %461
      %v463 = vsel %vm439, %v457, 0.0
      %464 = vadd.xlane.f32.xlu0 %v463
      %v465 = vpop.xlane.xlu0 %464
      %v466 = vsel %vm439, %v458, 0.0
      %467 = vadd.xlane.f32.xlu0 %v466
      %v468 = vpop.xlane.xlu0 %467
      %v469 = vsel %vm439, %v459, 0.0
      %470 = vadd.xlane.f32.xlu0 %v469
      %v471 = vpop.xlane.xlu0 %470
      %v472 = vmul.f32 %v462, 0.0625
      %v473 = vmul.f32 %v465, 0.0625
      %v474 = vmul.f32 %v468, 0.0625
      %v475 = vmul.f32 %v471, 0.0625
      %v476 = vmul.f32 %v452, %v452
      %v477 = vmul.f32 %v453, %v453
      %v478 = vmul.f32 %v454, %v454
      %v479 = vmul.f32 %v455, %v455
      %v480 = vsub.f32 %v472, %v476
      %v481 = vsub.f32 %v473, %v477
      %v482 = vsub.f32 %v474, %v478
      %v483 = vsub.f32 %v475, %v479
      %v484 = vmax.f32 %v480, 0.0
      %v485 = vmax.f32 %v481, 0.0
      %v486 = vmax.f32 %v482, 0.0
      %v487 = vmax.f32 %v483, 0.0
      %v488 = vsub.f32 %v413, %v452
      %v489 = vsub.f32 %v416, %v453
      %v490 = vsub.f32 %v421, %v454
      %v491 = vsub.f32 %v424, %v455
      %v492 = vadd.f32 %v484, 1e-05
      %v493 = vadd.f32 %v485, 1e-05
      %v494 = vadd.f32 %v486, 1e-05
      %v495 = vadd.f32 %v487, 1e-05
      %v496 = vrsqrt.pop %v492
      %v497 = vrsqrt.pop %v493
      %v498 = vrsqrt.pop %v494
      %v499 = vrsqrt.pop %v495
      %v500 = vmul.f32 %v488, %v496
      %v501 = vmul.f32 %v489, %v497
      %v502 = vmul.f32 %v490, %v498
      %v503 = vmul.f32 %v491, %v499
      %505 = vset.pattern.permute.xlu0 0
      %506 = vperm.xlu0 %505, %v427
      %v507 = vpop.permute.xlu0 %506
      %510 = vset.pattern.permute.xlu0 0
      %511 = vperm.xlu0 %510, %v428
      %v512 = vpop.permute.xlu0 %511
      %515 = vset.pattern.permute.xlu0 0
      %516 = vperm.xlu0 %515, %v429
      %v517 = vpop.permute.xlu0 %516
      %520 = vset.pattern.permute.xlu0 0
      %521 = vperm.xlu0 %520, %v430
      %v522 = vpop.permute.xlu0 %521
      %v524 = vmul.f32 %v500, %v507
      %v525 = vmul.f32 %v501, %v512
      %v526 = vmul.f32 %v502, %v517
      %v527 = vmul.f32 %v503, %v522
      %529 = vset.pattern.permute.xlu0 0
      %530 = vperm.xlu0 %529, %v431
      %v531 = vpop.permute.xlu0 %530
      %534 = vset.pattern.permute.xlu0 0
      %535 = vperm.xlu0 %534, %v432
      %v536 = vpop.permute.xlu0 %535
      %539 = vset.pattern.permute.xlu0 0
      %540 = vperm.xlu0 %539, %v433
      %v541 = vpop.permute.xlu0 %540
      %544 = vset.pattern.permute.xlu0 0
      %545 = vperm.xlu0 %544, %v434
      %v546 = vpop.permute.xlu0 %545
      %v548 = vadd.f32 %v524, %v531
      %v549 = vadd.f32 %v525, %v536
      %v550 = vadd.f32 %v526, %v541
      %v551 = vadd.f32 %v527, %v546
      %vm552 = vcmp.ge.f32.partialorder %v548, 0.0
      %vm553 = vcmp.ge.f32.partialorder %v549, 0.0
      %vm554 = vcmp.ge.f32.partialorder %v550, 0.0
      %vm555 = vcmp.ge.f32.partialorder %v551, 0.0
      %557 = vset.pattern.permute.xlu0 0
      %558 = vperm.xlu0 %557, %v435
      %v559 = vpop.permute.xlu0 %558
      %562 = vset.pattern.permute.xlu0 0
      %563 = vperm.xlu0 %562, %v436
      %v564 = vpop.permute.xlu0 %563
      %567 = vset.pattern.permute.xlu0 0
      %568 = vperm.xlu0 %567, %v437
      %v569 = vpop.permute.xlu0 %568
      %572 = vset.pattern.permute.xlu0 0
      %573 = vperm.xlu0 %572, %v438
      %v574 = vpop.permute.xlu0 %573
      %v576 = vmul.f32 %v559, %v548
      %v577 = vmul.f32 %v564, %v549
      %v578 = vmul.f32 %v569, %v550
      %v579 = vmul.f32 %v574, %v551
      %v580 = vsel %vm552, %v548, %v576
      %v581 = vsel %vm553, %v549, %v577
      %v582 = vsel %vm554, %v550, %v578
      %v583 = vsel %vm555, %v551, %v579
      %v584 = vpack.c.bf16 %v581, %v580
      %v585 = vpack.c.bf16 %v583, %v582
      %v588 = vunpack.c.l.b16 %v584
      %v589 = vunpack.c.h.b16 %v584
      %v590 = vunpack.c.l.b16 %v585
      %v591 = vunpack.c.h.b16 %v585
      %v592 = vpack.c.b16 %v588, %v588
      %v593 = vpack.c.b16 %v589, %v589
      %v594 = vpack.c.b16 %v590, %v590
      %v595 = vpack.c.b16 %v591, %v591
      %vm600 = vcmask 125952
      %601 = vst.msk [vmem:[%s224] sm:$0xf] %vm600, %v592
      %602 = vst.msk [vmem:[%s224 + $0x4] sm:$0xf] %vm600, %v593
      %603 = vst.msk [vmem:[%s224 + $0x8] sm:$0xf] %vm600, %v594
      %604 = vst.msk [vmem:[%s224 + $0xc] sm:$0xf] %vm600, %v595
      %p605 = scmp.lt.s32.totalorder %s16, 1
      %s606 = scalar_select %p605, %s16, 1
      %s607 = smul.addr %s606, 4
      %s608 = smul.addr %s607, 4
      %s609 = scalar_lea.vmem %s5, %s608
      // Predicated region
      $region41: #{discriminator_forward.6} parent=39 // pred_check
        %p610 = pneg %p144
      $region42: #{discriminator_forward.6} parent=39 // pred_check_branch
        %612 = sbr.rel (%p610) target = $region44
      $region43: #{discriminator_forward.6} parent=39 // pred_region
        _
      $region44: #{discriminator_forward.6} parent=39 // pred_fallthru
        _
    $region40: #{discriminator_forward.6} parent=5 // pred_fallthru
      _
    %p613 = scmp.le.s32.totalorder 2, %s11
    // Predicated region
    $region45: #{discriminator_forward.6} parent=5 // pred_check
      %p614 = pneg %p613
    $region46: #{discriminator_forward.6} parent=5 // pred_check_branch
      %616 = sbr.rel (%p614) target = $region48
    $region47: #{discriminator_forward.6} parent=5 // pred_region
      %s617 = ssub.s32 %s11, 2
      // Predicated region
      $region49: #{discriminator_forward.6} parent=47 // pred_check
        %p618 = pneg %p150
      $region50: #{discriminator_forward.6} parent=47 // pred_check_branch
        %620 = sbr.rel (%p618) target = $region52
      $region51: #{discriminator_forward.6} parent=47 // pred_region
        %p621 = scmp.lt.s32.totalorder %s17, 1
        %s622 = scalar_select %p621, %s17, 1
        %s623 = smul.addr %s622, 4
        %s624 = smul.addr %s623, 4
        %s625 = scalar_lea.vmem %s5, %s624
      $region52: #{discriminator_forward.6} parent=47 // pred_fallthru
        _
    $region48: #{discriminator_forward.6} parent=5 // pred_fallthru
      _
  $region6: #{discriminator_forward.6} parent=0 // loop_footer
    %s15 = sadd.s32 1, %s11
  $region7: #{discriminator_forward.6} parent=0 // loop_footer_branch
    %10 = sbr.rel target = $region3
  $region8: #{discriminator_forward.6} parent=0 // loop_exit
    _

// kernel: discriminator_forward.7
$region0: #{discriminator_forward.7}
  #allocation0 [shape = 'u32[]', space=smem, size = 0x4, offset = 0x4, fixed_abs, tag = 'smem constant byte address 0x4 - core index']
  #allocation1 [shape = 'u32[144,128]{1,0:T(1,128)}', space=vmem, size = 0x12000, scoped, tag = 'internal scratch']
  #allocation2 [shape = 'f32[1,1]{1,0:T(1,128)S(1)}', space=vmem, size = 0x200, scoped, tag = 'scoped memory for discriminator_forward.7']
  #allocation3 [shape = 'f32[1,1]{1,0:T(1,128)S(1)}', space=vmem, size = 0x200, scoped, tag = 'scoped memory for discriminator_forward.7']
  %s0 = inlined_call_operand.vmem [shape: bf16[2,512,4], index: 0, kind: input, shape index: {}]
  %s1 = inlined_call_operand.vmem [shape: bf16[64,512], index: 1, kind: input, shape index: {}]
  %s2 = inlined_call_operand.vmem [shape: f32[64,1], index: 2, kind: input, shape index: {}]
  %s3 = inlined_call_operand.vmem [shape: f32[64,1], index: 3, kind: input, shape index: {}]
  %s4 = inlined_call_operand.vmem [shape: f32[64,1], index: 4, kind: input, shape index: {}]
  %s5 = inlined_call_operand.vmem [shape: f32[64,32], index: 5, kind: input, shape index: {}]
  %s6 = inlined_call_operand.vmem [shape: f32[1,32], index: 6, kind: input, shape index: {}]
  %s7 = inlined_call_operand.vmem [shape: f32[1,32], index: 7, kind: input, shape index: {}]
  %s8 = inlined_call_operand.vmem [shape: f32[1,32], index: 8, kind: input, shape index: {}]
  %s9 = inlined_call_operand.<no memory space> [shape: f32[1,1], index: 9, kind: input, shape index: {}]
  %s10 = inlined_call_operand.<no memory space> [shape: f32[1,1], index: 10, kind: input, shape index: {}]
  %s11 = inlined_call_operand.vmem [shape: f32[2,1,1], index: 11, kind: output, shape index: {}]
  %s12 = sld [smem:[#allocation0]]
  $region77: #{discriminator_forward.7} parent=0
    _
  %s14 = ssub.s32 1, %s12
  %s15 = scalar_select 0, %s14, %s12
  %v16 = vstv %s9
  %17 = vst [vmem:[#allocation2] sm:$0x1] %v16
  %v18 = vstv %s10
  %19 = vst [vmem:[#allocation3] sm:$0x1] %v18
  loop: start=0, step=1, limit=4
  $region2: #{discriminator_forward.7} parent=0 // loop_pre_header
    _
  $region3: #{discriminator_forward.7} parent=0 // loop_header
    %s21 = sphi 0, %s25
    %p22 = scmp.ge.s32.totalorder %s21, 4
    %s31 = sphi 0, %s33
    %s34 = sphi 0, %s31
    %s35 = sphi 0, %s34
    %s51 = sphi 0, %s35
    %s55 = sphi 0, %s55
    %s57 = sphi 0, %s55
    %s58 = sphi 0, %s57
    %s72 = sphi 0, %s58
    %s76 = sphi 0, %s76
    %s78 = sphi 0, %s76
    %s79 = sphi 0, %s78
    %s93 = sphi 0, %s79
    %s97 = sphi 0, %s97
    %s99 = sphi 0, %s97
    %s100 = sphi 0, %s99
    %s114 = sphi 0, %s100
    %s118 = sphi 0, %s118
    %s120 = sphi 0, %s118
    %s121 = sphi 0, %s120
    %s135 = sphi 0, %s121
    %s139 = sphi 0, %s139
    %s141 = sphi 0, %s139
    %s142 = sphi 0, %s141
    %s156 = sphi 0, %s142
    %s160 = sphi 0, %s160
    %s162 = sphi 0, %s160
    %s163 = sphi 0, %s162
    %s177 = sphi 0, %s163
    %s181 = sphi 0, %s181
    %s183 = sphi 0, %s181
    %s184 = sphi 0, %s183
    %s198 = sphi 0, %s184
    %s202 = sphi 0, %s202
    %s204 = sphi 0, %s202
    %s205 = sphi 0, %s204
    %s219 = sphi 0, %s205
    %s223 = sphi 0, %s223
    %s225 = sphi 0, %s223
    %s226 = sphi 0, %s225
    %s240 = sphi 0, %s226
    %s244 = sphi 0, %s244
    %s246 = sphi 0, %s244
    %s247 = sphi 0, %s246
    %s261 = sphi 0, %s247
    %s267 = sphi 0, %s269
    %s270 = sphi 0, %s267
    %s271 = sphi 0, %s270
    %s287 = sphi 0, %s271
  $region4: #{discriminator_forward.7} parent=0 // loop_header_branch
    %24 = sbr.rel (%p22) target = $region8
  $region5: #{discriminator_forward.7} parent=0 // loop_body
    %s26 = ssub.s32 %s21, 1
    %s27 = ssub.s32 %s21, 2
    %s28 = sadd.s32 %s21, 1
    %s29 = ssub.s32 %s21, %s28
    %p30 = scmp.eq.s32.totalorder %s29, 0
    %s32 = sadd.s32 %s31, 1
    %s33 = scalar_select %p30, %s31, %s32
    %p36 = pneg %p30
    %p37 = scmp.eq.s32.totalorder %s21, 1
    %p38 = por %p36, %p37
    %p39 = scmp.ne.s32.totalorder %s31, %s34
    %p40 = scmp.eq.s32.totalorder %s21, 0
    %p41 = por %p39, %p40
    %p42 = scmp.ne.s32.totalorder %s31, %s34
    %p43 = scmp.eq.s32.totalorder %s26, 1
    %p44 = por %p42, %p43
    %p45 = scmp.ne.s32.totalorder %s34, %s35
    %p46 = scmp.eq.s32.totalorder %s26, 0
    %p47 = por %p45, %p46
    %p48 = scmp.ne.s32.totalorder %s34, %s35
    %p49 = scmp.eq.s32.totalorder %s27, 1
    %p50 = por %p48, %p49
    %p52 = scmp.ne.s32.totalorder %s35, %s51
    %p53 = scmp.eq.s32.totalorder %s27, 0
    %p54 = por %p52, %p53
    %s56 = sadd.s32 %s55, 1
    %p59 = scmp.eq.s32.totalorder %s21, 1
    %p60 = scmp.ne.s32.totalorder %s55, %s57
    %p61 = scmp.eq.s32.totalorder %s21, 0
    %p62 = por %p60, %p61
    %p63 = scmp.ne.s32.totalorder %s55, %s57
    %p64 = scmp.eq.s32.totalorder %s26, 1
    %p65 = por %p63, %p64
    %p66 = scmp.ne.s32.totalorder %s57, %s58
    %p67 = scmp.eq.s32.totalorder %s26, 0
    %p68 = por %p66, %p67
    %p69 = scmp.ne.s32.totalorder %s57, %s58
    %p70 = scmp.eq.s32.totalorder %s27, 1
    %p71 = por %p69, %p70
    %p73 = scmp.ne.s32.totalorder %s58, %s72
    %p74 = scmp.eq.s32.totalorder %s27, 0
    %p75 = por %p73, %p74
    %s77 = sadd.s32 %s76, 1
    %p80 = scmp.eq.s32.totalorder %s21, 1
    %p81 = scmp.ne.s32.totalorder %s76, %s78
    %p82 = scmp.eq.s32.totalorder %s21, 0
    %p83 = por %p81, %p82
    %p84 = scmp.ne.s32.totalorder %s76, %s78
    %p85 = scmp.eq.s32.totalorder %s26, 1
    %p86 = por %p84, %p85
    %p87 = scmp.ne.s32.totalorder %s78, %s79
    %p88 = scmp.eq.s32.totalorder %s26, 0
    %p89 = por %p87, %p88
    %p90 = scmp.ne.s32.totalorder %s78, %s79
    %p91 = scmp.eq.s32.totalorder %s27, 1
    %p92 = por %p90, %p91
    %p94 = scmp.ne.s32.totalorder %s79, %s93
    %p95 = scmp.eq.s32.totalorder %s27, 0
    %p96 = por %p94, %p95
    %s98 = sadd.s32 %s97, 1
    %p101 = scmp.eq.s32.totalorder %s21, 1
    %p102 = scmp.ne.s32.totalorder %s97, %s99
    %p103 = scmp.eq.s32.totalorder %s21, 0
    %p104 = por %p102, %p103
    %p105 = scmp.ne.s32.totalorder %s97, %s99
    %p106 = scmp.eq.s32.totalorder %s26, 1
    %p107 = por %p105, %p106
    %p108 = scmp.ne.s32.totalorder %s99, %s100
    %p109 = scmp.eq.s32.totalorder %s26, 0
    %p110 = por %p108, %p109
    %p111 = scmp.ne.s32.totalorder %s99, %s100
    %p112 = scmp.eq.s32.totalorder %s27, 1
    %p113 = por %p111, %p112
    %p115 = scmp.ne.s32.totalorder %s100, %s114
    %p116 = scmp.eq.s32.totalorder %s27, 0
    %p117 = por %p115, %p116
    %s119 = sadd.s32 %s118, 1
    %p122 = scmp.eq.s32.totalorder %s21, 1
    %p123 = scmp.ne.s32.totalorder %s118, %s120
    %p124 = scmp.eq.s32.totalorder %s21, 0
    %p125 = por %p123, %p124
    %p126 = scmp.ne.s32.totalorder %s118, %s120
    %p127 = scmp.eq.s32.totalorder %s26, 1
    %p128 = por %p126, %p127
    %p129 = scmp.ne.s32.totalorder %s120, %s121
    %p130 = scmp.eq.s32.totalorder %s26, 0
    %p131 = por %p129, %p130
    %p132 = scmp.ne.s32.totalorder %s120, %s121
    %p133 = scmp.eq.s32.totalorder %s27, 1
    %p134 = por %p132, %p133
    %p136 = scmp.ne.s32.totalorder %s121, %s135
    %p137 = scmp.eq.s32.totalorder %s27, 0
    %p138 = por %p136, %p137
    %s140 = sadd.s32 %s139, 1
    %p143 = scmp.eq.s32.totalorder %s21, 1
    %p144 = scmp.ne.s32.totalorder %s139, %s141
    %p145 = scmp.eq.s32.totalorder %s21, 0
    %p146 = por %p144, %p145
    %p147 = scmp.ne.s32.totalorder %s139, %s141
    %p148 = scmp.eq.s32.totalorder %s26, 1
    %p149 = por %p147, %p148
    %p150 = scmp.ne.s32.totalorder %s141, %s142
    %p151 = scmp.eq.s32.totalorder %s26, 0
    %p152 = por %p150, %p151
    %p153 = scmp.ne.s32.totalorder %s141, %s142
    %p154 = scmp.eq.s32.totalorder %s27, 1
    %p155 = por %p153, %p154
    %p157 = scmp.ne.s32.totalorder %s142, %s156
    %p158 = scmp.eq.s32.totalorder %s27, 0
    %p159 = por %p157, %p158
    %s161 = sadd.s32 %s160, 1
    %p164 = scmp.eq.s32.totalorder %s21, 1
    %p165 = scmp.ne.s32.totalorder %s160, %s162
    %p166 = scmp.eq.s32.totalorder %s21, 0
    %p167 = por %p165, %p166
    %p168 = scmp.ne.s32.totalorder %s160, %s162
    %p169 = scmp.eq.s32.totalorder %s26, 1
    %p170 = por %p168, %p169
    %p171 = scmp.ne.s32.totalorder %s162, %s163
    %p172 = scmp.eq.s32.totalorder %s26, 0
    %p173 = por %p171, %p172
    %p174 = scmp.ne.s32.totalorder %s162, %s163
    %p175 = scmp.eq.s32.totalorder %s27, 1
    %p176 = por %p174, %p175
    %p178 = scmp.ne.s32.totalorder %s163, %s177
    %p179 = scmp.eq.s32.totalorder %s27, 0
    %p180 = por %p178, %p179
    %s182 = sadd.s32 %s181, 1
    %p185 = scmp.eq.s32.totalorder %s21, 1
    %p186 = scmp.ne.s32.totalorder %s181, %s183
    %p187 = scmp.eq.s32.totalorder %s21, 0
    %p188 = por %p186, %p187
    %p189 = scmp.ne.s32.totalorder %s181, %s183
    %p190 = scmp.eq.s32.totalorder %s26, 1
    %p191 = por %p189, %p190
    %p192 = scmp.ne.s32.totalorder %s183, %s184
    %p193 = scmp.eq.s32.totalorder %s26, 0
    %p194 = por %p192, %p193
    %p195 = scmp.ne.s32.totalorder %s183, %s184
    %p196 = scmp.eq.s32.totalorder %s27, 1
    %p197 = por %p195, %p196
    %p199 = scmp.ne.s32.totalorder %s184, %s198
    %p200 = scmp.eq.s32.totalorder %s27, 0
    %p201 = por %p199, %p200
    %s203 = sadd.s32 %s202, 1
    %p206 = scmp.eq.s32.totalorder %s21, 1
    %p207 = scmp.ne.s32.totalorder %s202, %s204
    %p208 = scmp.eq.s32.totalorder %s21, 0
    %p209 = por %p207, %p208
    %p210 = scmp.ne.s32.totalorder %s202, %s204
    %p211 = scmp.eq.s32.totalorder %s26, 1
    %p212 = por %p210, %p211
    %p213 = scmp.ne.s32.totalorder %s204, %s205
    %p214 = scmp.eq.s32.totalorder %s26, 0
    %p215 = por %p213, %p214
    %p216 = scmp.ne.s32.totalorder %s204, %s205
    %p217 = scmp.eq.s32.totalorder %s27, 1
    %p218 = por %p216, %p217
    %p220 = scmp.ne.s32.totalorder %s205, %s219
    %p221 = scmp.eq.s32.totalorder %s27, 0
    %p222 = por %p220, %p221
    %s224 = sadd.s32 %s223, 1
    %p227 = scmp.eq.s32.totalorder %s21, 1
    %p228 = scmp.ne.s32.totalorder %s223, %s225
    %p229 = scmp.eq.s32.totalorder %s21, 0
    %p230 = por %p228, %p229
    %p231 = scmp.ne.s32.totalorder %s223, %s225
    %p232 = scmp.eq.s32.totalorder %s26, 1
    %p233 = por %p231, %p232
    %p234 = scmp.ne.s32.totalorder %s225, %s226
    %p235 = scmp.eq.s32.totalorder %s26, 0
    %p236 = por %p234, %p235
    %p237 = scmp.ne.s32.totalorder %s225, %s226
    %p238 = scmp.eq.s32.totalorder %s27, 1
    %p239 = por %p237, %p238
    %p241 = scmp.ne.s32.totalorder %s226, %s240
    %p242 = scmp.eq.s32.totalorder %s27, 0
    %p243 = por %p241, %p242
    %s245 = sadd.s32 %s244, 1
    %p248 = scmp.eq.s32.totalorder %s21, 1
    %p249 = scmp.ne.s32.totalorder %s244, %s246
    %p250 = scmp.eq.s32.totalorder %s21, 0
    %p251 = por %p249, %p250
    %p252 = scmp.ne.s32.totalorder %s244, %s246
    %p253 = scmp.eq.s32.totalorder %s26, 1
    %p254 = por %p252, %p253
    %p255 = scmp.ne.s32.totalorder %s246, %s247
    %p256 = scmp.eq.s32.totalorder %s26, 0
    %p257 = por %p255, %p256
    %p258 = scmp.ne.s32.totalorder %s246, %s247
    %p259 = scmp.eq.s32.totalorder %s27, 1
    %p260 = por %p258, %p259
    %p262 = scmp.ne.s32.totalorder %s247, %s261
    %p263 = scmp.eq.s32.totalorder %s27, 0
    %p264 = por %p262, %p263
    %s265 = ssub.s32 %s21, %s28
    %p266 = scmp.eq.s32.totalorder %s265, 0
    %s268 = sadd.s32 %s267, 1
    %s269 = scalar_select %p266, %s267, %s268
    %p272 = pneg %p266
    %p273 = scmp.eq.s32.totalorder %s21, 1
    %p274 = por %p272, %p273
    %p275 = scmp.ne.s32.totalorder %s267, %s270
    %p276 = scmp.eq.s32.totalorder %s21, 0
    %p277 = por %p275, %p276
    %p278 = scmp.ne.s32.totalorder %s267, %s270
    %p279 = scmp.eq.s32.totalorder %s26, 1
    %p280 = por %p278, %p279
    %p281 = scmp.ne.s32.totalorder %s270, %s271
    %p282 = scmp.eq.s32.totalorder %s26, 0
    %p283 = por %p281, %p282
    %p284 = scmp.ne.s32.totalorder %s270, %s271
    %p285 = scmp.eq.s32.totalorder %s27, 1
    %p286 = por %p284, %p285
    %p288 = scmp.ne.s32.totalorder %s271, %s287
    %p289 = scmp.eq.s32.totalorder %s27, 0
    %p290 = por %p288, %p289
    %p291 = scmp.le.s32.totalorder 1, %s21
    %p292 = scmp.lt.s32.totalorder %s21, 3
    %p293 = pnand %p291, %p292
    %p294 = pneg %p293
    // Predicated region
    $region9: #{discriminator_forward.7} parent=5 // pred_check
      _
    $region10: #{discriminator_forward.7} parent=5 // pred_check_branch
      %296 = sbr.rel (%p293) target = $region12
    $region11: #{discriminator_forward.7} parent=5 // pred_region
      %s297 = ssub.s32 %s21, 1
      // Predicated region
      $region13: #{discriminator_forward.7} parent=11 // pred_check
        %p298 = pneg %p68
      $region14: #{discriminator_forward.7} parent=11 // pred_check_branch
        %300 = sbr.rel (%p298) target = $region16
      $region15: #{discriminator_forward.7} parent=11 // pred_region
        _
      $region16: #{discriminator_forward.7} parent=11 // pred_fallthru
        _
      // Predicated region
      $region17: #{discriminator_forward.7} parent=11 // pred_check
        %p301 = pneg %p89
      $region18: #{discriminator_forward.7} parent=11 // pred_check_branch
        %303 = sbr.rel (%p301) target = $region20
      $region19: #{discriminator_forward.7} parent=11 // pred_region
        _
      $region20: #{discriminator_forward.7} parent=11 // pred_fallthru
        _
      // Predicated region
      $region21: #{discriminator_forward.7} parent=11 // pred_check
        %p304 = pneg %p110
      $region22: #{discriminator_forward.7} parent=11 // pred_check_branch
        %306 = sbr.rel (%p304) target = $region24
      $region23: #{discriminator_forward.7} parent=11 // pred_region
        _
      $region24: #{discriminator_forward.7} parent=11 // pred_fallthru
        _
      // Predicated region
      $region25: #{discriminator_forward.7} parent=11 // pred_check
        %p307 = pneg %p131
      $region26: #{discriminator_forward.7} parent=11 // pred_check_branch
        %309 = sbr.rel (%p307) target = $region28
      $region27: #{discriminator_forward.7} parent=11 // pred_region
        _
      $region28: #{discriminator_forward.7} parent=11 // pred_fallthru
        _
      // Predicated region
      $region29: #{discriminator_forward.7} parent=11 // pred_check
        %p310 = pneg %p152
      $region30: #{discriminator_forward.7} parent=11 // pred_check_branch
        %312 = sbr.rel (%p310) target = $region32
      $region31: #{discriminator_forward.7} parent=11 // pred_region
        _
      $region32: #{discriminator_forward.7} parent=11 // pred_fallthru
        _
      // Predicated region
      $region33: #{discriminator_forward.7} parent=11 // pred_check
        %p313 = pneg %p173
      $region34: #{discriminator_forward.7} parent=11 // pred_check_branch
        %315 = sbr.rel (%p313) target = $region36
      $region35: #{discriminator_forward.7} parent=11 // pred_region
        _
      $region36: #{discriminator_forward.7} parent=11 // pred_fallthru
        _
      // Predicated region
      $region37: #{discriminator_forward.7} parent=11 // pred_check
        %p316 = pneg %p194
      $region38: #{discriminator_forward.7} parent=11 // pred_check_branch
        %318 = sbr.rel (%p316) target = $region40
      $region39: #{discriminator_forward.7} parent=11 // pred_region
        _
      $region40: #{discriminator_forward.7} parent=11 // pred_fallthru
        _
      // Predicated region
      $region41: #{discriminator_forward.7} parent=11 // pred_check
        %p319 = pneg %p215
      $region42: #{discriminator_forward.7} parent=11 // pred_check_branch
        %321 = sbr.rel (%p319) target = $region44
      $region43: #{discriminator_forward.7} parent=11 // pred_region
        _
      $region44: #{discriminator_forward.7} parent=11 // pred_fallthru
        _
      // Predicated region
      $region45: #{discriminator_forward.7} parent=11 // pred_check
        %p322 = pneg %p236
      $region46: #{discriminator_forward.7} parent=11 // pred_check_branch
        %324 = sbr.rel (%p322) target = $region48
      $region47: #{discriminator_forward.7} parent=11 // pred_region
        _
      $region48: #{discriminator_forward.7} parent=11 // pred_fallthru
        _
      // Predicated region
      $region49: #{discriminator_forward.7} parent=11 // pred_check
        %p325 = pneg %p257
      $region50: #{discriminator_forward.7} parent=11 // pred_check_branch
        %327 = sbr.rel (%p325) target = $region52
      $region51: #{discriminator_forward.7} parent=11 // pred_region
        _
      $region52: #{discriminator_forward.7} parent=11 // pred_fallthru
        _
    $region12: #{discriminator_forward.7} parent=5 // pred_fallthru
      _
    %p328 = scmp.lt.s32.totalorder %s21, 2
    // Predicated region
    $region53: #{discriminator_forward.7} parent=5 // pred_check
      %p329 = pneg %p328
    $region54: #{discriminator_forward.7} parent=5 // pred_check_branch
      %331 = sbr.rel (%p329) target = $region56
    $region55: #{discriminator_forward.7} parent=5 // pred_region
      // Predicated region
      $region57: #{discriminator_forward.7} parent=55 // pred_check
        %p332 = pneg %p41
      $region58: #{discriminator_forward.7} parent=55 // pred_check_branch
        %334 = sbr.rel (%p332) target = $region60
      $region59: #{discriminator_forward.7} parent=55 // pred_region
        %p335 = scmp.lt.s32.totalorder %s21, 1
        %s336 = scalar_select %p335, %s21, 1
        %s337 = smul.addr %s336, 64
        %s338 = smul.addr %s337, 4
        %s339 = scalar_lea.vmem %s0, %s338
      $region60: #{discriminator_forward.7} parent=55 // pred_fallthru
        _
    $region56: #{discriminator_forward.7} parent=5 // pred_fallthru
      _
    %p340 = scmp.le.s32.totalorder 1, %s21
    %p341 = scmp.lt.s32.totalorder %s21, 3
    %p342 = pnand %p340, %p341
    %p343 = pneg %p342
    // Predicated region
    $region61: #{discriminator_forward.7} parent=5 // pred_check
      _
    $region62: #{discriminator_forward.7} parent=5 // pred_check_branch
      %345 = sbr.rel (%p342) target = $region64
    $region63: #{discriminator_forward.7} parent=5 // pred_region
      %s346 = ssub.s32 %s21, 1
      %p347 = scmp.lt.s32.totalorder %s26, 1
      %s348 = scalar_select %p347, %s26, 1
      %s349 = smul.addr %s348, 64
      %s350 = smul.addr %s349, 4
      %s351 = scalar_lea.vmem %s0, %s350
      %p352 = pneg %p47
      %p353 = pneg %p44
      %p354 = pneg %p68
      %p355 = pneg %p65
      %p356 = pneg %p89
      %p357 = pneg %p86
      %p358 = pneg %p110
      %p359 = pneg %p107
      %p360 = pneg %p131
      %p361 = pneg %p128
      %p362 = pneg %p152
      %p363 = pneg %p149
      %p364 = pneg %p173
      %p365 = pneg %p170
      %p366 = pneg %p194
      %p367 = pneg %p191
      %p368 = pneg %p215
      %p369 = pneg %p212
      %p370 = pneg %p236
      %p371 = pneg %p233
      %p372 = pneg %p257
      %p373 = pneg %p254
      %p374 = pneg %p283
      %p375 = pneg %p280
      %p376 = scmp.lt.s32.totalorder %s26, 1
      %s377 = scalar_select %p376, %s26, 1
      %s378 = scalar_lea.vmem %s11, %s377
      %p379 = scmp.lt.s32.totalorder %s26, 1
      %s380 = scalar_select %p379, %s26, 1
      %s381 = smul.addr %s380, 64
      %s382 = smul.addr %s381, 4
      %s383 = scalar_lea.vmem %s0, %s382
      %p384 = scmp.lt.s32.totalorder %s26, 1
      %s385 = scalar_select %p384, %s26, 1
      %s386 = scalar_lea.vmem %s11, %s385
      %v388 = vld [vmem:[%s1] sm:$0xff]
      %v389 = vld [vmem:[%s1 + $0x8] sm:$0xff]
      %v390 = vld [vmem:[%s1 + $0x10] sm:$0xff]
      %v391 = vld [vmem:[%s1 + $0x18] sm:$0xff]
      %v392 = vld [vmem:[%s1 + $0x20] sm:$0xff]
      %v393 = vld [vmem:[%s1 + $0x28] sm:$0xff]
      %v394 = vld [vmem:[%s1 + $0x30] sm:$0xff]
      %v395 = vld [vmem:[%s1 + $0x38] sm:$0xff]
      %v396 = vld [vmem:[%s1 + $0x40] sm:$0xff]
      %v397 = vld [vmem:[%s1 + $0x48] sm:$0xff]
      %v398 = vld [vmem:[%s1 + $0x50] sm:$0xff]
      %v399 = vld [vmem:[%s1 + $0x58] sm:$0xff]
      %v400 = vld [vmem:[%s1 + $0x60] sm:$0xff]
      %v401 = vld [vmem:[%s1 + $0x68] sm:$0xff]
      %v402 = vld [vmem:[%s1 + $0x70] sm:$0xff]
      %v403 = vld [vmem:[%s1 + $0x78] sm:$0xff]
      %v404 = vld [vmem:[%s383] sm:$0xf]
      %v405 = vld [vmem:[%s383 + $0x4] sm:$0xf]
      %v406 = vld [vmem:[%s383 + $0x8] sm:$0xf]
      %v407 = vld [vmem:[%s383 + $0xc] sm:$0xf]
      %v408 = vld [vmem:[%s383 + $0x10] sm:$0xf]
      %v409 = vld [vmem:[%s383 + $0x14] sm:$0xf]
      %v410 = vld [vmem:[%s383 + $0x18] sm:$0xf]
      %v411 = vld [vmem:[%s383 + $0x1c] sm:$0xf]
      %v412 = vld [vmem:[%s383 + $0x20] sm:$0xf]
      %v413 = vld [vmem:[%s383 + $0x24] sm:$0xf]
      %v414 = vld [vmem:[%s383 + $0x28] sm:$0xf]
      %v415 = vld [vmem:[%s383 + $0x2c] sm:$0xf]
      %v416 = vld [vmem:[%s383 + $0x30] sm:$0xf]
      %v417 = vld [vmem:[%s383 + $0x34] sm:$0xf]
      %v418 = vld [vmem:[%s383 + $0x38] sm:$0xf]
      %v419 = vld [vmem:[%s383 + $0x3c] sm:$0xf]
      %v420 = vld [vmem:[%s383 + $0x40] sm:$0xf]
      %v421 = vld [vmem:[%s383 + $0x44] sm:$0xf]
      %v422 = vld [vmem:[%s383 + $0x48] sm:$0xf]
      %v423 = vld [vmem:[%s383 + $0x4c] sm:$0xf]
      %v424 = vld [vmem:[%s383 + $0x50] sm:$0xf]
      %v425 = vld [vmem:[%s383 + $0x54] sm:$0xf]
      %v426 = vld [vmem:[%s383 + $0x58] sm:$0xf]
      %v427 = vld [vmem:[%s383 + $0x5c] sm:$0xf]
      %v428 = vld [vmem:[%s383 + $0x60] sm:$0xf]
      %v429 = vld [vmem:[%s383 + $0x64] sm:$0xf]
      %v430 = vld [vmem:[%s383 + $0x68] sm:$0xf]
      %v431 = vld [vmem:[%s383 + $0x6c] sm:$0xf]
      %v432 = vld [vmem:[%s383 + $0x70] sm:$0xf]
      %v433 = vld [vmem:[%s383 + $0x74] sm:$0xf]
      %v434 = vld [vmem:[%s383 + $0x78] sm:$0xf]
      %v435 = vld [vmem:[%s383 + $0x7c] sm:$0xf]
      %v436 = vld [vmem:[%s383 + $0x80] sm:$0xf]
      %v437 = vld [vmem:[%s383 + $0x84] sm:$0xf]
      %v438 = vld [vmem:[%s383 + $0x88] sm:$0xf]
      %v439 = vld [vmem:[%s383 + $0x8c] sm:$0xf]
      %v440 = vld [vmem:[%s383 + $0x90] sm:$0xf]
      %v441 = vld [vmem:[%s383 + $0x94] sm:$0xf]
      %v442 = vld [vmem:[%s383 + $0x98] sm:$0xf]
      %v443 = vld [vmem:[%s383 + $0x9c] sm:$0xf]
      %v444 = vld [vmem:[%s383 + $0xa0] sm:$0xf]
      %v445 = vld [vmem:[%s383 + $0xa4] sm:$0xf]
      %v446 = vld [vmem:[%s383 + $0xa8] sm:$0xf]
      %v447 = vld [vmem:[%s383 + $0xac] sm:$0xf]
      %v448 = vld [vmem:[%s383 + $0xb0] sm:$0xf]
      %v449 = vld [vmem:[%s383 + $0xb4] sm:$0xf]
      %v450 = vld [vmem:[%s383 + $0xb8] sm:$0xf]
      %v451 = vld [vmem:[%s383 + $0xbc] sm:$0xf]
      %v452 = vld [vmem:[%s383 + $0xc0] sm:$0xf]
      %v453 = vld [vmem:[%s383 + $0xc4] sm:$0xf]
      %v454 = vld [vmem:[%s383 + $0xc8] sm:$0xf]
      %v455 = vld [vmem:[%s383 + $0xcc] sm:$0xf]
      %v456 = vld [vmem:[%s383 + $0xd0] sm:$0xf]
      %v457 = vld [vmem:[%s383 + $0xd4] sm:$0xf]
      %v458 = vld [vmem:[%s383 + $0xd8] sm:$0xf]
      %v459 = vld [vmem:[%s383 + $0xdc] sm:$0xf]
      %v460 = vld [vmem:[%s383 + $0xe0] sm:$0xf]
      %v461 = vld [vmem:[%s383 + $0xe4] sm:$0xf]
      %v462 = vld [vmem:[%s383 + $0xe8] sm:$0xf]
      %v463 = vld [vmem:[%s383 + $0xec] sm:$0xf]
      %v464 = vld [vmem:[%s383 + $0xf0] sm:$0xf]
      %v465 = vld [vmem:[%s383 + $0xf4] sm:$0xf]
      %v466 = vld [vmem:[%s383 + $0xf8] sm:$0xf]
      %v467 = vld [vmem:[%s383 + $0xfc] sm:$0xf]
      %v484 = vunpack.c.l.b16 %v388
      %v485 = vunpack.c.h.b16 %v388
      %v486 = vunpack.c.l.b16 %v389
      %v487 = vunpack.c.h.b16 %v389
      %v488 = vunpack.c.l.b16 %v390
      %v489 = vunpack.c.h.b16 %v390
      %v490 = vunpack.c.l.b16 %v391
      %v491 = vunpack.c.h.b16 %v391
      %v492 = vunpack.c.l.b16 %v392
      %v493 = vunpack.c.h.b16 %v392
      %v494 = vunpack.c.l.b16 %v393
      %v495 = vunpack.c.h.b16 %v393
      %v496 = vunpack.c.l.b16 %v394
      %v497 = vunpack.c.h.b16 %v394
      %v498 = vunpack.c.l.b16 %v395
      %v499 = vunpack.c.h.b16 %v395
      %v500 = vunpack.c.l.b16 %v396
      %v501 = vunpack.c.h.b16 %v396
      %v502 = vunpack.c.l.b16 %v397
      %v503 = vunpack.c.h.b16 %v397
      %v504 = vunpack.c.l.b16 %v398
      %v505 = vunpack.c.h.b16 %v398
      %v506 = vunpack.c.l.b16 %v399
      %v507 = vunpack.c.h.b16 %v399
      %v508 = vunpack.c.l.b16 %v400
      %v509 = vunpack.c.h.b16 %v400
      %v510 = vunpack.c.l.b16 %v401
      %v511 = vunpack.c.h.b16 %v401
      %v512 = vunpack.c.l.b16 %v402
      %v513 = vunpack.c.h.b16 %v402
      %v514 = vunpack.c.l.b16 %v403
      %v515 = vunpack.c.h.b16 %v403
      %v516 = vpack.c.b16 %v488, %v484
      %v517 = vpack.c.b16 %v489, %v485
      %v518 = vpack.c.b16 %v490, %v486
      %v519 = vpack.c.b16 %v491, %v487
      %v520 = vpack.c.b16 %v496, %v492
      %v521 = vpack.c.b16 %v497, %v493
      %v522 = vpack.c.b16 %v498, %v494
      %v523 = vpack.c.b16 %v499, %v495
      %v524 = vpack.c.b16 %v504, %v500
      %v525 = vpack.c.b16 %v505, %v501
      %v526 = vpack.c.b16 %v506, %v502
      %v527 = vpack.c.b16 %v507, %v503
      %v528 = vpack.c.b16 %v512, %v508
      %v529 = vpack.c.b16 %v513, %v509
      %v530 = vpack.c.b16 %v514, %v510
      %v531 = vpack.c.b16 %v515, %v511
      %v612 = vunpack.c.l.b16 %v404
      %v613 = vunpack.c.l.b16 %v405
      %v614 = vunpack.c.l.b16 %v406
      %v615 = vunpack.c.l.b16 %v407
      %v616 = vunpack.c.l.b16 %v408
      %v617 = vunpack.c.l.b16 %v409
      %v618 = vunpack.c.l.b16 %v410
      %v619 = vunpack.c.l.b16 %v411
      %v620 = vunpack.c.l.b16 %v412
      %v621 = vunpack.c.l.b16 %v413
      %v622 = vunpack.c.l.b16 %v414
      %v623 = vunpack.c.l.b16 %v415
      %v624 = vunpack.c.l.b16 %v416
      %v625 = vunpack.c.l.b16 %v417
      %v626 = vunpack.c.l.b16 %v418
      %v627 = vunpack.c.l.b16 %v419
      %v628 = vunpack.c.l.b16 %v420
      %v629 = vunpack.c.l.b16 %v421
      %v630 = vunpack.c.l.b16 %v422
      %v631 = vunpack.c.l.b16 %v423
      %v632 = vunpack.c.l.b16 %v424
      %v633 = vunpack.c.l.b16 %v425
      %v634 = vunpack.c.l.b16 %v426
      %v635 = vunpack.c.l.b16 %v427
      %v636 = vunpack.c.l.b16 %v428
      %v637 = vunpack.c.l.b16 %v429
      %v638 = vunpack.c.l.b16 %v430
      %v639 = vunpack.c.l.b16 %v431
      %v640 = vunpack.c.l.b16 %v432
      %v641 = vunpack.c.l.b16 %v433
      %v642 = vunpack.c.l.b16 %v434
      %v643 = vunpack.c.l.b16 %v435
      %v644 = vunpack.c.l.b16 %v436
      %v645 = vunpack.c.l.b16 %v437
      %v646 = vunpack.c.l.b16 %v438
      %v647 = vunpack.c.l.b16 %v439
      %v648 = vunpack.c.l.b16 %v440
      %v649 = vunpack.c.l.b16 %v441
      %v650 = vunpack.c.l.b16 %v442
      %v651 = vunpack.c.l.b16 %v443
      %v652 = vunpack.c.l.b16 %v444
      %v653 = vunpack.c.l.b16 %v445
      %v654 = vunpack.c.l.b16 %v446
      %v655 = vunpack.c.l.b16 %v447
      %v656 = vunpack.c.l.b16 %v448
      %v657 = vunpack.c.l.b16 %v449
      %v658 = vunpack.c.l.b16 %v450
      %v659 = vunpack.c.l.b16 %v451
      %v660 = vunpack.c.l.b16 %v452
      %v661 = vunpack.c.l.b16 %v453
      %v662 = vunpack.c.l.b16 %v454
      %v663 = vunpack.c.l.b16 %v455
      %v664 = vunpack.c.l.b16 %v456
      %v665 = vunpack.c.l.b16 %v457
      %v666 = vunpack.c.l.b16 %v458
      %v667 = vunpack.c.l.b16 %v459
      %v668 = vunpack.c.l.b16 %v460
      %v669 = vunpack.c.l.b16 %v461
      %v670 = vunpack.c.l.b16 %v462
      %v671 = vunpack.c.l.b16 %v463
      %v672 = vunpack.c.l.b16 %v464
      %v673 = vunpack.c.l.b16 %v465
      %v674 = vunpack.c.l.b16 %v466
      %v675 = vunpack.c.l.b16 %v467
      %v676 = vpack.c.b16 %v613, %v612
      %v677 = vpack.c.b16 %v615, %v614
      %v678 = vpack.c.b16 %v617, %v616
      %v679 = vpack.c.b16 %v619, %v618
      %v680 = vpack.c.b16 %v621, %v620
      %v681 = vpack.c.b16 %v623, %v622
      %v682 = vpack.c.b16 %v625, %v624
      %v683 = vpack.c.b16 %v627, %v626
      %v684 = vpack.c.b16 %v629, %v628
      %v685 = vpack.c.b16 %v631, %v630
      %v686 = vpack.c.b16 %v633, %v632
      %v687 = vpack.c.b16 %v635, %v634
      %v688 = vpack.c.b16 %v637, %v636
      %v689 = vpack.c.b16 %v639, %v638
      %v690 = vpack.c.b16 %v641, %v640
      %v691 = vpack.c.b16 %v643, %v642
      %v692 = vpack.c.b16 %v645, %v644
      %v693 = vpack.c.b16 %v647, %v646
      %v694 = vpack.c.b16 %v649, %v648
      %v695 = vpack.c.b16 %v651, %v650
      %v696 = vpack.c.b16 %v653, %v652
      %v697 = vpack.c.b16 %v655, %v654
      %v698 = vpack.c.b16 %v657, %v656
      %v699 = vpack.c.b16 %v659, %v658
      %v700 = vpack.c.b16 %v661, %v660
      %v701 = vpack.c.b16 %v663, %v662
      %v702 = vpack.c.b16 %v665, %v664
      %v703 = vpack.c.b16 %v667, %v666
      %v704 = vpack.c.b16 %v669, %v668
      %v705 = vpack.c.b16 %v671, %v670
      %v706 = vpack.c.b16 %v673, %v672
      %v707 = vpack.c.b16 %v675, %v674
      %740 = vmatprep.subr.bf16.mxu0 0
      %741 = vmatpush1.bf16.msra.mxu0 %v676
      %742 = vmatprep.subr.bf16.mxu0 0
      %743 = vmatpush1.bf16.msra.mxu0 %v677
      %744 = vmatprep.subr.bf16.mxu0 0
      %745 = vmatpush1.bf16.msra.mxu0 %v678
      %746 = vmatprep.subr.bf16.mxu0 0
      %747 = vmatpush1.bf16.msra.mxu0 %v679
      %748 = vmatprep.subr.bf16.mxu0 0
      %749 = vmatpush1.bf16.msra.mxu0 %v680
      %750 = vmatprep.subr.bf16.mxu0 0
      %751 = vmatpush1.bf16.msra.mxu0 %v681
      %752 = vmatprep.subr.bf16.mxu0 0
      %753 = vmatpush1.bf16.msra.mxu0 %v682
      %754 = vmatprep.subr.bf16.mxu0 0
      %755 = vmatpush1.bf16.msra.mxu0 %v683
      %756 = vmatprep.subr.bf16.mxu0 0
      %757 = vmatpush1.bf16.msra.mxu0 %v684
      %758 = vmatprep.subr.bf16.mxu0 0
      %759 = vmatpush1.bf16.msra.mxu0 %v685
      %760 = vmatprep.subr.bf16.mxu0 0
      %761 = vmatpush1.bf16.msra.mxu0 %v686
      %762 = vmatprep.subr.bf16.mxu0 0
      %763 = vmatpush1.bf16.msra.mxu0 %v687
      %764 = vmatprep.subr.bf16.mxu0 0
      %765 = vmatpush1.bf16.msra.mxu0 %v688
      %766 = vmatprep.subr.bf16.mxu0 0
      %767 = vmatpush1.bf16.msra.mxu0 %v689
      %768 = vmatprep.subr.bf16.mxu0 0
      %769 = vmatpush1.bf16.msra.mxu0 %v690
      %770 = vmatprep.subr.bf16.mxu0 0
      %771 = vmatpush1.bf16.msra.mxu0 %v691
      %772 = vmatprep.mubr.bf16.mxu0 %v517
      %773 = vmatmul.mubr.bf16.gmra.mrb[0].mxu0 %v516
      %v774 = vpop.f32.mrb[0].mxu0
      %v775 = vadd.f32 0.0, %v774
      %v776 = vpop.f32.mrb[0].mxu0
      %v777 = vpop.f32.mrb[0].mxu0
      %v778 = vadd.f32 0.0, %v777
      %v779 = vpop.f32.mrb[0].mxu0
      %780 = vmatprep.mubr.bf16.mxu0 %v521
      %781 = vmatmul.mubr.bf16.gmra.mrb[0].mxu0 %v520
      %v782 = vpop.f32.mrb[0].mxu0
      %v783 = vadd.f32 0.0, %v782
      %v784 = vpop.f32.mrb[0].mxu0
      %v785 = vpop.f32.mrb[0].mxu0
      %v786 = vadd.f32 0.0, %v785
      %v787 = vpop.f32.mrb[0].mxu0
      %788 = vmatprep.mubr.bf16.mxu0 %v525
      %789 = vmatmul.mubr.bf16.gmra.mrb[0].mxu0 %v524
      %v790 = vpop.f32.mrb[0].mxu0
      %v791 = vadd.f32 0.0, %v790
      %v792 = vpop.f32.mrb[0].mxu0
      %v793 = vpop.f32.mrb[0].mxu0
      %v794 = vadd.f32 0.0, %v793
      %v795 = vpop.f32.mrb[0].mxu0
      %796 = vmatprep.mubr.bf16.mxu0 %v529
      %797 = vmatmul.mubr.bf16.gmra.mrb[0].mxu0 %v528
      %v798 = vpop.f32.mrb[0].mxu0
      %v799 = vadd.f32 0.0, %v798
      %v800 = vpop.f32.mrb[0].mxu0
      %v801 = vpop.f32.mrb[0].mxu0
      %v802 = vadd.f32 0.0, %v801
      %v803 = vpop.f32.mrb[0].mxu0
      %804 = vdwg.mxu0
      %805 = vmatprep.subr.bf16.mxu0 0
      %806 = vmatpush1.bf16.msra.mxu0 %v692
      %807 = vmatprep.subr.bf16.mxu0 0
      %808 = vmatpush1.bf16.msra.mxu0 %v693
      %809 = vmatprep.subr.bf16.mxu0 0
      %810 = vmatpush1.bf16.msra.mxu0 %v694
      %811 = vmatprep.subr.bf16.mxu0 0
      %812 = vmatpush1.bf16.msra.mxu0 %v695
      %813 = vmatprep.subr.bf16.mxu0 0
      %814 = vmatpush1.bf16.msra.mxu0 %v696
      %815 = vmatprep.subr.bf16.mxu0 0
      %816 = vmatpush1.bf16.msra.mxu0 %v697
      %817 = vmatprep.subr.bf16.mxu0 0
      %818 = vmatpush1.bf16.msra.mxu0 %v698
      %819 = vmatprep.subr.bf16.mxu0 0
      %820 = vmatpush1.bf16.msra.mxu0 %v699
      %821 = vmatprep.subr.bf16.mxu0 0
      %822 = vmatpush1.bf16.msra.mxu0 %v700
      %823 = vmatprep.subr.bf16.mxu0 0
      %824 = vmatpush1.bf16.msra.mxu0 %v701
      %825 = vmatprep.subr.bf16.mxu0 0
      %826 = vmatpush1.bf16.msra.mxu0 %v702
      %827 = vmatprep.subr.bf16.mxu0 0
      %828 = vmatpush1.bf16.msra.mxu0 %v703
      %829 = vmatprep.subr.bf16.mxu0 0
      %830 = vmatpush1.bf16.msra.mxu0 %v704
      %831 = vmatprep.subr.bf16.mxu0 0
      %832 = vmatpush1.bf16.msra.mxu0 %v705
      %833 = vmatprep.subr.bf16.mxu0 0
      %834 = vmatpush1.bf16.msra.mxu0 %v706
      %835 = vmatprep.subr.bf16.mxu0 0
      %836 = vmatpush1.bf16.msra.mxu0 %v707
      %837 = vmatprep.mubr.bf16.mxu0 %v519
      %838 = vmatmul.mubr.bf16.gmra.mrb[0].mxu0 %v518
      %v839 = vpop.f32.mrb[0].mxu0
      %v840 = vadd.f32 %v775, %v839
      %v841 = vpop.f32.mrb[0].mxu0
      %v842 = vpop.f32.mrb[0].mxu0
      %v843 = vadd.f32 %v778, %v842
      %v844 = vpop.f32.mrb[0].mxu0
      %845 = vmatprep.mubr.bf16.mxu0 %v523
      %846 = vmatmul.mubr.bf16.gmra.mrb[0].mxu0 %v522
      %v847 = vpop.f32.mrb[0].mxu0
      %v848 = vadd.f32 %v783, %v847
      %v849 = vpop.f32.mrb[0].mxu0
      %v850 = vpop.f32.mrb[0].mxu0
      %v851 = vadd.f32 %v786, %v850
      %v852 = vpop.f32.mrb[0].mxu0
      %853 = vmatprep.mubr.bf16.mxu0 %v527
      %854 = vmatmul.mubr.bf16.gmra.mrb[0].mxu0 %v526
      %v855 = vpop.f32.mrb[0].mxu0
      %v856 = vadd.f32 %v791, %v855
      %v857 = vpop.f32.mrb[0].mxu0
      %v858 = vpop.f32.mrb[0].mxu0
      %v859 = vadd.f32 %v794, %v858
      %v860 = vpop.f32.mrb[0].mxu0
      %861 = vmatprep.mubr.bf16.mxu0 %v531
      %862 = vmatmul.mubr.bf16.gmra.mrb[0].mxu0 %v530
      %v863 = vpop.f32.mrb[0].mxu0
      %v864 = vadd.f32 %v799, %v863
      %v865 = vpop.f32.mrb[0].mxu0
      %v866 = vpop.f32.mrb[0].mxu0
      %v867 = vadd.f32 %v802, %v866
      %v868 = vpop.f32.mrb[0].mxu0
      %869 = vdwg.mxu0
      %v870 = vld [vmem:[%s2] sm:$0xff]
      %v871 = vld [vmem:[%s2 + $0x8] sm:$0xff]
      %v872 = vld [vmem:[%s2 + $0x10] sm:$0xff]
      %v873 = vld [vmem:[%s2 + $0x18] sm:$0xff]
      %v874 = vld [vmem:[%s2 + $0x20] sm:$0xff]
      %v875 = vld [vmem:[%s2 + $0x28] sm:$0xff]
      %v876 = vld [vmem:[%s2 + $0x30] sm:$0xff]
      %v877 = vld [vmem:[%s2 + $0x38] sm:$0xff]
      %v878 = vld [vmem:[%s3] sm:$0xff]
      %v879 = vld [vmem:[%s3 + $0x8] sm:$0xff]
      %v880 = vld [vmem:[%s3 + $0x10] sm:$0xff]
      %v881 = vld [vmem:[%s3 + $0x18] sm:$0xff]
      %v882 = vld [vmem:[%s3 + $0x20] sm:$0xff]
      %v883 = vld [vmem:[%s3 + $0x28] sm:$0xff]
      %v884 = vld [vmem:[%s3 + $0x30] sm:$0xff]
      %v885 = vld [vmem:[%s3 + $0x38] sm:$0xff]
      %v886 = vld [vmem:[%s4] sm:$0xff]
      %v887 = vld [vmem:[%s4 + $0x8] sm:$0xff]
      %v888 = vld [vmem:[%s4 + $0x10] sm:$0xff]
      %v889 = vld [vmem:[%s4 + $0x18] sm:$0xff]
      %v890 = vld [vmem:[%s4 + $0x20] sm:$0xff]
      %v891 = vld [vmem:[%s4 + $0x28] sm:$0xff]
      %v892 = vld [vmem:[%s4 + $0x30] sm:$0xff]
      %v893 = vld [vmem:[%s4 + $0x38] sm:$0xff]
      %vm894 = vcmask 31744
      %v895 = vsel %vm894, %v840, 0.0
      %896 = vadd.xlane.f32.xlu0 %v895
      %v897 = vpop.xlane.xlu0 %896
      %v898 = vsel %vm894, %v843, 0.0
      %899 = vadd.xlane.f32.xlu0 %v898
      %v900 = vpop.xlane.xlu0 %899
      %v901 = vsel %vm894, %v848, 0.0
      %902 = vadd.xlane.f32.xlu0 %v901
      %v903 = vpop.xlane.xlu0 %902
      %v904 = vsel %vm894, %v851, 0.0
      %905 = vadd.xlane.f32.xlu0 %v904
      %v906 = vpop.xlane.xlu0 %905
      %v907 = vsel %vm894, %v856, 0.0
      %908 = vadd.xlane.f32.xlu0 %v907
      %v909 = vpop.xlane.xlu0 %908
      %v910 = vsel %vm894, %v859, 0.0
      %911 = vadd.xlane.f32.xlu0 %v910
      %v912 = vpop.xlane.xlu0 %911
      %v913 = vsel %vm894, %v864, 0.0
      %914 = vadd.xlane.f32.xlu0 %v913
      %v915 = vpop.xlane.xlu0 %914
      %v916 = vsel %vm894, %v867, 0.0
      %917 = vadd.xlane.f32.xlu0 %v916
      %v918 = vpop.xlane.xlu0 %917
      %v919 = vmul.f32 %v897, 0.25
      %v920 = vmul.f32 %v900, 0.25
      %v921 = vmul.f32 %v903, 0.25
      %v922 = vmul.f32 %v906, 0.25
      %v923 = vmul.f32 %v909, 0.25
      %v924 = vmul.f32 %v912, 0.25
      %v925 = vmul.f32 %v915, 0.25
      %v926 = vmul.f32 %v918, 0.25
      %v927 = vmul.f32 %v840, %v840
      %v928 = vmul.f32 %v843, %v843
      %v929 = vmul.f32 %v848, %v848
      %v930 = vmul.f32 %v851, %v851
      %v931 = vmul.f32 %v856, %v856
      %v932 = vmul.f32 %v859, %v859
      %v933 = vmul.f32 %v864, %v864
      %v934 = vmul.f32 %v867, %v867
      %v935 = vsel %vm894, %v927, 0.0
      %936 = vadd.xlane.f32.xlu0 %v935
      %v937 = vpop.xlane.xlu0 %936
      %v938 = vsel %vm894, %v928, 0.0
      %939 = vadd.xlane.f32.xlu0 %v938
      %v940 = vpop.xlane.xlu0 %939
      %v941 = vsel %vm894, %v929, 0.0
      %942 = vadd.xlane.f32.xlu0 %v941
      %v943 = vpop.xlane.xlu0 %942
      %v944 = vsel %vm894, %v930, 0.0
      %945 = vadd.xlane.f32.xlu0 %v944
      %v946 = vpop.xlane.xlu0 %945
      %v947 = vsel %vm894, %v931, 0.0
      %948 = vadd.xlane.f32.xlu0 %v947
      %v949 = vpop.xlane.xlu0 %948
      %v950 = vsel %vm894, %v932, 0.0
      %951 = vadd.xlane.f32.xlu0 %v950
      %v952 = vpop.xlane.xlu0 %951
      %v953 = vsel %vm894, %v933, 0.0
      %954 = vadd.xlane.f32.xlu0 %v953
      %v955 = vpop.xlane.xlu0 %954
      %v956 = vsel %vm894, %v934, 0.0
      %957 = vadd.xlane.f32.xlu0 %v956
      %v958 = vpop.xlane.xlu0 %957
      %v959 = vmul.f32 %v937, 0.25
      %v960 = vmul.f32 %v940, 0.25
      %v961 = vmul.f32 %v943, 0.25
      %v962 = vmul.f32 %v946, 0.25
      %v963 = vmul.f32 %v949, 0.25
      %v964 = vmul.f32 %v952, 0.25
      %v965 = vmul.f32 %v955, 0.25
      %v966 = vmul.f32 %v958, 0.25
      %v967 = vmul.f32 %v919, %v919
      %v968 = vmul.f32 %v920, %v920
      %v969 = vmul.f32 %v921, %v921
      %v970 = vmul.f32 %v922, %v922
      %v971 = vmul.f32 %v923, %v923
      %v972 = vmul.f32 %v924, %v924
      %v973 = vmul.f32 %v925, %v925
      %v974 = vmul.f32 %v926, %v926
      %v975 = vsub.f32 %v959, %v967
      %v976 = vsub.f32 %v960, %v968
      %v977 = vsub.f32 %v961, %v969
      %v978 = vsub.f32 %v962, %v970
      %v979 = vsub.f32 %v963, %v971
      %v980 = vsub.f32 %v964, %v972
      %v981 = vsub.f32 %v965, %v973
      %v982 = vsub.f32 %v966, %v974
      %v983 = vmax.f32 %v975, 0.0
      %v984 = vmax.f32 %v976, 0.0
      %v985 = vmax.f32 %v977, 0.0
      %v986 = vmax.f32 %v978, 0.0
      %v987 = vmax.f32 %v979, 0.0
      %v988 = vmax.f32 %v980, 0.0
      %v989 = vmax.f32 %v981, 0.0
      %v990 = vmax.f32 %v982, 0.0
      %v991 = vsub.f32 %v840, %v919
      %v992 = vsub.f32 %v843, %v920
      %v993 = vsub.f32 %v848, %v921
      %v994 = vsub.f32 %v851, %v922
      %v995 = vsub.f32 %v856, %v923
      %v996 = vsub.f32 %v859, %v924
      %v997 = vsub.f32 %v864, %v925
      %v998 = vsub.f32 %v867, %v926
      %v999 = vadd.f32 %v983, 1e-05
      %v1000 = vadd.f32 %v984, 1e-05
      %v1001 = vadd.f32 %v985, 1e-05
      %v1002 = vadd.f32 %v986, 1e-05
      %v1003 = vadd.f32 %v987, 1e-05
      %v1004 = vadd.f32 %v988, 1e-05
      %v1005 = vadd.f32 %v989, 1e-05
      %v1006 = vadd.f32 %v990, 1e-05
      %v1007 = vrsqrt.pop %v999
      %v1008 = vrsqrt.pop %v1000
      %v1009 = vrsqrt.pop %v1001
      %v1010 = vrsqrt.pop %v1002
      %v1011 = vrsqrt.pop %v1003
      %v1012 = vrsqrt.pop %v1004
      %v1013 = vrsqrt.pop %v1005
      %v1014 = vrsqrt.pop %v1006
      %v1015 = vmul.f32 %v991, %v1007
      %v1016 = vmul.f32 %v992, %v1008
      %v1017 = vmul.f32 %v993, %v1009
      %v1018 = vmul.f32 %v994, %v1010
      %v1019 = vmul.f32 %v995, %v1011
      %v1020 = vmul.f32 %v996, %v1012
      %v1021 = vmul.f32 %v997, %v1013
      %v1022 = vmul.f32 %v998, %v1014
      %1024 = vset.pattern.permute.xlu0 0
      %1025 = vperm.xlu0 %1024, %v870
      %v1026 = vpop.permute.xlu0 %1025
      %1029 = vset.pattern.permute.xlu0 0
      %1030 = vperm.xlu0 %1029, %v871
      %v1031 = vpop.permute.xlu0 %1030
      %1034 = vset.pattern.permute.xlu0 0
      %1035 = vperm.xlu0 %1034, %v872
      %v1036 = vpop.permute.xlu0 %1035
      %1039 = vset.pattern.permute.xlu0 0
      %1040 = vperm.xlu0 %1039, %v873
      %v1041 = vpop.permute.xlu0 %1040
      %1044 = vset.pattern.permute.xlu0 0
      %1045 = vperm.xlu0 %1044, %v874
      %v1046 = vpop.permute.xlu0 %1045
      %1049 = vset.pattern.permute.xlu0 0
      %1050 = vperm.xlu0 %1049, %v875
      %v1051 = vpop.permute.xlu0 %1050
      %1054 = vset.pattern.permute.xlu0 0
      %1055 = vperm.xlu0 %1054, %v876
      %v1056 = vpop.permute.xlu0 %1055
      %1059 = vset.pattern.permute.xlu0 0
      %1060 = vperm.xlu0 %1059, %v877
      %v1061 = vpop.permute.xlu0 %1060
      %v1063 = vmul.f32 %v1015, %v1026
      %v1064 = vmul.f32 %v1016, %v1031
      %v1065 = vmul.f32 %v1017, %v1036
      %v1066 = vmul.f32 %v1018, %v1041
      %v1067 = vmul.f32 %v1019, %v1046
      %v1068 = vmul.f32 %v1020, %v1051
      %v1069 = vmul.f32 %v1021, %v1056
      %v1070 = vmul.f32 %v1022, %v1061
      %1072 = vset.pattern.permute.xlu0 0
      %1073 = vperm.xlu0 %1072, %v878
      %v1074 = vpop.permute.xlu0 %1073
      %1077 = vset.pattern.permute.xlu0 0
      %1078 = vperm.xlu0 %1077, %v879
      %v1079 = vpop.permute.xlu0 %1078
      %1082 = vset.pattern.permute.xlu0 0
      %1083 = vperm.xlu0 %1082, %v880
      %v1084 = vpop.permute.xlu0 %1083
      %1087 = vset.pattern.permute.xlu0 0
      %1088 = vperm.xlu0 %1087, %v881
      %v1089 = vpop.permute.xlu0 %1088
      %1092 = vset.pattern.permute.xlu0 0
      %1093 = vperm.xlu0 %1092, %v882
      %v1094 = vpop.permute.xlu0 %1093
      %1097 = vset.pattern.permute.xlu0 0
      %1098 = vperm.xlu0 %1097, %v883
      %v1099 = vpop.permute.xlu0 %1098
      %1102 = vset.pattern.permute.xlu0 0
      %1103 = vperm.xlu0 %1102, %v884
      %v1104 = vpop.permute.xlu0 %1103
      %1107 = vset.pattern.permute.xlu0 0
      %1108 = vperm.xlu0 %1107, %v885
      %v1109 = vpop.permute.xlu0 %1108
      %v1111 = vadd.f32 %v1063, %v1074
      %v1112 = vadd.f32 %v1064, %v1079
      %v1113 = vadd.f32 %v1065, %v1084
      %v1114 = vadd.f32 %v1066, %v1089
      %v1115 = vadd.f32 %v1067, %v1094
      %v1116 = vadd.f32 %v1068, %v1099
      %v1117 = vadd.f32 %v1069, %v1104
      %v1118 = vadd.f32 %v1070, %v1109
      %vm1119 = vcmp.ge.f32.partialorder %v1111, 0.0
      %vm1120 = vcmp.ge.f32.partialorder %v1112, 0.0
      %vm1121 = vcmp.ge.f32.partialorder %v1113, 0.0
      %vm1122 = vcmp.ge.f32.partialorder %v1114, 0.0
      %vm1123 = vcmp.ge.f32.partialorder %v1115, 0.0
      %vm1124 = vcmp.ge.f32.partialorder %v1116, 0.0
      %vm1125 = vcmp.ge.f32.partialorder %v1117, 0.0
      %vm1126 = vcmp.ge.f32.partialorder %v1118, 0.0
      %1128 = vset.pattern.permute.xlu0 0
      %1129 = vperm.xlu0 %1128, %v886
      %v1130 = vpop.permute.xlu0 %1129
      %1133 = vset.pattern.permute.xlu0 0
      %1134 = vperm.xlu0 %1133, %v887
      %v1135 = vpop.permute.xlu0 %1134
      %1138 = vset.pattern.permute.xlu0 0
      %1139 = vperm.xlu0 %1138, %v888
      %v1140 = vpop.permute.xlu0 %1139
      %1143 = vset.pattern.permute.xlu0 0
      %1144 = vperm.xlu0 %1143, %v889
      %v1145 = vpop.permute.xlu0 %1144
      %1148 = vset.pattern.permute.xlu0 0
      %1149 = vperm.xlu0 %1148, %v890
      %v1150 = vpop.permute.xlu0 %1149
      %1153 = vset.pattern.permute.xlu0 0
      %1154 = vperm.xlu0 %1153, %v891
      %v1155 = vpop.permute.xlu0 %1154
      %1158 = vset.pattern.permute.xlu0 0
      %1159 = vperm.xlu0 %1158, %v892
      %v1160 = vpop.permute.xlu0 %1159
      %1163 = vset.pattern.permute.xlu0 0
      %1164 = vperm.xlu0 %1163, %v893
      %v1165 = vpop.permute.xlu0 %1164
      %v1167 = vmul.f32 %v1130, %v1111
      %v1168 = vmul.f32 %v1135, %v1112
      %v1169 = vmul.f32 %v1140, %v1113
      %v1170 = vmul.f32 %v1145, %v1114
      %v1171 = vmul.f32 %v1150, %v1115
      %v1172 = vmul.f32 %v1155, %v1116
      %v1173 = vmul.f32 %v1160, %v1117
      %v1174 = vmul.f32 %v1165, %v1118
      %v1175 = vsel %vm1119, %v1111, %v1167
      %v1176 = vsel %vm1120, %v1112, %v1168
      %v1177 = vsel %vm1121, %v1113, %v1169
      %v1178 = vsel %vm1122, %v1114, %v1170
      %v1179 = vsel %vm1123, %v1115, %v1171
      %v1180 = vsel %vm1124, %v1116, %v1172
      %v1181 = vsel %vm1125, %v1117, %v1173
      %v1182 = vsel %vm1126, %v1118, %v1174
      %v1183 = vsel %vm894, %v1175, -inf
      %1184 = vmax.xlane.f32.xlu0 %v1183
      %v1185 = vpop.xlane.xlu0 %1184
      %v1186 = vsel %vm894, %v1176, -inf
      %1187 = vmax.xlane.f32.xlu0 %v1186
      %v1188 = vpop.xlane.xlu0 %1187
      %v1189 = vsel %vm894, %v1177, -inf
      %1190 = vmax.xlane.f32.xlu0 %v1189
      %v1191 = vpop.xlane.xlu0 %1190
      %v1192 = vsel %vm894, %v1178, -inf
      %1193 = vmax.xlane.f32.xlu0 %v1192
      %v1194 = vpop.xlane.xlu0 %1193
      %v1195 = vsel %vm894, %v1179, -inf
      %1196 = vmax.xlane.f32.xlu0 %v1195
      %v1197 = vpop.xlane.xlu0 %1196
      %v1198 = vsel %vm894, %v1180, -inf
      %1199 = vmax.xlane.f32.xlu0 %v1198
      %v1200 = vpop.xlane.xlu0 %1199
      %v1201 = vsel %vm894, %v1181, -inf
      %1202 = vmax.xlane.f32.xlu0 %v1201
      %v1203 = vpop.xlane.xlu0 %1202
      %v1204 = vsel %vm894, %v1182, -inf
      %1205 = vmax.xlane.f32.xlu0 %v1204
      %v1206 = vpop.xlane.xlu0 %1205
      %v1207 = vld [vmem:[%s5] sm:$0xff]
      %v1208 = vld [vmem:[%s5 + $0x8] sm:$0xff]
      %v1209 = vld [vmem:[%s5 + $0x10] sm:$0xff]
      %v1210 = vld [vmem:[%s5 + $0x18] sm:$0xff]
      %v1211 = vld [vmem:[%s5 + $0x20] sm:$0xff]
      %v1212 = vld [vmem:[%s5 + $0x28] sm:$0xff]
      %v1213 = vld [vmem:[%s5 + $0x30] sm:$0xff]
      %v1214 = vld [vmem:[%s5 + $0x38] sm:$0xff]
      %v1215 = vmul.f32 %v1207, %v1185
      %v1216 = vmul.f32 %v1208, %v1188
      %v1217 = vmul.f32 %v1209, %v1191
      %v1218 = vmul.f32 %v1210, %v1194
      %v1219 = vmul.f32 %v1211, %v1197
      %v1220 = vmul.f32 %v1212, %v1200
      %v1221 = vmul.f32 %v1213, %v1203
      %v1222 = vmul.f32 %v1214, %v1206
      %vm1223 = vcmask 261120
      %v1224 = vsel %vm1223, %v1215, 0.0
      %v1225 = vsel %vm1223, %v1216, 0.0
      %v1226 = vadd.f32 %v1224, %v1225
      %v1227 = vsel %vm1223, %v1217, 0.0
      %v1228 = vadd.f32 %v1226, %v1227
      %v1229 = vsel %vm1223, %v1218, 0.0
      %v1230 = vadd.f32 %v1228, %v1229
      %v1231 = vsel %vm1223, %v1219, 0.0
      %v1232 = vadd.f32 %v1230, %v1231
      %v1233 = vsel %vm1223, %v1220, 0.0
      %v1234 = vadd.f32 %v1232, %v1233
      %v1235 = vsel %vm1223, %v1221, 0.0
      %v1236 = vadd.f32 %v1234, %v1235
      %v1237 = vsel %vm1223, %v1222, 0.0
      %v1238 = vadd.f32 %v1236, %v1237
      %v1239 = vrot.slane %v1238, 4
      %v1240 = vadd.f32 %v1238, %v1239
      %v1241 = vrot.slane %v1240, 2
      %v1242 = vadd.f32 %v1240, %v1241
      %v1243 = vrot.slane %v1242, 1
      %v1244 = vadd.f32 %v1242, %v1243
      %v1245 = vld [vmem:[%s6] sm:$0x1]
      %v1246 = vadd.f32 %v1244, %v1245
      %vm1247 = vcmp.ge.f32.partialorder %v1246, 0.0
      %v1248 = vld [vmem:[%s7] sm:$0x1]
      %v1249 = vmul.f32 %v1248, %v1246
      %v1250 = vsel %vm1247, %v1246, %v1249
      %v1251 = vld [vmem:[%s8] sm:$0x1]
      %v1252 = vmul.f32 %v1251, %v1250
      %vm1253 = vcmask 253952
      %v1254 = vsel %vm1253, %v1252, 0.0
      %1255 = vadd.xlane.f32.xlu0 %v1254
      %v1256 = vpop.xlane.xlu0 %1255
      %v1257 = vld [vmem:[#allocation2] sm:$0x1]
      %v1258 = vadd.f32 %v1256, %v1257
      %v1259 = vld [vmem:[#allocation3] sm:$0x1]
      %v1260 = vmul.f32 %v1259, %v1258
      %v1261 = vsub.f32 0.0, %v1260
      %v1262 = vmul.f32 %v1261, 1.442695
      %v1263 = vpow.pop %v1262
      %v1264 = vadd.f32 %v1263, 1.0
      %v1265 = vrcp.pop %v1264
      %v1266 = vmul.f32 1.0, %v1265
      %vm1267 = vcmask 0
      %1268 = vst.msk [vmem:[%s386] sm:$0x1] %vm1267, %v1266
      %p1269 = scmp.lt.s32.totalorder %s26, 1
      %s1270 = scalar_select %p1269, %s26, 1
      %s1271 = scalar_lea.vmem %s11, %s1270
      // Predicated region
      $region65: #{discriminator_forward.7} parent=63 // pred_check
        %p1272 = pneg %p280
      $region66: #{discriminator_forward.7} parent=63 // pred_check_branch
        %1274 = sbr.rel (%p1272) target = $region68
      $region67: #{discriminator_forward.7} parent=63 // pred_region
        _
      $region68: #{discriminator_forward.7} parent=63 // pred_fallthru
        _
    $region64: #{discriminator_forward.7} parent=5 // pred_fallthru
      _
    %p1275 = scmp.le.s32.totalorder 2, %s21
    // Predicated region
    $region69: #{discriminator_forward.7} parent=5 // pred_check
      %p1276 = pneg %p1275
    $region70: #{discriminator_forward.7} parent=5 // pred_check_branch
      %1278 = sbr.rel (%p1276) target = $region72
    $region71: #{discriminator_forward.7} parent=5 // pred_region
      %s1279 = ssub.s32 %s21, 2
      // Predicated region
      $region73: #{discriminator_forward.7} parent=71 // pred_check
        %p1280 = pneg %p286
      $region74: #{discriminator_forward.7} parent=71 // pred_check_branch
        %1282 = sbr.rel (%p1280) target = $region76
      $region75: #{discriminator_forward.7} parent=71 // pred_region
        %p1283 = scmp.lt.s32.totalorder %s27, 1
        %s1284 = scalar_select %p1283, %s27, 1
        %s1285 = scalar_lea.vmem %s11, %s1284
      $region76: #{discriminator_forward.7} parent=71 // pred_fallthru
        _
    $region72: #{discriminator_forward.7} parent=5 // pred_fallthru
      _
  $region6: #{discriminator_forward.7} parent=0 // loop_footer
    %s25 = sadd.s32 1, %s21
  $region7: #{discriminator_forward.7} parent=0 // loop_footer_branch
    %20 = sbr.rel target = $region3
  $region8: #{discriminator_forward.7} parent=0 // loop_exit
    _

</llo_original>
